<compile_context>
chip_gen: v6e
topology: v6e:2x2x1
jax: 0.10.0
libtpu: 0.0.40
codegen_flags: <defaults>
</compile_context>

<pallas_src>
import functools

import jax
import jax.numpy as jnp
from jax.experimental import pallas as pl
from jax.experimental.pallas import tpu as pltpu

# ---- synthetic config (stand-in for cfg) -----------------------------------
INPUT_DIM = 16
HID_DIM = 32
OUTPUT_DIM = 8
N_LAYERS = 2
BATCH = 2
SEQ = 8
FC_PAD = 128  # lane-dense post_fc output; sliced back to OUTPUT_DIM outside


# ---- fused forward kernel ----------------------------------------------------
def _bilstm_fused_kernel(*refs, n_layers, T, B, H):
    n_w = 3 * n_layers
    x_ref, h0_ref, c0_ref, pre_w_ref, pre_b_ref = refs[0:5]
    lstm_w = refs[5:5 + n_w]                       # (wih, whh_blockdiag, b) per layer
    post_w_ref, post_b_ref = refs[5 + n_w:7 + n_w]
    fc_ref, hid_ref, cell_ref = refs[7 + n_w:10 + n_w]

    def bf16(a):
        return a.astype(jnp.bfloat16)

    def sigmoid(a):
        # One EUP push (tanh) + VPU fma, vs exp followed by reciprocal.
        return 0.5 * jnp.tanh(0.5 * a) + 0.5

    # pre_fc + ReLU over the whole (time-major, flattened) sequence: one matmul.
    seq = jnp.dot(bf16(x_ref[...]), bf16(pre_w_ref[...]),
                  preferred_element_type=jnp.float32)
    seq = jnp.maximum(seq + pre_b_ref[...], 0.0)                 # [T*B, H] f32

    hid_parts, cell_parts = [], []
    for layer in range(n_layers):
        wih_ref, whh_ref, b_ref = lstm_w[3 * layer:3 * layer + 3]

        # Hoisted input projection: full sequence, both directions, one matmul.
        gx = jnp.dot(bf16(seq), bf16(wih_ref[...]),
                     preferred_element_type=jnp.float32) + b_ref[...]   # [T*B, 8H]

        # Lane-packed recurrent state [B, 2H] = [h_fwd | h_bwd]; cells kept
        # per-direction (used only in 32-lane gate math).
        h = jnp.concatenate([h0_ref[2 * layer], h0_ref[2 * layer + 1]], axis=1)
        c_f = c0_ref[2 * layer]
        c_b = c0_ref[2 * layer + 1]

        def gate_update(g, c_prev):
            # Per-direction gate column order is [i, f, o, g] (wrapper-side
            # permutation of PyTorch's [i, f, g, o]).
            sg = sigmoid(g[:, 0:3 * H])                          # i,f,o: one slab
            gg = jnp.tanh(g[:, 3 * H:4 * H])
            c = sg[:, H:2 * H] * c_prev + sg[:, 0:H] * gg
            hh = sg[:, 2 * H:3 * H] * jnp.tanh(c)
            return hh, c

        outs_f = [None] * T
        outs_b = [None] * T
        for t in range(T):                                       # unrolled (T static)
            tr = T - 1 - t                                       # backward time index
            # One MXU push for BOTH directions: [B, 2H] @ [2H, 8H] (block-diag).
            gh = jnp.dot(h, whh_ref[...], preferred_element_type=jnp.float32)
            g_f = gx[t * B:(t + 1) * B, 0:4 * H] + gh[:, 0:4 * H]
            g_b = gx[tr * B:(tr + 1) * B, 4 * H:8 * H] + gh[:, 4 * H:8 * H]
            h_f, c_f = gate_update(g_f, c_f)
            h_b, c_b = gate_update(g_b, c_b)
            outs_f[t] = h_f
            outs_b[tr] = h_b
            h = jnp.concatenate([h_f, h_b], axis=1)              # stay lane-packed

        hid_parts += [h_f, h_b]
        cell_parts += [c_f, c_b]

        # Next-layer input assembled in registers (no VMEM scratch round trip),
        # time-major with direction-concat last dim: [T*B, 2H].
        seq = jnp.concatenate(
            [jnp.concatenate([outs_f[t], outs_b[t]], axis=1) for t in range(T)],
            axis=0)
        # TODO(synk): inter-layer dropout (training only) omitted (eval mode).

    # post_fc on the top layer's full sequence (lane-padded to 128): one matmul.
    fc_ref[...] = (jnp.dot(bf16(seq), bf16(post_w_ref[...]),
                           preferred_element_type=jnp.float32) + post_b_ref[...])

    # Final states written once each as a single 2-D [2L*B, H] store.
    hid_ref[...] = jnp.concatenate(hid_parts, axis=0)
    cell_ref[...] = jnp.concatenate(cell_parts, axis=0)


# ---- parameter init (deterministic, PyTorch-style uniform) ------------------
def init_params(key):
    def uniform(k_, shape, bound):
        return jax.random.uniform(k_, shape, jnp.float32, -bound, bound)

    keys = iter(jax.random.split(key, 64))
    params = {}
    bnd = 1.0 / float(INPUT_DIM) ** 0.5
    params["pre_w"] = uniform(next(keys), (INPUT_DIM, HID_DIM), bnd)
    params["pre_b"] = uniform(next(keys), (1, HID_DIM), bnd)
    bnd = 1.0 / float(2 * HID_DIM) ** 0.5
    params["post_w"] = uniform(next(keys), (2 * HID_DIM, OUTPUT_DIM), bnd)
    params["post_b"] = uniform(next(keys), (1, OUTPUT_DIM), bnd)

    # LSTM weights per layer, directions concatenated along the gate axis.
    #   wih    [in, 8H]  columns = [fwd(i,f,o,g) | bwd(i,f,o,g)]
    #   whh_bd [2H, 8H]  block-diagonal: rows 0:H -> fwd cols, rows H:2H -> bwd cols
    #   b      [1, 8H]   b_ih + b_hh folded (inference)
    # Converting real nn.LSTM weights = transpose + chunk permutation (wrapper-only).
    H = HID_DIM
    params["wih"], params["whh_bd"], params["b"] = [], [], []
    bnd = 1.0 / float(H) ** 0.5
    for layer in range(N_LAYERS):
        in_dim = H if layer == 0 else 2 * H
        wih_d, whh_d, b_d = [], [], []
        for _ in range(2):  # fwd, bwd
            wih_d.append(uniform(next(keys), (in_dim, 4 * H), bnd))
            whh_d.append(uniform(next(keys), (H, 4 * H), bnd))
            b_ih = uniform(next(keys), (1, 4 * H), bnd)
            b_hh = uniform(next(keys), (1, 4 * H), bnd)
            b_d.append(b_ih + b_hh)
        params["wih"].append(jnp.concatenate(wih_d, axis=1))
        whh_bd = jnp.zeros((2 * H, 8 * H), jnp.float32)
        whh_bd = whh_bd.at[:H, :4 * H].set(whh_d[0])
        whh_bd = whh_bd.at[H:, 4 * H:].set(whh_d[1])
        params["whh_bd"].append(whh_bd)
        params["b"].append(jnp.concatenate(b_d, axis=1))
    return params


# ---- full forward -----------------------------------------------------------
def bilstm_forward(params, X, h_0, c_0):
    """X: [B, T, INPUT_DIM]; h_0, c_0: [N_LAYERS*2, B, HID_DIM]."""
    B, T, _ = X.shape
    H = HID_DIM

    # Module-boundary layout plumbing (tiny arrays, no compute hoisted):
    # batch-first -> time-major flat; zero-pad post_fc weight columns to 128 lanes.
    x_tm = jnp.transpose(X, (1, 0, 2)).reshape(T * B, INPUT_DIM)
    post_w_p = jnp.pad(params["post_w"], ((0, 0), (0, FC_PAD - OUTPUT_DIM)))
    post_b_p = jnp.pad(params["post_b"], ((0, 0), (0, FC_PAD - OUTPUT_DIM)))

    args = [x_tm, h_0, c_0, params["pre_w"], params["pre_b"]]
    for layer in range(N_LAYERS):
        args += [params["wih"][layer], params["whh_bd"][layer], params["b"][layer]]
    args += [post_w_p, post_b_p]

    def full_spec(a):
        nd = a.ndim
        return pl.BlockSpec(a.shape, lambda i, nd=nd: (0,) * nd)

    in_specs = [full_spec(a) for a in args]
    out_specs = [
        pl.BlockSpec((T * B, FC_PAD), lambda i: (0, 0)),
        pl.BlockSpec((N_LAYERS * 2 * B, H), lambda i: (0, 0)),
        pl.BlockSpec((N_LAYERS * 2 * B, H), lambda i: (0, 0)),
    ]
    out_shape = (
        jax.ShapeDtypeStruct((T * B, FC_PAD), jnp.float32),
        jax.ShapeDtypeStruct((N_LAYERS * 2 * B, H), jnp.float32),
        jax.ShapeDtypeStruct((N_LAYERS * 2 * B, H), jnp.float32),
    )

    fc_tm, hid_flat, cell_flat = pl.pallas_call(
        functools.partial(_bilstm_fused_kernel,
                          n_layers=N_LAYERS, T=T, B=B, H=H),
        out_shape=out_shape,
        grid_spec=pltpu.PrefetchScalarGridSpec(
            num_scalar_prefetch=0,
            grid=(1,),
            in_specs=in_specs,
            out_specs=out_specs,
        ),
        compiler_params=pltpu.CompilerParams(
            dimension_semantics=("arbitrary",)),
    )(*args)

    # Layout plumbing back: slice the lane padding, time-major -> batch-first,
    # flat final states -> [N_LAYERS*2, B, H].
    fc_out = jnp.transpose(fc_tm[:, :OUTPUT_DIM].reshape(T, B, OUTPUT_DIM),
                           (1, 0, 2))
    hidden = hid_flat.reshape(N_LAYERS * 2, B, H)
    cell = cell_flat.reshape(N_LAYERS * 2, B, H)
    return fc_out, hidden, cell


if __name__ == "__main__":
    key = jax.random.PRNGKey(0)
    kp, kx, kh, kc = jax.random.split(key, 4)
    params = init_params(kp)

    X = jax.random.normal(kx, (BATCH, SEQ, INPUT_DIM), jnp.float32)
    h_0 = jax.random.normal(kh, (N_LAYERS * 2, BATCH, HID_DIM), jnp.float32)
    c_0 = jax.random.normal(kc, (N_LAYERS * 2, BATCH, HID_DIM), jnp.float32)

    fc_out, hidden, cell = jax.jit(bilstm_forward)(params, X, h_0, c_0)
    jax.block_until_ready((fc_out, hidden, cell))

    assert fc_out.shape == (BATCH, SEQ, OUTPUT_DIM)
    assert hidden.shape == (N_LAYERS * 2, BATCH, HID_DIM)
    assert cell.shape == (N_LAYERS * 2, BATCH, HID_DIM)
    print("KERNEL_OK")
</pallas_src>

<mosaic_0001>
module attributes {stable_mosaic.version = 11 : i64} {
  func.func @_bilstm_fused_kernel(%arg0: i32, %arg1: memref<16x16xf32, #tpu.memory_space<vmem>>, %arg2: memref<4x2x32xf32, #tpu.memory_space<vmem>>, %arg3: memref<4x2x32xf32, #tpu.memory_space<vmem>>, %arg4: memref<16x32xf32, #tpu.memory_space<vmem>>, %arg5: memref<1x32xf32, #tpu.memory_space<vmem>>, %arg6: memref<32x256xf32, #tpu.memory_space<vmem>>, %arg7: memref<64x256xf32, #tpu.memory_space<vmem>>, %arg8: memref<1x256xf32, #tpu.memory_space<vmem>>, %arg9: memref<64x256xf32, #tpu.memory_space<vmem>>, %arg10: memref<64x256xf32, #tpu.memory_space<vmem>>, %arg11: memref<1x256xf32, #tpu.memory_space<vmem>>, %arg12: memref<64x128xf32, #tpu.memory_space<vmem>>, %arg13: memref<1x128xf32, #tpu.memory_space<vmem>>, %arg14: memref<16x128xf32, #tpu.memory_space<vmem>>, %arg15: memref<8x32xf32, #tpu.memory_space<vmem>>, %arg16: memref<8x32xf32, #tpu.memory_space<vmem>>) attributes {dimension_semantics = [#tpu.dimension_semantics<arbitrary>], iteration_bounds = array<i64: 1>, scalar_prefetch = 0 : i64, scratch_operands = 0 : i64, tpu.core_type = #tpu.core_type<tc>, window_params = [{pipeline_mode = #tpu.pipeline_mode<synchronous>, transform_indices = @transform_0, window_bounds = array<i64: 16, 16>}, {pipeline_mode = #tpu.pipeline_mode<synchronous>, transform_indices = @transform_1, window_bounds = array<i64: 4, 2, 32>}, {pipeline_mode = #tpu.pipeline_mode<synchronous>, transform_indices = @transform_2, window_bounds = array<i64: 4, 2, 32>}, {pipeline_mode = #tpu.pipeline_mode<synchronous>, transform_indices = @transform_3, window_bounds = array<i64: 16, 32>}, {pipeline_mode = #tpu.pipeline_mode<synchronous>, transform_indices = @transform_4, window_bounds = array<i64: 1, 32>}, {pipeline_mode = #tpu.pipeline_mode<synchronous>, transform_indices = @transform_5, window_bounds = array<i64: 32, 256>}, {pipeline_mode = #tpu.pipeline_mode<synchronous>, transform_indices = @transform_6, window_bounds = array<i64: 64, 256>}, {pipeline_mode = #tpu.pipeline_mode<synchronous>, transform_indices = @transform_7, window_bounds = array<i64: 1, 256>}, {pipeline_mode = #tpu.pipeline_mode<synchronous>, transform_indices = @transform_8, window_bounds = array<i64: 64, 256>}, {pipeline_mode = #tpu.pipeline_mode<synchronous>, transform_indices = @transform_9, window_bounds = array<i64: 64, 256>}, {pipeline_mode = #tpu.pipeline_mode<synchronous>, transform_indices = @transform_10, window_bounds = array<i64: 1, 256>}, {pipeline_mode = #tpu.pipeline_mode<synchronous>, transform_indices = @transform_11, window_bounds = array<i64: 64, 128>}, {pipeline_mode = #tpu.pipeline_mode<synchronous>, transform_indices = @transform_12, window_bounds = array<i64: 1, 128>}, {pipeline_mode = #tpu.pipeline_mode<synchronous>, transform_indices = @transform_13, window_bounds = array<i64: 16, 128>}, {pipeline_mode = #tpu.pipeline_mode<synchronous>, transform_indices = @transform_14, window_bounds = array<i64: 8, 32>}, {pipeline_mode = #tpu.pipeline_mode<synchronous>, transform_indices = @transform_15, window_bounds = array<i64: 8, 32>}]} {
    %c0 = arith.constant 0 : index
    %c0_0 = arith.constant 0 : index
    %0 = vector.load %arg1[%c0, %c0_0] : memref<16x16xf32, #tpu.memory_space<vmem>>, vector<16x16xf32>
    %1 = arith.truncf %0 : vector<16x16xf32> to vector<16x16xbf16>
    %c0_1 = arith.constant 0 : index
    %c0_2 = arith.constant 0 : index
    %2 = vector.load %arg4[%c0_1, %c0_2] : memref<16x32xf32, #tpu.memory_space<vmem>>, vector<16x32xf32>
    %3 = arith.truncf %2 : vector<16x32xf32> to vector<16x32xbf16>
    %cst = arith.constant dense<0.000000e+00> : vector<16x32xf32>
    %4 = tpu.matmul %1, %3, %cst {dimension_numbers = #tpu.dot_dimension_numbers<[1], [0], [0], [1], [0, 0, 1, 1], [], []>} : vector<16x16xbf16>, vector<16x32xbf16>, vector<16x32xf32> -> vector<16x32xf32>
    %c0_3 = arith.constant 0 : index
    %c0_4 = arith.constant 0 : index
    %5 = vector.load %arg5[%c0_3, %c0_4] : memref<1x32xf32, #tpu.memory_space<vmem>>, vector<1x32xf32>
    %6 = vector.broadcast %5 : vector<1x32xf32> to vector<16x32xf32>
    %7 = arith.addf %4, %6 : vector<16x32xf32>
    %cst_5 = arith.constant 0.000000e+00 : f32
    %8 = vector.broadcast %cst_5 : f32 to vector<16x32xf32>
    %9 = arith.maximumf %7, %8 : vector<16x32xf32>
    %10 = arith.truncf %9 : vector<16x32xf32> to vector<16x32xbf16>
    %c0_6 = arith.constant 0 : index
    %c0_7 = arith.constant 0 : index
    %11 = vector.load %arg6[%c0_6, %c0_7] : memref<32x256xf32, #tpu.memory_space<vmem>>, vector<32x256xf32>
    %12 = arith.truncf %11 : vector<32x256xf32> to vector<32x256xbf16>
    %cst_8 = arith.constant dense<0.000000e+00> : vector<16x256xf32>
    %13 = tpu.matmul %10, %12, %cst_8 {dimension_numbers = #tpu.dot_dimension_numbers<[1], [0], [0], [1], [0, 0, 1, 1], [], []>} : vector<16x32xbf16>, vector<32x256xbf16>, vector<16x256xf32> -> vector<16x256xf32>
    %c0_9 = arith.constant 0 : index
    %c0_10 = arith.constant 0 : index
    %14 = vector.load %arg8[%c0_9, %c0_10] : memref<1x256xf32, #tpu.memory_space<vmem>>, vector<1x256xf32>
    %15 = vector.broadcast %14 : vector<1x256xf32> to vector<16x256xf32>
    %16 = arith.addf %13, %15 : vector<16x256xf32>
    %c0_11 = arith.constant 0 : index
    %c0_12 = arith.constant 0 : index
    %c0_13 = arith.constant 0 : index
    %17 = vector.load %arg2[%c0_11, %c0_12, %c0_13] : memref<4x2x32xf32, #tpu.memory_space<vmem>>, vector<1x2x32xf32>
    %18 = vector.shape_cast %17 : vector<1x2x32xf32> to vector<2x32xf32>
    %c1 = arith.constant 1 : index
    %c0_14 = arith.constant 0 : index
    %c0_15 = arith.constant 0 : index
    %19 = vector.load %arg2[%c1, %c0_14, %c0_15] : memref<4x2x32xf32, #tpu.memory_space<vmem>>, vector<1x2x32xf32>
    %20 = vector.shape_cast %19 : vector<1x2x32xf32> to vector<2x32xf32>
    %21 = tpu.concatenate %18, %20 in 1 : vector<2x32xf32>, vector<2x32xf32> -> vector<2x64xf32>
    %c0_16 = arith.constant 0 : index
    %c0_17 = arith.constant 0 : index
    %c0_18 = arith.constant 0 : index
    %22 = vector.load %arg3[%c0_16, %c0_17, %c0_18] : memref<4x2x32xf32, #tpu.memory_space<vmem>>, vector<1x2x32xf32>
    %23 = vector.shape_cast %22 : vector<1x2x32xf32> to vector<2x32xf32>
    %c1_19 = arith.constant 1 : index
    %c0_20 = arith.constant 0 : index
    %c0_21 = arith.constant 0 : index
    %24 = vector.load %arg3[%c1_19, %c0_20, %c0_21] : memref<4x2x32xf32, #tpu.memory_space<vmem>>, vector<1x2x32xf32>
    %25 = vector.shape_cast %24 : vector<1x2x32xf32> to vector<2x32xf32>
    %c0_22 = arith.constant 0 : index
    %c0_23 = arith.constant 0 : index
    %26 = vector.load %arg7[%c0_22, %c0_23] : memref<64x256xf32, #tpu.memory_space<vmem>>, vector<64x256xf32>
    %cst_24 = arith.constant dense<0.000000e+00> : vector<2x256xf32>
    %27 = tpu.matmul %21, %26, %cst_24 {dimension_numbers = #tpu.dot_dimension_numbers<[1], [0], [0], [1], [0, 0, 1, 1], [], []>} : vector<2x64xf32>, vector<64x256xf32>, vector<2x256xf32> -> vector<2x256xf32>
    %28 = vector.extract_strided_slice %16 {offsets = [0, 0], sizes = [2, 128], strides = [1, 1]} : vector<16x256xf32> to vector<2x128xf32>
    %29 = vector.extract_strided_slice %27 {offsets = [0, 0], sizes = [2, 128], strides = [1, 1]} : vector<2x256xf32> to vector<2x128xf32>
    %30 = arith.addf %28, %29 : vector<2x128xf32>
    %31 = vector.extract_strided_slice %16 {offsets = [14, 128], sizes = [2, 128], strides = [1, 1]} : vector<16x256xf32> to vector<2x128xf32>
    %32 = vector.extract_strided_slice %27 {offsets = [0, 128], sizes = [2, 128], strides = [1, 1]} : vector<2x256xf32> to vector<2x128xf32>
    %33 = arith.addf %31, %32 : vector<2x128xf32>
    %34 = vector.extract_strided_slice %30 {offsets = [0, 0], sizes = [2, 96], strides = [1, 1]} : vector<2x128xf32> to vector<2x96xf32>
    %cst_25 = arith.constant 5.000000e-01 : f32
    %35 = vector.broadcast %cst_25 : f32 to vector<2x96xf32>
    %36 = arith.mulf %35, %34 : vector<2x96xf32>
    %37 = math.tanh %36 : vector<2x96xf32>
    %cst_26 = arith.constant 5.000000e-01 : f32
    %38 = vector.broadcast %cst_26 : f32 to vector<2x96xf32>
    %39 = arith.mulf %38, %37 : vector<2x96xf32>
    %cst_27 = arith.constant 5.000000e-01 : f32
    %40 = vector.broadcast %cst_27 : f32 to vector<2x96xf32>
    %41 = arith.addf %39, %40 : vector<2x96xf32>
    %42 = vector.extract_strided_slice %30 {offsets = [0, 96], sizes = [2, 32], strides = [1, 1]} : vector<2x128xf32> to vector<2x32xf32>
    %43 = math.tanh %42 : vector<2x32xf32>
    %44 = vector.extract_strided_slice %41 {offsets = [0, 32], sizes = [2, 32], strides = [1, 1]} : vector<2x96xf32> to vector<2x32xf32>
    %45 = arith.mulf %44, %23 : vector<2x32xf32>
    %46 = vector.extract_strided_slice %41 {offsets = [0, 0], sizes = [2, 32], strides = [1, 1]} : vector<2x96xf32> to vector<2x32xf32>
    %47 = arith.mulf %46, %43 : vector<2x32xf32>
    %48 = arith.addf %45, %47 : vector<2x32xf32>
    %49 = vector.extract_strided_slice %41 {offsets = [0, 64], sizes = [2, 32], strides = [1, 1]} : vector<2x96xf32> to vector<2x32xf32>
    %50 = math.tanh %48 : vector<2x32xf32>
    %51 = arith.mulf %49, %50 : vector<2x32xf32>
    %52 = vector.extract_strided_slice %33 {offsets = [0, 0], sizes = [2, 96], strides = [1, 1]} : vector<2x128xf32> to vector<2x96xf32>
    %cst_28 = arith.constant 5.000000e-01 : f32
    %53 = vector.broadcast %cst_28 : f32 to vector<2x96xf32>
    %54 = arith.mulf %53, %52 : vector<2x96xf32>
    %55 = math.tanh %54 : vector<2x96xf32>
    %cst_29 = arith.constant 5.000000e-01 : f32
    %56 = vector.broadcast %cst_29 : f32 to vector<2x96xf32>
    %57 = arith.mulf %56, %55 : vector<2x96xf32>
    %cst_30 = arith.constant 5.000000e-01 : f32
    %58 = vector.broadcast %cst_30 : f32 to vector<2x96xf32>
    %59 = arith.addf %57, %58 : vector<2x96xf32>
    %60 = vector.extract_strided_slice %33 {offsets = [0, 96], sizes = [2, 32], strides = [1, 1]} : vector<2x128xf32> to vector<2x32xf32>
    %61 = math.tanh %60 : vector<2x32xf32>
    %62 = vector.extract_strided_slice %59 {offsets = [0, 32], sizes = [2, 32], strides = [1, 1]} : vector<2x96xf32> to vector<2x32xf32>
    %63 = arith.mulf %62, %25 : vector<2x32xf32>
    %64 = vector.extract_strided_slice %59 {offsets = [0, 0], sizes = [2, 32], strides = [1, 1]} : vector<2x96xf32> to vector<2x32xf32>
    %65 = arith.mulf %64, %61 : vector<2x32xf32>
    %66 = arith.addf %63, %65 : vector<2x32xf32>
    %67 = vector.extract_strided_slice %59 {offsets = [0, 64], sizes = [2, 32], strides = [1, 1]} : vector<2x96xf32> to vector<2x32xf32>
    %68 = math.tanh %66 : vector<2x32xf32>
    %69 = arith.mulf %67, %68 : vector<2x32xf32>
    %70 = tpu.concatenate %51, %69 in 1 : vector<2x32xf32>, vector<2x32xf32> -> vector<2x64xf32>
    %c0_31 = arith.constant 0 : index
    %c0_32 = arith.constant 0 : index
    %71 = vector.load %arg7[%c0_31, %c0_32] : memref<64x256xf32, #tpu.memory_space<vmem>>, vector<64x256xf32>
    %cst_33 = arith.constant dense<0.000000e+00> : vector<2x256xf32>
    %72 = tpu.matmul %70, %71, %cst_33 {dimension_numbers = #tpu.dot_dimension_numbers<[1], [0], [0], [1], [0, 0, 1, 1], [], []>} : vector<2x64xf32>, vector<64x256xf32>, vector<2x256xf32> -> vector<2x256xf32>
    %73 = vector.extract_strided_slice %16 {offsets = [2, 0], sizes = [2, 128], strides = [1, 1]} : vector<16x256xf32> to vector<2x128xf32>
    %74 = vector.extract_strided_slice %72 {offsets = [0, 0], sizes = [2, 128], strides = [1, 1]} : vector<2x256xf32> to vector<2x128xf32>
    %75 = arith.addf %73, %74 : vector<2x128xf32>
    %76 = vector.extract_strided_slice %16 {offsets = [12, 128], sizes = [2, 128], strides = [1, 1]} : vector<16x256xf32> to vector<2x128xf32>
    %77 = vector.extract_strided_slice %72 {offsets = [0, 128], sizes = [2, 128], strides = [1, 1]} : vector<2x256xf32> to vector<2x128xf32>
    %78 = arith.addf %76, %77 : vector<2x128xf32>
    %79 = vector.extract_strided_slice %75 {offsets = [0, 0], sizes = [2, 96], strides = [1, 1]} : vector<2x128xf32> to vector<2x96xf32>
    %cst_34 = arith.constant 5.000000e-01 : f32
    %80 = vector.broadcast %cst_34 : f32 to vector<2x96xf32>
    %81 = arith.mulf %80, %79 : vector<2x96xf32>
    %82 = math.tanh %81 : vector<2x96xf32>
    %cst_35 = arith.constant 5.000000e-01 : f32
    %83 = vector.broadcast %cst_35 : f32 to vector<2x96xf32>
    %84 = arith.mulf %83, %82 : vector<2x96xf32>
    %cst_36 = arith.constant 5.000000e-01 : f32
    %85 = vector.broadcast %cst_36 : f32 to vector<2x96xf32>
    %86 = arith.addf %84, %85 : vector<2x96xf32>
    %87 = vector.extract_strided_slice %75 {offsets = [0, 96], sizes = [2, 32], strides = [1, 1]} : vector<2x128xf32> to vector<2x32xf32>
    %88 = math.tanh %87 : vector<2x32xf32>
    %89 = vector.extract_strided_slice %86 {offsets = [0, 32], sizes = [2, 32], strides = [1, 1]} : vector<2x96xf32> to vector<2x32xf32>
    %90 = arith.mulf %89, %48 : vector<2x32xf32>
    %91 = vector.extract_strided_slice %86 {offsets = [0, 0], sizes = [2, 32], strides = [1, 1]} : vector<2x96xf32> to vector<2x32xf32>
    %92 = arith.mulf %91, %88 : vector<2x32xf32>
    %93 = arith.addf %90, %92 : vector<2x32xf32>
    %94 = vector.extract_strided_slice %86 {offsets = [0, 64], sizes = [2, 32], strides = [1, 1]} : vector<2x96xf32> to vector<2x32xf32>
    %95 = math.tanh %93 : vector<2x32xf32>
    %96 = arith.mulf %94, %95 : vector<2x32xf32>
    %97 = vector.extract_strided_slice %78 {offsets = [0, 0], sizes = [2, 96], strides = [1, 1]} : vector<2x128xf32> to vector<2x96xf32>
    %cst_37 = arith.constant 5.000000e-01 : f32
    %98 = vector.broadcast %cst_37 : f32 to vector<2x96xf32>
    %99 = arith.mulf %98, %97 : vector<2x96xf32>
    %100 = math.tanh %99 : vector<2x96xf32>
    %cst_38 = arith.constant 5.000000e-01 : f32
    %101 = vector.broadcast %cst_38 : f32 to vector<2x96xf32>
    %102 = arith.mulf %101, %100 : vector<2x96xf32>
    %cst_39 = arith.constant 5.000000e-01 : f32
    %103 = vector.broadcast %cst_39 : f32 to vector<2x96xf32>
    %104 = arith.addf %102, %103 : vector<2x96xf32>
    %105 = vector.extract_strided_slice %78 {offsets = [0, 96], sizes = [2, 32], strides = [1, 1]} : vector<2x128xf32> to vector<2x32xf32>
    %106 = math.tanh %105 : vector<2x32xf32>
    %107 = vector.extract_strided_slice %104 {offsets = [0, 32], sizes = [2, 32], strides = [1, 1]} : vector<2x96xf32> to vector<2x32xf32>
    %108 = arith.mulf %107, %66 : vector<2x32xf32>
    %109 = vector.extract_strided_slice %104 {offsets = [0, 0], sizes = [2, 32], strides = [1, 1]} : vector<2x96xf32> to vector<2x32xf32>
    %110 = arith.mulf %109, %106 : vector<2x32xf32>
    %111 = arith.addf %108, %110 : vector<2x32xf32>
    %112 = vector.extract_strided_slice %104 {offsets = [0, 64], sizes = [2, 32], strides = [1, 1]} : vector<2x96xf32> to vector<2x32xf32>
    %113 = math.tanh %111 : vector<2x32xf32>
    %114 = arith.mulf %112, %113 : vector<2x32xf32>
    %115 = tpu.concatenate %96, %114 in 1 : vector<2x32xf32>, vector<2x32xf32> -> vector<2x64xf32>
    %c0_40 = arith.constant 0 : index
    %c0_41 = arith.constant 0 : index
    %116 = vector.load %arg7[%c0_40, %c0_41] : memref<64x256xf32, #tpu.memory_space<vmem>>, vector<64x256xf32>
    %cst_42 = arith.constant dense<0.000000e+00> : vector<2x256xf32>
    %117 = tpu.matmul %115, %116, %cst_42 {dimension_numbers = #tpu.dot_dimension_numbers<[1], [0], [0], [1], [0, 0, 1, 1], [], []>} : vector<2x64xf32>, vector<64x256xf32>, vector<2x256xf32> -> vector<2x256xf32>
    %118 = vector.extract_strided_slice %16 {offsets = [4, 0], sizes = [2, 128], strides = [1, 1]} : vector<16x256xf32> to vector<2x128xf32>
    %119 = vector.extract_strided_slice %117 {offsets = [0, 0], sizes = [2, 128], strides = [1, 1]} : vector<2x256xf32> to vector<2x128xf32>
    %120 = arith.addf %118, %119 : vector<2x128xf32>
    %121 = vector.extract_strided_slice %16 {offsets = [10, 128], sizes = [2, 128], strides = [1, 1]} : vector<16x256xf32> to vector<2x128xf32>
    %122 = vector.extract_strided_slice %117 {offsets = [0, 128], sizes = [2, 128], strides = [1, 1]} : vector<2x256xf32> to vector<2x128xf32>
    %123 = arith.addf %121, %122 : vector<2x128xf32>
    %124 = vector.extract_strided_slice %120 {offsets = [0, 0], sizes = [2, 96], strides = [1, 1]} : vector<2x128xf32> to vector<2x96xf32>
    %cst_43 = arith.constant 5.000000e-01 : f32
    %125 = vector.broadcast %cst_43 : f32 to vector<2x96xf32>
    %126 = arith.mulf %125, %124 : vector<2x96xf32>
    %127 = math.tanh %126 : vector<2x96xf32>
    %cst_44 = arith.constant 5.000000e-01 : f32
    %128 = vector.broadcast %cst_44 : f32 to vector<2x96xf32>
    %129 = arith.mulf %128, %127 : vector<2x96xf32>
    %cst_45 = arith.constant 5.000000e-01 : f32
    %130 = vector.broadcast %cst_45 : f32 to vector<2x96xf32>
    %131 = arith.addf %129, %130 : vector<2x96xf32>
    %132 = vector.extract_strided_slice %120 {offsets = [0, 96], sizes = [2, 32], strides = [1, 1]} : vector<2x128xf32> to vector<2x32xf32>
    %133 = math.tanh %132 : vector<2x32xf32>
    %134 = vector.extract_strided_slice %131 {offsets = [0, 32], sizes = [2, 32], strides = [1, 1]} : vector<2x96xf32> to vector<2x32xf32>
    %135 = arith.mulf %134, %93 : vector<2x32xf32>
    %136 = vector.extract_strided_slice %131 {offsets = [0, 0], sizes = [2, 32], strides = [1, 1]} : vector<2x96xf32> to vector<2x32xf32>
    %137 = arith.mulf %136, %133 : vector<2x32xf32>
    %138 = arith.addf %135, %137 : vector<2x32xf32>
    %139 = vector.extract_strided_slice %131 {offsets = [0, 64], sizes = [2, 32], strides = [1, 1]} : vector<2x96xf32> to vector<2x32xf32>
    %140 = math.tanh %138 : vector<2x32xf32>
    %141 = arith.mulf %139, %140 : vector<2x32xf32>
    %142 = vector.extract_strided_slice %123 {offsets = [0, 0], sizes = [2, 96], strides = [1, 1]} : vector<2x128xf32> to vector<2x96xf32>
    %cst_46 = arith.constant 5.000000e-01 : f32
    %143 = vector.broadcast %cst_46 : f32 to vector<2x96xf32>
    %144 = arith.mulf %143, %142 : vector<2x96xf32>
    %145 = math.tanh %144 : vector<2x96xf32>
    %cst_47 = arith.constant 5.000000e-01 : f32
    %146 = vector.broadcast %cst_47 : f32 to vector<2x96xf32>
    %147 = arith.mulf %146, %145 : vector<2x96xf32>
    %cst_48 = arith.constant 5.000000e-01 : f32
    %148 = vector.broadcast %cst_48 : f32 to vector<2x96xf32>
    %149 = arith.addf %147, %148 : vector<2x96xf32>
    %150 = vector.extract_strided_slice %123 {offsets = [0, 96], sizes = [2, 32], strides = [1, 1]} : vector<2x128xf32> to vector<2x32xf32>
    %151 = math.tanh %150 : vector<2x32xf32>
    %152 = vector.extract_strided_slice %149 {offsets = [0, 32], sizes = [2, 32], strides = [1, 1]} : vector<2x96xf32> to vector<2x32xf32>
    %153 = arith.mulf %152, %111 : vector<2x32xf32>
    %154 = vector.extract_strided_slice %149 {offsets = [0, 0], sizes = [2, 32], strides = [1, 1]} : vector<2x96xf32> to vector<2x32xf32>
    %155 = arith.mulf %154, %151 : vector<2x32xf32>
    %156 = arith.addf %153, %155 : vector<2x32xf32>
    %157 = vector.extract_strided_slice %149 {offsets = [0, 64], sizes = [2, 32], strides = [1, 1]} : vector<2x96xf32> to vector<2x32xf32>
    %158 = math.tanh %156 : vector<2x32xf32>
    %159 = arith.mulf %157, %158 : vector<2x32xf32>
    %160 = tpu.concatenate %141, %159 in 1 : vector<2x32xf32>, vector<2x32xf32> -> vector<2x64xf32>
    %c0_49 = arith.constant 0 : index
    %c0_50 = arith.constant 0 : index
    %161 = vector.load %arg7[%c0_49, %c0_50] : memref<64x256xf32, #tpu.memory_space<vmem>>, vector<64x256xf32>
    %cst_51 = arith.constant dense<0.000000e+00> : vector<2x256xf32>
    %162 = tpu.matmul %160, %161, %cst_51 {dimension_numbers = #tpu.dot_dimension_numbers<[1], [0], [0], [1], [0, 0, 1, 1], [], []>} : vector<2x64xf32>, vector<64x256xf32>, vector<2x256xf32> -> vector<2x256xf32>
    %163 = vector.extract_strided_slice %16 {offsets = [6, 0], sizes = [2, 128], strides = [1, 1]} : vector<16x256xf32> to vector<2x128xf32>
    %164 = vector.extract_strided_slice %162 {offsets = [0, 0], sizes = [2, 128], strides = [1, 1]} : vector<2x256xf32> to vector<2x128xf32>
    %165 = arith.addf %163, %164 : vector<2x128xf32>
    %166 = vector.extract_strided_slice %16 {offsets = [8, 128], sizes = [2, 128], strides = [1, 1]} : vector<16x256xf32> to vector<2x128xf32>
    %167 = vector.extract_strided_slice %162 {offsets = [0, 128], sizes = [2, 128], strides = [1, 1]} : vector<2x256xf32> to vector<2x128xf32>
    %168 = arith.addf %166, %167 : vector<2x128xf32>
    %169 = vector.extract_strided_slice %165 {offsets = [0, 0], sizes = [2, 96], strides = [1, 1]} : vector<2x128xf32> to vector<2x96xf32>
    %cst_52 = arith.constant 5.000000e-01 : f32
    %170 = vector.broadcast %cst_52 : f32 to vector<2x96xf32>
    %171 = arith.mulf %170, %169 : vector<2x96xf32>
    %172 = math.tanh %171 : vector<2x96xf32>
    %cst_53 = arith.constant 5.000000e-01 : f32
    %173 = vector.broadcast %cst_53 : f32 to vector<2x96xf32>
    %174 = arith.mulf %173, %172 : vector<2x96xf32>
    %cst_54 = arith.constant 5.000000e-01 : f32
    %175 = vector.broadcast %cst_54 : f32 to vector<2x96xf32>
    %176 = arith.addf %174, %175 : vector<2x96xf32>
    %177 = vector.extract_strided_slice %165 {offsets = [0, 96], sizes = [2, 32], strides = [1, 1]} : vector<2x128xf32> to vector<2x32xf32>
    %178 = math.tanh %177 : vector<2x32xf32>
    %179 = vector.extract_strided_slice %176 {offsets = [0, 32], sizes = [2, 32], strides = [1, 1]} : vector<2x96xf32> to vector<2x32xf32>
    %180 = arith.mulf %179, %138 : vector<2x32xf32>
    %181 = vector.extract_strided_slice %176 {offsets = [0, 0], sizes = [2, 32], strides = [1, 1]} : vector<2x96xf32> to vector<2x32xf32>
    %182 = arith.mulf %181, %178 : vector<2x32xf32>
    %183 = arith.addf %180, %182 : vector<2x32xf32>
    %184 = vector.extract_strided_slice %176 {offsets = [0, 64], sizes = [2, 32], strides = [1, 1]} : vector<2x96xf32> to vector<2x32xf32>
    %185 = math.tanh %183 : vector<2x32xf32>
    %186 = arith.mulf %184, %185 : vector<2x32xf32>
    %187 = vector.extract_strided_slice %168 {offsets = [0, 0], sizes = [2, 96], strides = [1, 1]} : vector<2x128xf32> to vector<2x96xf32>
    %cst_55 = arith.constant 5.000000e-01 : f32
    %188 = vector.broadcast %cst_55 : f32 to vector<2x96xf32>
    %189 = arith.mulf %188, %187 : vector<2x96xf32>
    %190 = math.tanh %189 : vector<2x96xf32>
    %cst_56 = arith.constant 5.000000e-01 : f32
    %191 = vector.broadcast %cst_56 : f32 to vector<2x96xf32>
    %192 = arith.mulf %191, %190 : vector<2x96xf32>
    %cst_57 = arith.constant 5.000000e-01 : f32
    %193 = vector.broadcast %cst_57 : f32 to vector<2x96xf32>
    %194 = arith.addf %192, %193 : vector<2x96xf32>
    %195 = vector.extract_strided_slice %168 {offsets = [0, 96], sizes = [2, 32], strides = [1, 1]} : vector<2x128xf32> to vector<2x32xf32>
    %196 = math.tanh %195 : vector<2x32xf32>
    %197 = vector.extract_strided_slice %194 {offsets = [0, 32], sizes = [2, 32], strides = [1, 1]} : vector<2x96xf32> to vector<2x32xf32>
    %198 = arith.mulf %197, %156 : vector<2x32xf32>
    %199 = vector.extract_strided_slice %194 {offsets = [0, 0], sizes = [2, 32], strides = [1, 1]} : vector<2x96xf32> to vector<2x32xf32>
    %200 = arith.mulf %199, %196 : vector<2x32xf32>
    %201 = arith.addf %198, %200 : vector<2x32xf32>
    %202 = vector.extract_strided_slice %194 {offsets = [0, 64], sizes = [2, 32], strides = [1, 1]} : vector<2x96xf32> to vector<2x32xf32>
    %203 = math.tanh %201 : vector<2x32xf32>
    %204 = arith.mulf %202, %203 : vector<2x32xf32>
    %205 = tpu.concatenate %186, %204 in 1 : vector<2x32xf32>, vector<2x32xf32> -> vector<2x64xf32>
    %c0_58 = arith.constant 0 : index
    %c0_59 = arith.constant 0 : index
    %206 = vector.load %arg7[%c0_58, %c0_59] : memref<64x256xf32, #tpu.memory_space<vmem>>, vector<64x256xf32>
    %cst_60 = arith.constant dense<0.000000e+00> : vector<2x256xf32>
    %207 = tpu.matmul %205, %206, %cst_60 {dimension_numbers = #tpu.dot_dimension_numbers<[1], [0], [0], [1], [0, 0, 1, 1], [], []>} : vector<2x64xf32>, vector<64x256xf32>, vector<2x256xf32> -> vector<2x256xf32>
    %208 = vector.extract_strided_slice %16 {offsets = [8, 0], sizes = [2, 128], strides = [1, 1]} : vector<16x256xf32> to vector<2x128xf32>
    %209 = vector.extract_strided_slice %207 {offsets = [0, 0], sizes = [2, 128], strides = [1, 1]} : vector<2x256xf32> to vector<2x128xf32>
    %210 = arith.addf %208, %209 : vector<2x128xf32>
    %211 = vector.extract_strided_slice %16 {offsets = [6, 128], sizes = [2, 128], strides = [1, 1]} : vector<16x256xf32> to vector<2x128xf32>
    %212 = vector.extract_strided_slice %207 {offsets = [0, 128], sizes = [2, 128], strides = [1, 1]} : vector<2x256xf32> to vector<2x128xf32>
    %213 = arith.addf %211, %212 : vector<2x128xf32>
    %214 = vector.extract_strided_slice %210 {offsets = [0, 0], sizes = [2, 96], strides = [1, 1]} : vector<2x128xf32> to vector<2x96xf32>
    %cst_61 = arith.constant 5.000000e-01 : f32
    %215 = vector.broadcast %cst_61 : f32 to vector<2x96xf32>
    %216 = arith.mulf %215, %214 : vector<2x96xf32>
    %217 = math.tanh %216 : vector<2x96xf32>
    %cst_62 = arith.constant 5.000000e-01 : f32
    %218 = vector.broadcast %cst_62 : f32 to vector<2x96xf32>
    %219 = arith.mulf %218, %217 : vector<2x96xf32>
    %cst_63 = arith.constant 5.000000e-01 : f32
    %220 = vector.broadcast %cst_63 : f32 to vector<2x96xf32>
    %221 = arith.addf %219, %220 : vector<2x96xf32>
    %222 = vector.extract_strided_slice %210 {offsets = [0, 96], sizes = [2, 32], strides = [1, 1]} : vector<2x128xf32> to vector<2x32xf32>
    %223 = math.tanh %222 : vector<2x32xf32>
    %224 = vector.extract_strided_slice %221 {offsets = [0, 32], sizes = [2, 32], strides = [1, 1]} : vector<2x96xf32> to vector<2x32xf32>
    %225 = arith.mulf %224, %183 : vector<2x32xf32>
    %226 = vector.extract_strided_slice %221 {offsets = [0, 0], sizes = [2, 32], strides = [1, 1]} : vector<2x96xf32> to vector<2x32xf32>
    %227 = arith.mulf %226, %223 : vector<2x32xf32>
    %228 = arith.addf %225, %227 : vector<2x32xf32>
    %229 = vector.extract_strided_slice %221 {offsets = [0, 64], sizes = [2, 32], strides = [1, 1]} : vector<2x96xf32> to vector<2x32xf32>
    %230 = math.tanh %228 : vector<2x32xf32>
    %231 = arith.mulf %229, %230 : vector<2x32xf32>
    %232 = vector.extract_strided_slice %213 {offsets = [0, 0], sizes = [2, 96], strides = [1, 1]} : vector<2x128xf32> to vector<2x96xf32>
    %cst_64 = arith.constant 5.000000e-01 : f32
    %233 = vector.broadcast %cst_64 : f32 to vector<2x96xf32>
    %234 = arith.mulf %233, %232 : vector<2x96xf32>
    %235 = math.tanh %234 : vector<2x96xf32>
    %cst_65 = arith.constant 5.000000e-01 : f32
    %236 = vector.broadcast %cst_65 : f32 to vector<2x96xf32>
    %237 = arith.mulf %236, %235 : vector<2x96xf32>
    %cst_66 = arith.constant 5.000000e-01 : f32
    %238 = vector.broadcast %cst_66 : f32 to vector<2x96xf32>
    %239 = arith.addf %237, %238 : vector<2x96xf32>
    %240 = vector.extract_strided_slice %213 {offsets = [0, 96], sizes = [2, 32], strides = [1, 1]} : vector<2x128xf32> to vector<2x32xf32>
    %241 = math.tanh %240 : vector<2x32xf32>
    %242 = vector.extract_strided_slice %239 {offsets = [0, 32], sizes = [2, 32], strides = [1, 1]} : vector<2x96xf32> to vector<2x32xf32>
    %243 = arith.mulf %242, %201 : vector<2x32xf32>
    %244 = vector.extract_strided_slice %239 {offsets = [0, 0], sizes = [2, 32], strides = [1, 1]} : vector<2x96xf32> to vector<2x32xf32>
    %245 = arith.mulf %244, %241 : vector<2x32xf32>
    %246 = arith.addf %243, %245 : vector<2x32xf32>
    %247 = vector.extract_strided_slice %239 {offsets = [0, 64], sizes = [2, 32], strides = [1, 1]} : vector<2x96xf32> to vector<2x32xf32>
    %248 = math.tanh %246 : vector<2x32xf32>
    %249 = arith.mulf %247, %248 : vector<2x32xf32>
    %250 = tpu.concatenate %231, %249 in 1 : vector<2x32xf32>, vector<2x32xf32> -> vector<2x64xf32>
    %c0_67 = arith.constant 0 : index
    %c0_68 = arith.constant 0 : index
    %251 = vector.load %arg7[%c0_67, %c0_68] : memref<64x256xf32, #tpu.memory_space<vmem>>, vector<64x256xf32>
    %cst_69 = arith.constant dense<0.000000e+00> : vector<2x256xf32>
    %252 = tpu.matmul %250, %251, %cst_69 {dimension_numbers = #tpu.dot_dimension_numbers<[1], [0], [0], [1], [0, 0, 1, 1], [], []>} : vector<2x64xf32>, vector<64x256xf32>, vector<2x256xf32> -> vector<2x256xf32>
    %253 = vector.extract_strided_slice %16 {offsets = [10, 0], sizes = [2, 128], strides = [1, 1]} : vector<16x256xf32> to vector<2x128xf32>
    %254 = vector.extract_strided_slice %252 {offsets = [0, 0], sizes = [2, 128], strides = [1, 1]} : vector<2x256xf32> to vector<2x128xf32>
    %255 = arith.addf %253, %254 : vector<2x128xf32>
    %256 = vector.extract_strided_slice %16 {offsets = [4, 128], sizes = [2, 128], strides = [1, 1]} : vector<16x256xf32> to vector<2x128xf32>
    %257 = vector.extract_strided_slice %252 {offsets = [0, 128], sizes = [2, 128], strides = [1, 1]} : vector<2x256xf32> to vector<2x128xf32>
    %258 = arith.addf %256, %257 : vector<2x128xf32>
    %259 = vector.extract_strided_slice %255 {offsets = [0, 0], sizes = [2, 96], strides = [1, 1]} : vector<2x128xf32> to vector<2x96xf32>
    %cst_70 = arith.constant 5.000000e-01 : f32
    %260 = vector.broadcast %cst_70 : f32 to vector<2x96xf32>
    %261 = arith.mulf %260, %259 : vector<2x96xf32>
    %262 = math.tanh %261 : vector<2x96xf32>
    %cst_71 = arith.constant 5.000000e-01 : f32
    %263 = vector.broadcast %cst_71 : f32 to vector<2x96xf32>
    %264 = arith.mulf %263, %262 : vector<2x96xf32>
    %cst_72 = arith.constant 5.000000e-01 : f32
    %265 = vector.broadcast %cst_72 : f32 to vector<2x96xf32>
    %266 = arith.addf %264, %265 : vector<2x96xf32>
    %267 = vector.extract_strided_slice %255 {offsets = [0, 96], sizes = [2, 32], strides = [1, 1]} : vector<2x128xf32> to vector<2x32xf32>
    %268 = math.tanh %267 : vector<2x32xf32>
    %269 = vector.extract_strided_slice %266 {offsets = [0, 32], sizes = [2, 32], strides = [1, 1]} : vector<2x96xf32> to vector<2x32xf32>
    %270 = arith.mulf %269, %228 : vector<2x32xf32>
    %271 = vector.extract_strided_slice %266 {offsets = [0, 0], sizes = [2, 32], strides = [1, 1]} : vector<2x96xf32> to vector<2x32xf32>
    %272 = arith.mulf %271, %268 : vector<2x32xf32>
    %273 = arith.addf %270, %272 : vector<2x32xf32>
    %274 = vector.extract_strided_slice %266 {offsets = [0, 64], sizes = [2, 32], strides = [1, 1]} : vector<2x96xf32> to vector<2x32xf32>
    %275 = math.tanh %273 : vector<2x32xf32>
    %276 = arith.mulf %274, %275 : vector<2x32xf32>
    %277 = vector.extract_strided_slice %258 {offsets = [0, 0], sizes = [2, 96], strides = [1, 1]} : vector<2x128xf32> to vector<2x96xf32>
    %cst_73 = arith.constant 5.000000e-01 : f32
    %278 = vector.broadcast %cst_73 : f32 to vector<2x96xf32>
    %279 = arith.mulf %278, %277 : vector<2x96xf32>
    %280 = math.tanh %279 : vector<2x96xf32>
    %cst_74 = arith.constant 5.000000e-01 : f32
    %281 = vector.broadcast %cst_74 : f32 to vector<2x96xf32>
    %282 = arith.mulf %281, %280 : vector<2x96xf32>
    %cst_75 = arith.constant 5.000000e-01 : f32
    %283 = vector.broadcast %cst_75 : f32 to vector<2x96xf32>
    %284 = arith.addf %282, %283 : vector<2x96xf32>
    %285 = vector.extract_strided_slice %258 {offsets = [0, 96], sizes = [2, 32], strides = [1, 1]} : vector<2x128xf32> to vector<2x32xf32>
    %286 = math.tanh %285 : vector<2x32xf32>
    %287 = vector.extract_strided_slice %284 {offsets = [0, 32], sizes = [2, 32], strides = [1, 1]} : vector<2x96xf32> to vector<2x32xf32>
    %288 = arith.mulf %287, %246 : vector<2x32xf32>
    %289 = vector.extract_strided_slice %284 {offsets = [0, 0], sizes = [2, 32], strides = [1, 1]} : vector<2x96xf32> to vector<2x32xf32>
    %290 = arith.mulf %289, %286 : vector<2x32xf32>
    %291 = arith.addf %288, %290 : vector<2x32xf32>
    %292 = vector.extract_strided_slice %284 {offsets = [0, 64], sizes = [2, 32], strides = [1, 1]} : vector<2x96xf32> to vector<2x32xf32>
    %293 = math.tanh %291 : vector<2x32xf32>
    %294 = arith.mulf %292, %293 : vector<2x32xf32>
    %295 = tpu.concatenate %276, %294 in 1 : vector<2x32xf32>, vector<2x32xf32> -> vector<2x64xf32>
    %c0_76 = arith.constant 0 : index
    %c0_77 = arith.constant 0 : index
    %296 = vector.load %arg7[%c0_76, %c0_77] : memref<64x256xf32, #tpu.memory_space<vmem>>, vector<64x256xf32>
    %cst_78 = arith.constant dense<0.000000e+00> : vector<2x256xf32>
    %297 = tpu.matmul %295, %296, %cst_78 {dimension_numbers = #tpu.dot_dimension_numbers<[1], [0], [0], [1], [0, 0, 1, 1], [], []>} : vector<2x64xf32>, vector<64x256xf32>, vector<2x256xf32> -> vector<2x256xf32>
    %298 = vector.extract_strided_slice %16 {offsets = [12, 0], sizes = [2, 128], strides = [1, 1]} : vector<16x256xf32> to vector<2x128xf32>
    %299 = vector.extract_strided_slice %297 {offsets = [0, 0], sizes = [2, 128], strides = [1, 1]} : vector<2x256xf32> to vector<2x128xf32>
    %300 = arith.addf %298, %299 : vector<2x128xf32>
    %301 = vector.extract_strided_slice %16 {offsets = [2, 128], sizes = [2, 128], strides = [1, 1]} : vector<16x256xf32> to vector<2x128xf32>
    %302 = vector.extract_strided_slice %297 {offsets = [0, 128], sizes = [2, 128], strides = [1, 1]} : vector<2x256xf32> to vector<2x128xf32>
    %303 = arith.addf %301, %302 : vector<2x128xf32>
    %304 = vector.extract_strided_slice %300 {offsets = [0, 0], sizes = [2, 96], strides = [1, 1]} : vector<2x128xf32> to vector<2x96xf32>
    %cst_79 = arith.constant 5.000000e-01 : f32
    %305 = vector.broadcast %cst_79 : f32 to vector<2x96xf32>
    %306 = arith.mulf %305, %304 : vector<2x96xf32>
    %307 = math.tanh %306 : vector<2x96xf32>
    %cst_80 = arith.constant 5.000000e-01 : f32
    %308 = vector.broadcast %cst_80 : f32 to vector<2x96xf32>
    %309 = arith.mulf %308, %307 : vector<2x96xf32>
    %cst_81 = arith.constant 5.000000e-01 : f32
    %310 = vector.broadcast %cst_81 : f32 to vector<2x96xf32>
    %311 = arith.addf %309, %310 : vector<2x96xf32>
    %312 = vector.extract_strided_slice %300 {offsets = [0, 96], sizes = [2, 32], strides = [1, 1]} : vector<2x128xf32> to vector<2x32xf32>
    %313 = math.tanh %312 : vector<2x32xf32>
    %314 = vector.extract_strided_slice %311 {offsets = [0, 32], sizes = [2, 32], strides = [1, 1]} : vector<2x96xf32> to vector<2x32xf32>
    %315 = arith.mulf %314, %273 : vector<2x32xf32>
    %316 = vector.extract_strided_slice %311 {offsets = [0, 0], sizes = [2, 32], strides = [1, 1]} : vector<2x96xf32> to vector<2x32xf32>
    %317 = arith.mulf %316, %313 : vector<2x32xf32>
    %318 = arith.addf %315, %317 : vector<2x32xf32>
    %319 = vector.extract_strided_slice %311 {offsets = [0, 64], sizes = [2, 32], strides = [1, 1]} : vector<2x96xf32> to vector<2x32xf32>
    %320 = math.tanh %318 : vector<2x32xf32>
    %321 = arith.mulf %319, %320 : vector<2x32xf32>
    %322 = vector.extract_strided_slice %303 {offsets = [0, 0], sizes = [2, 96], strides = [1, 1]} : vector<2x128xf32> to vector<2x96xf32>
    %cst_82 = arith.constant 5.000000e-01 : f32
    %323 = vector.broadcast %cst_82 : f32 to vector<2x96xf32>
    %324 = arith.mulf %323, %322 : vector<2x96xf32>
    %325 = math.tanh %324 : vector<2x96xf32>
    %cst_83 = arith.constant 5.000000e-01 : f32
    %326 = vector.broadcast %cst_83 : f32 to vector<2x96xf32>
    %327 = arith.mulf %326, %325 : vector<2x96xf32>
    %cst_84 = arith.constant 5.000000e-01 : f32
    %328 = vector.broadcast %cst_84 : f32 to vector<2x96xf32>
    %329 = arith.addf %327, %328 : vector<2x96xf32>
    %330 = vector.extract_strided_slice %303 {offsets = [0, 96], sizes = [2, 32], strides = [1, 1]} : vector<2x128xf32> to vector<2x32xf32>
    %331 = math.tanh %330 : vector<2x32xf32>
    %332 = vector.extract_strided_slice %329 {offsets = [0, 32], sizes = [2, 32], strides = [1, 1]} : vector<2x96xf32> to vector<2x32xf32>
    %333 = arith.mulf %332, %291 : vector<2x32xf32>
    %334 = vector.extract_strided_slice %329 {offsets = [0, 0], sizes = [2, 32], strides = [1, 1]} : vector<2x96xf32> to vector<2x32xf32>
    %335 = arith.mulf %334, %331 : vector<2x32xf32>
    %336 = arith.addf %333, %335 : vector<2x32xf32>
    %337 = vector.extract_strided_slice %329 {offsets = [0, 64], sizes = [2, 32], strides = [1, 1]} : vector<2x96xf32> to vector<2x32xf32>
    %338 = math.tanh %336 : vector<2x32xf32>
    %339 = arith.mulf %337, %338 : vector<2x32xf32>
    %340 = tpu.concatenate %321, %339 in 1 : vector<2x32xf32>, vector<2x32xf32> -> vector<2x64xf32>
    %c0_85 = arith.constant 0 : index
    %c0_86 = arith.constant 0 : index
    %341 = vector.load %arg7[%c0_85, %c0_86] : memref<64x256xf32, #tpu.memory_space<vmem>>, vector<64x256xf32>
    %cst_87 = arith.constant dense<0.000000e+00> : vector<2x256xf32>
    %342 = tpu.matmul %340, %341, %cst_87 {dimension_numbers = #tpu.dot_dimension_numbers<[1], [0], [0], [1], [0, 0, 1, 1], [], []>} : vector<2x64xf32>, vector<64x256xf32>, vector<2x256xf32> -> vector<2x256xf32>
    %343 = vector.extract_strided_slice %16 {offsets = [14, 0], sizes = [2, 128], strides = [1, 1]} : vector<16x256xf32> to vector<2x128xf32>
    %344 = vector.extract_strided_slice %342 {offsets = [0, 0], sizes = [2, 128], strides = [1, 1]} : vector<2x256xf32> to vector<2x128xf32>
    %345 = arith.addf %343, %344 : vector<2x128xf32>
    %346 = vector.extract_strided_slice %16 {offsets = [0, 128], sizes = [2, 128], strides = [1, 1]} : vector<16x256xf32> to vector<2x128xf32>
    %347 = vector.extract_strided_slice %342 {offsets = [0, 128], sizes = [2, 128], strides = [1, 1]} : vector<2x256xf32> to vector<2x128xf32>
    %348 = arith.addf %346, %347 : vector<2x128xf32>
    %349 = vector.extract_strided_slice %345 {offsets = [0, 0], sizes = [2, 96], strides = [1, 1]} : vector<2x128xf32> to vector<2x96xf32>
    %cst_88 = arith.constant 5.000000e-01 : f32
    %350 = vector.broadcast %cst_88 : f32 to vector<2x96xf32>
    %351 = arith.mulf %350, %349 : vector<2x96xf32>
    %352 = math.tanh %351 : vector<2x96xf32>
    %cst_89 = arith.constant 5.000000e-01 : f32
    %353 = vector.broadcast %cst_89 : f32 to vector<2x96xf32>
    %354 = arith.mulf %353, %352 : vector<2x96xf32>
    %cst_90 = arith.constant 5.000000e-01 : f32
    %355 = vector.broadcast %cst_90 : f32 to vector<2x96xf32>
    %356 = arith.addf %354, %355 : vector<2x96xf32>
    %357 = vector.extract_strided_slice %345 {offsets = [0, 96], sizes = [2, 32], strides = [1, 1]} : vector<2x128xf32> to vector<2x32xf32>
    %358 = math.tanh %357 : vector<2x32xf32>
    %359 = vector.extract_strided_slice %356 {offsets = [0, 32], sizes = [2, 32], strides = [1, 1]} : vector<2x96xf32> to vector<2x32xf32>
    %360 = arith.mulf %359, %318 : vector<2x32xf32>
    %361 = vector.extract_strided_slice %356 {offsets = [0, 0], sizes = [2, 32], strides = [1, 1]} : vector<2x96xf32> to vector<2x32xf32>
    %362 = arith.mulf %361, %358 : vector<2x32xf32>
    %363 = arith.addf %360, %362 : vector<2x32xf32>
    %364 = vector.extract_strided_slice %356 {offsets = [0, 64], sizes = [2, 32], strides = [1, 1]} : vector<2x96xf32> to vector<2x32xf32>
    %365 = math.tanh %363 : vector<2x32xf32>
    %366 = arith.mulf %364, %365 : vector<2x32xf32>
    %367 = vector.extract_strided_slice %348 {offsets = [0, 0], sizes = [2, 96], strides = [1, 1]} : vector<2x128xf32> to vector<2x96xf32>
    %cst_91 = arith.constant 5.000000e-01 : f32
    %368 = vector.broadcast %cst_91 : f32 to vector<2x96xf32>
    %369 = arith.mulf %368, %367 : vector<2x96xf32>
    %370 = math.tanh %369 : vector<2x96xf32>
    %cst_92 = arith.constant 5.000000e-01 : f32
    %371 = vector.broadcast %cst_92 : f32 to vector<2x96xf32>
    %372 = arith.mulf %371, %370 : vector<2x96xf32>
    %cst_93 = arith.constant 5.000000e-01 : f32
    %373 = vector.broadcast %cst_93 : f32 to vector<2x96xf32>
    %374 = arith.addf %372, %373 : vector<2x96xf32>
    %375 = vector.extract_strided_slice %348 {offsets = [0, 96], sizes = [2, 32], strides = [1, 1]} : vector<2x128xf32> to vector<2x32xf32>
    %376 = math.tanh %375 : vector<2x32xf32>
    %377 = vector.extract_strided_slice %374 {offsets = [0, 32], sizes = [2, 32], strides = [1, 1]} : vector<2x96xf32> to vector<2x32xf32>
    %378 = arith.mulf %377, %336 : vector<2x32xf32>
    %379 = vector.extract_strided_slice %374 {offsets = [0, 0], sizes = [2, 32], strides = [1, 1]} : vector<2x96xf32> to vector<2x32xf32>
    %380 = arith.mulf %379, %376 : vector<2x32xf32>
    %381 = arith.addf %378, %380 : vector<2x32xf32>
    %382 = vector.extract_strided_slice %374 {offsets = [0, 64], sizes = [2, 32], strides = [1, 1]} : vector<2x96xf32> to vector<2x32xf32>
    %383 = math.tanh %381 : vector<2x32xf32>
    %384 = arith.mulf %382, %383 : vector<2x32xf32>
    %385 = tpu.concatenate %51, %384 in 1 : vector<2x32xf32>, vector<2x32xf32> -> vector<2x64xf32>
    %386 = tpu.concatenate %96, %339 in 1 : vector<2x32xf32>, vector<2x32xf32> -> vector<2x64xf32>
    %387 = tpu.concatenate %141, %294 in 1 : vector<2x32xf32>, vector<2x32xf32> -> vector<2x64xf32>
    %388 = tpu.concatenate %186, %249 in 1 : vector<2x32xf32>, vector<2x32xf32> -> vector<2x64xf32>
    %389 = tpu.concatenate %231, %204 in 1 : vector<2x32xf32>, vector<2x32xf32> -> vector<2x64xf32>
    %390 = tpu.concatenate %276, %159 in 1 : vector<2x32xf32>, vector<2x32xf32> -> vector<2x64xf32>
    %391 = tpu.concatenate %321, %114 in 1 : vector<2x32xf32>, vector<2x32xf32> -> vector<2x64xf32>
    %392 = tpu.concatenate %366, %69 in 1 : vector<2x32xf32>, vector<2x32xf32> -> vector<2x64xf32>
    %393 = tpu.concatenate %385, %386, %387, %388, %389, %390, %391, %392 in 0 : vector<2x64xf32>, vector<2x64xf32>, vector<2x64xf32>, vector<2x64xf32>, vector<2x64xf32>, vector<2x64xf32>, vector<2x64xf32>, vector<2x64xf32> -> vector<16x64xf32>
    %394 = arith.truncf %393 : vector<16x64xf32> to vector<16x64xbf16>
    %c0_94 = arith.constant 0 : index
    %c0_95 = arith.constant 0 : index
    %395 = vector.load %arg9[%c0_94, %c0_95] : memref<64x256xf32, #tpu.memory_space<vmem>>, vector<64x256xf32>
    %396 = arith.truncf %395 : vector<64x256xf32> to vector<64x256xbf16>
    %cst_96 = arith.constant dense<0.000000e+00> : vector<16x256xf32>
    %397 = tpu.matmul %394, %396, %cst_96 {dimension_numbers = #tpu.dot_dimension_numbers<[1], [0], [0], [1], [0, 0, 1, 1], [], []>} : vector<16x64xbf16>, vector<64x256xbf16>, vector<16x256xf32> -> vector<16x256xf32>
    %c0_97 = arith.constant 0 : index
    %c0_98 = arith.constant 0 : index
    %398 = vector.load %arg11[%c0_97, %c0_98] : memref<1x256xf32, #tpu.memory_space<vmem>>, vector<1x256xf32>
    %399 = vector.broadcast %398 : vector<1x256xf32> to vector<16x256xf32>
    %400 = arith.addf %397, %399 : vector<16x256xf32>
    %c2 = arith.constant 2 : index
    %c0_99 = arith.constant 0 : index
    %c0_100 = arith.constant 0 : index
    %401 = vector.load %arg2[%c2, %c0_99, %c0_100] : memref<4x2x32xf32, #tpu.memory_space<vmem>>, vector<1x2x32xf32>
    %402 = vector.shape_cast %401 : vector<1x2x32xf32> to vector<2x32xf32>
    %c3 = arith.constant 3 : index
    %c0_101 = arith.constant 0 : index
    %c0_102 = arith.constant 0 : index
    %403 = vector.load %arg2[%c3, %c0_101, %c0_102] : memref<4x2x32xf32, #tpu.memory_space<vmem>>, vector<1x2x32xf32>
    %404 = vector.shape_cast %403 : vector<1x2x32xf32> to vector<2x32xf32>
    %405 = tpu.concatenate %402, %404 in 1 : vector<2x32xf32>, vector<2x32xf32> -> vector<2x64xf32>
    %c2_103 = arith.constant 2 : index
    %c0_104 = arith.constant 0 : index
    %c0_105 = arith.constant 0 : index
    %406 = vector.load %arg3[%c2_103, %c0_104, %c0_105] : memref<4x2x32xf32, #tpu.memory_space<vmem>>, vector<1x2x32xf32>
    %407 = vector.shape_cast %406 : vector<1x2x32xf32> to vector<2x32xf32>
    %c3_106 = arith.constant 3 : index
    %c0_107 = arith.constant 0 : index
    %c0_108 = arith.constant 0 : index
    %408 = vector.load %arg3[%c3_106, %c0_107, %c0_108] : memref<4x2x32xf32, #tpu.memory_space<vmem>>, vector<1x2x32xf32>
    %409 = vector.shape_cast %408 : vector<1x2x32xf32> to vector<2x32xf32>
    %c0_109 = arith.constant 0 : index
    %c0_110 = arith.constant 0 : index
    %410 = vector.load %arg10[%c0_109, %c0_110] : memref<64x256xf32, #tpu.memory_space<vmem>>, vector<64x256xf32>
    %cst_111 = arith.constant dense<0.000000e+00> : vector<2x256xf32>
    %411 = tpu.matmul %405, %410, %cst_111 {dimension_numbers = #tpu.dot_dimension_numbers<[1], [0], [0], [1], [0, 0, 1, 1], [], []>} : vector<2x64xf32>, vector<64x256xf32>, vector<2x256xf32> -> vector<2x256xf32>
    %412 = vector.extract_strided_slice %400 {offsets = [0, 0], sizes = [2, 128], strides = [1, 1]} : vector<16x256xf32> to vector<2x128xf32>
    %413 = vector.extract_strided_slice %411 {offsets = [0, 0], sizes = [2, 128], strides = [1, 1]} : vector<2x256xf32> to vector<2x128xf32>
    %414 = arith.addf %412, %413 : vector<2x128xf32>
    %415 = vector.extract_strided_slice %400 {offsets = [14, 128], sizes = [2, 128], strides = [1, 1]} : vector<16x256xf32> to vector<2x128xf32>
    %416 = vector.extract_strided_slice %411 {offsets = [0, 128], sizes = [2, 128], strides = [1, 1]} : vector<2x256xf32> to vector<2x128xf32>
    %417 = arith.addf %415, %416 : vector<2x128xf32>
    %418 = vector.extract_strided_slice %414 {offsets = [0, 0], sizes = [2, 96], strides = [1, 1]} : vector<2x128xf32> to vector<2x96xf32>
    %cst_112 = arith.constant 5.000000e-01 : f32
    %419 = vector.broadcast %cst_112 : f32 to vector<2x96xf32>
    %420 = arith.mulf %419, %418 : vector<2x96xf32>
    %421 = math.tanh %420 : vector<2x96xf32>
    %cst_113 = arith.constant 5.000000e-01 : f32
    %422 = vector.broadcast %cst_113 : f32 to vector<2x96xf32>
    %423 = arith.mulf %422, %421 : vector<2x96xf32>
    %cst_114 = arith.constant 5.000000e-01 : f32
    %424 = vector.broadcast %cst_114 : f32 to vector<2x96xf32>
    %425 = arith.addf %423, %424 : vector<2x96xf32>
    %426 = vector.extract_strided_slice %414 {offsets = [0, 96], sizes = [2, 32], strides = [1, 1]} : vector<2x128xf32> to vector<2x32xf32>
    %427 = math.tanh %426 : vector<2x32xf32>
    %428 = vector.extract_strided_slice %425 {offsets = [0, 32], sizes = [2, 32], strides = [1, 1]} : vector<2x96xf32> to vector<2x32xf32>
    %429 = arith.mulf %428, %407 : vector<2x32xf32>
    %430 = vector.extract_strided_slice %425 {offsets = [0, 0], sizes = [2, 32], strides = [1, 1]} : vector<2x96xf32> to vector<2x32xf32>
    %431 = arith.mulf %430, %427 : vector<2x32xf32>
    %432 = arith.addf %429, %431 : vector<2x32xf32>
    %433 = vector.extract_strided_slice %425 {offsets = [0, 64], sizes = [2, 32], strides = [1, 1]} : vector<2x96xf32> to vector<2x32xf32>
    %434 = math.tanh %432 : vector<2x32xf32>
    %435 = arith.mulf %433, %434 : vector<2x32xf32>
    %436 = vector.extract_strided_slice %417 {offsets = [0, 0], sizes = [2, 96], strides = [1, 1]} : vector<2x128xf32> to vector<2x96xf32>
    %cst_115 = arith.constant 5.000000e-01 : f32
    %437 = vector.broadcast %cst_115 : f32 to vector<2x96xf32>
    %438 = arith.mulf %437, %436 : vector<2x96xf32>
    %439 = math.tanh %438 : vector<2x96xf32>
    %cst_116 = arith.constant 5.000000e-01 : f32
    %440 = vector.broadcast %cst_116 : f32 to vector<2x96xf32>
    %441 = arith.mulf %440, %439 : vector<2x96xf32>
    %cst_117 = arith.constant 5.000000e-01 : f32
    %442 = vector.broadcast %cst_117 : f32 to vector<2x96xf32>
    %443 = arith.addf %441, %442 : vector<2x96xf32>
    %444 = vector.extract_strided_slice %417 {offsets = [0, 96], sizes = [2, 32], strides = [1, 1]} : vector<2x128xf32> to vector<2x32xf32>
    %445 = math.tanh %444 : vector<2x32xf32>
    %446 = vector.extract_strided_slice %443 {offsets = [0, 32], sizes = [2, 32], strides = [1, 1]} : vector<2x96xf32> to vector<2x32xf32>
    %447 = arith.mulf %446, %409 : vector<2x32xf32>
    %448 = vector.extract_strided_slice %443 {offsets = [0, 0], sizes = [2, 32], strides = [1, 1]} : vector<2x96xf32> to vector<2x32xf32>
    %449 = arith.mulf %448, %445 : vector<2x32xf32>
    %450 = arith.addf %447, %449 : vector<2x32xf32>
    %451 = vector.extract_strided_slice %443 {offsets = [0, 64], sizes = [2, 32], strides = [1, 1]} : vector<2x96xf32> to vector<2x32xf32>
    %452 = math.tanh %450 : vector<2x32xf32>
    %453 = arith.mulf %451, %452 : vector<2x32xf32>
    %454 = tpu.concatenate %435, %453 in 1 : vector<2x32xf32>, vector<2x32xf32> -> vector<2x64xf32>
    %c0_118 = arith.constant 0 : index
    %c0_119 = arith.constant 0 : index
    %455 = vector.load %arg10[%c0_118, %c0_119] : memref<64x256xf32, #tpu.memory_space<vmem>>, vector<64x256xf32>
    %cst_120 = arith.constant dense<0.000000e+00> : vector<2x256xf32>
    %456 = tpu.matmul %454, %455, %cst_120 {dimension_numbers = #tpu.dot_dimension_numbers<[1], [0], [0], [1], [0, 0, 1, 1], [], []>} : vector<2x64xf32>, vector<64x256xf32>, vector<2x256xf32> -> vector<2x256xf32>
    %457 = vector.extract_strided_slice %400 {offsets = [2, 0], sizes = [2, 128], strides = [1, 1]} : vector<16x256xf32> to vector<2x128xf32>
    %458 = vector.extract_strided_slice %456 {offsets = [0, 0], sizes = [2, 128], strides = [1, 1]} : vector<2x256xf32> to vector<2x128xf32>
    %459 = arith.addf %457, %458 : vector<2x128xf32>
    %460 = vector.extract_strided_slice %400 {offsets = [12, 128], sizes = [2, 128], strides = [1, 1]} : vector<16x256xf32> to vector<2x128xf32>
    %461 = vector.extract_strided_slice %456 {offsets = [0, 128], sizes = [2, 128], strides = [1, 1]} : vector<2x256xf32> to vector<2x128xf32>
    %462 = arith.addf %460, %461 : vector<2x128xf32>
    %463 = vector.extract_strided_slice %459 {offsets = [0, 0], sizes = [2, 96], strides = [1, 1]} : vector<2x128xf32> to vector<2x96xf32>
    %cst_121 = arith.constant 5.000000e-01 : f32
    %464 = vector.broadcast %cst_121 : f32 to vector<2x96xf32>
    %465 = arith.mulf %464, %463 : vector<2x96xf32>
    %466 = math.tanh %465 : vector<2x96xf32>
    %cst_122 = arith.constant 5.000000e-01 : f32
    %467 = vector.broadcast %cst_122 : f32 to vector<2x96xf32>
    %468 = arith.mulf %467, %466 : vector<2x96xf32>
    %cst_123 = arith.constant 5.000000e-01 : f32
    %469 = vector.broadcast %cst_123 : f32 to vector<2x96xf32>
    %470 = arith.addf %468, %469 : vector<2x96xf32>
    %471 = vector.extract_strided_slice %459 {offsets = [0, 96], sizes = [2, 32], strides = [1, 1]} : vector<2x128xf32> to vector<2x32xf32>
    %472 = math.tanh %471 : vector<2x32xf32>
    %473 = vector.extract_strided_slice %470 {offsets = [0, 32], sizes = [2, 32], strides = [1, 1]} : vector<2x96xf32> to vector<2x32xf32>
    %474 = arith.mulf %473, %432 : vector<2x32xf32>
    %475 = vector.extract_strided_slice %470 {offsets = [0, 0], sizes = [2, 32], strides = [1, 1]} : vector<2x96xf32> to vector<2x32xf32>
    %476 = arith.mulf %475, %472 : vector<2x32xf32>
    %477 = arith.addf %474, %476 : vector<2x32xf32>
    %478 = vector.extract_strided_slice %470 {offsets = [0, 64], sizes = [2, 32], strides = [1, 1]} : vector<2x96xf32> to vector<2x32xf32>
    %479 = math.tanh %477 : vector<2x32xf32>
    %480 = arith.mulf %478, %479 : vector<2x32xf32>
    %481 = vector.extract_strided_slice %462 {offsets = [0, 0], sizes = [2, 96], strides = [1, 1]} : vector<2x128xf32> to vector<2x96xf32>
    %cst_124 = arith.constant 5.000000e-01 : f32
    %482 = vector.broadcast %cst_124 : f32 to vector<2x96xf32>
    %483 = arith.mulf %482, %481 : vector<2x96xf32>
    %484 = math.tanh %483 : vector<2x96xf32>
    %cst_125 = arith.constant 5.000000e-01 : f32
    %485 = vector.broadcast %cst_125 : f32 to vector<2x96xf32>
    %486 = arith.mulf %485, %484 : vector<2x96xf32>
    %cst_126 = arith.constant 5.000000e-01 : f32
    %487 = vector.broadcast %cst_126 : f32 to vector<2x96xf32>
    %488 = arith.addf %486, %487 : vector<2x96xf32>
    %489 = vector.extract_strided_slice %462 {offsets = [0, 96], sizes = [2, 32], strides = [1, 1]} : vector<2x128xf32> to vector<2x32xf32>
    %490 = math.tanh %489 : vector<2x32xf32>
    %491 = vector.extract_strided_slice %488 {offsets = [0, 32], sizes = [2, 32], strides = [1, 1]} : vector<2x96xf32> to vector<2x32xf32>
    %492 = arith.mulf %491, %450 : vector<2x32xf32>
    %493 = vector.extract_strided_slice %488 {offsets = [0, 0], sizes = [2, 32], strides = [1, 1]} : vector<2x96xf32> to vector<2x32xf32>
    %494 = arith.mulf %493, %490 : vector<2x32xf32>
    %495 = arith.addf %492, %494 : vector<2x32xf32>
    %496 = vector.extract_strided_slice %488 {offsets = [0, 64], sizes = [2, 32], strides = [1, 1]} : vector<2x96xf32> to vector<2x32xf32>
    %497 = math.tanh %495 : vector<2x32xf32>
    %498 = arith.mulf %496, %497 : vector<2x32xf32>
    %499 = tpu.concatenate %480, %498 in 1 : vector<2x32xf32>, vector<2x32xf32> -> vector<2x64xf32>
    %c0_127 = arith.constant 0 : index
    %c0_128 = arith.constant 0 : index
    %500 = vector.load %arg10[%c0_127, %c0_128] : memref<64x256xf32, #tpu.memory_space<vmem>>, vector<64x256xf32>
    %cst_129 = arith.constant dense<0.000000e+00> : vector<2x256xf32>
    %501 = tpu.matmul %499, %500, %cst_129 {dimension_numbers = #tpu.dot_dimension_numbers<[1], [0], [0], [1], [0, 0, 1, 1], [], []>} : vector<2x64xf32>, vector<64x256xf32>, vector<2x256xf32> -> vector<2x256xf32>
    %502 = vector.extract_strided_slice %400 {offsets = [4, 0], sizes = [2, 128], strides = [1, 1]} : vector<16x256xf32> to vector<2x128xf32>
    %503 = vector.extract_strided_slice %501 {offsets = [0, 0], sizes = [2, 128], strides = [1, 1]} : vector<2x256xf32> to vector<2x128xf32>
    %504 = arith.addf %502, %503 : vector<2x128xf32>
    %505 = vector.extract_strided_slice %400 {offsets = [10, 128], sizes = [2, 128], strides = [1, 1]} : vector<16x256xf32> to vector<2x128xf32>
    %506 = vector.extract_strided_slice %501 {offsets = [0, 128], sizes = [2, 128], strides = [1, 1]} : vector<2x256xf32> to vector<2x128xf32>
    %507 = arith.addf %505, %506 : vector<2x128xf32>
    %508 = vector.extract_strided_slice %504 {offsets = [0, 0], sizes = [2, 96], strides = [1, 1]} : vector<2x128xf32> to vector<2x96xf32>
    %cst_130 = arith.constant 5.000000e-01 : f32
    %509 = vector.broadcast %cst_130 : f32 to vector<2x96xf32>
    %510 = arith.mulf %509, %508 : vector<2x96xf32>
    %511 = math.tanh %510 : vector<2x96xf32>
    %cst_131 = arith.constant 5.000000e-01 : f32
    %512 = vector.broadcast %cst_131 : f32 to vector<2x96xf32>
    %513 = arith.mulf %512, %511 : vector<2x96xf32>
    %cst_132 = arith.constant 5.000000e-01 : f32
    %514 = vector.broadcast %cst_132 : f32 to vector<2x96xf32>
    %515 = arith.addf %513, %514 : vector<2x96xf32>
    %516 = vector.extract_strided_slice %504 {offsets = [0, 96], sizes = [2, 32], strides = [1, 1]} : vector<2x128xf32> to vector<2x32xf32>
    %517 = math.tanh %516 : vector<2x32xf32>
    %518 = vector.extract_strided_slice %515 {offsets = [0, 32], sizes = [2, 32], strides = [1, 1]} : vector<2x96xf32> to vector<2x32xf32>
    %519 = arith.mulf %518, %477 : vector<2x32xf32>
    %520 = vector.extract_strided_slice %515 {offsets = [0, 0], sizes = [2, 32], strides = [1, 1]} : vector<2x96xf32> to vector<2x32xf32>
    %521 = arith.mulf %520, %517 : vector<2x32xf32>
    %522 = arith.addf %519, %521 : vector<2x32xf32>
    %523 = vector.extract_strided_slice %515 {offsets = [0, 64], sizes = [2, 32], strides = [1, 1]} : vector<2x96xf32> to vector<2x32xf32>
    %524 = math.tanh %522 : vector<2x32xf32>
    %525 = arith.mulf %523, %524 : vector<2x32xf32>
    %526 = vector.extract_strided_slice %507 {offsets = [0, 0], sizes = [2, 96], strides = [1, 1]} : vector<2x128xf32> to vector<2x96xf32>
    %cst_133 = arith.constant 5.000000e-01 : f32
    %527 = vector.broadcast %cst_133 : f32 to vector<2x96xf32>
    %528 = arith.mulf %527, %526 : vector<2x96xf32>
    %529 = math.tanh %528 : vector<2x96xf32>
    %cst_134 = arith.constant 5.000000e-01 : f32
    %530 = vector.broadcast %cst_134 : f32 to vector<2x96xf32>
    %531 = arith.mulf %530, %529 : vector<2x96xf32>
    %cst_135 = arith.constant 5.000000e-01 : f32
    %532 = vector.broadcast %cst_135 : f32 to vector<2x96xf32>
    %533 = arith.addf %531, %532 : vector<2x96xf32>
    %534 = vector.extract_strided_slice %507 {offsets = [0, 96], sizes = [2, 32], strides = [1, 1]} : vector<2x128xf32> to vector<2x32xf32>
    %535 = math.tanh %534 : vector<2x32xf32>
    %536 = vector.extract_strided_slice %533 {offsets = [0, 32], sizes = [2, 32], strides = [1, 1]} : vector<2x96xf32> to vector<2x32xf32>
    %537 = arith.mulf %536, %495 : vector<2x32xf32>
    %538 = vector.extract_strided_slice %533 {offsets = [0, 0], sizes = [2, 32], strides = [1, 1]} : vector<2x96xf32> to vector<2x32xf32>
    %539 = arith.mulf %538, %535 : vector<2x32xf32>
    %540 = arith.addf %537, %539 : vector<2x32xf32>
    %541 = vector.extract_strided_slice %533 {offsets = [0, 64], sizes = [2, 32], strides = [1, 1]} : vector<2x96xf32> to vector<2x32xf32>
    %542 = math.tanh %540 : vector<2x32xf32>
    %543 = arith.mulf %541, %542 : vector<2x32xf32>
    %544 = tpu.concatenate %525, %543 in 1 : vector<2x32xf32>, vector<2x32xf32> -> vector<2x64xf32>
    %c0_136 = arith.constant 0 : index
    %c0_137 = arith.constant 0 : index
    %545 = vector.load %arg10[%c0_136, %c0_137] : memref<64x256xf32, #tpu.memory_space<vmem>>, vector<64x256xf32>
    %cst_138 = arith.constant dense<0.000000e+00> : vector<2x256xf32>
    %546 = tpu.matmul %544, %545, %cst_138 {dimension_numbers = #tpu.dot_dimension_numbers<[1], [0], [0], [1], [0, 0, 1, 1], [], []>} : vector<2x64xf32>, vector<64x256xf32>, vector<2x256xf32> -> vector<2x256xf32>
    %547 = vector.extract_strided_slice %400 {offsets = [6, 0], sizes = [2, 128], strides = [1, 1]} : vector<16x256xf32> to vector<2x128xf32>
    %548 = vector.extract_strided_slice %546 {offsets = [0, 0], sizes = [2, 128], strides = [1, 1]} : vector<2x256xf32> to vector<2x128xf32>
    %549 = arith.addf %547, %548 : vector<2x128xf32>
    %550 = vector.extract_strided_slice %400 {offsets = [8, 128], sizes = [2, 128], strides = [1, 1]} : vector<16x256xf32> to vector<2x128xf32>
    %551 = vector.extract_strided_slice %546 {offsets = [0, 128], sizes = [2, 128], strides = [1, 1]} : vector<2x256xf32> to vector<2x128xf32>
    %552 = arith.addf %550, %551 : vector<2x128xf32>
    %553 = vector.extract_strided_slice %549 {offsets = [0, 0], sizes = [2, 96], strides = [1, 1]} : vector<2x128xf32> to vector<2x96xf32>
    %cst_139 = arith.constant 5.000000e-01 : f32
    %554 = vector.broadcast %cst_139 : f32 to vector<2x96xf32>
    %555 = arith.mulf %554, %553 : vector<2x96xf32>
    %556 = math.tanh %555 : vector<2x96xf32>
    %cst_140 = arith.constant 5.000000e-01 : f32
    %557 = vector.broadcast %cst_140 : f32 to vector<2x96xf32>
    %558 = arith.mulf %557, %556 : vector<2x96xf32>
    %cst_141 = arith.constant 5.000000e-01 : f32
    %559 = vector.broadcast %cst_141 : f32 to vector<2x96xf32>
    %560 = arith.addf %558, %559 : vector<2x96xf32>
    %561 = vector.extract_strided_slice %549 {offsets = [0, 96], sizes = [2, 32], strides = [1, 1]} : vector<2x128xf32> to vector<2x32xf32>
    %562 = math.tanh %561 : vector<2x32xf32>
    %563 = vector.extract_strided_slice %560 {offsets = [0, 32], sizes = [2, 32], strides = [1, 1]} : vector<2x96xf32> to vector<2x32xf32>
    %564 = arith.mulf %563, %522 : vector<2x32xf32>
    %565 = vector.extract_strided_slice %560 {offsets = [0, 0], sizes = [2, 32], strides = [1, 1]} : vector<2x96xf32> to vector<2x32xf32>
    %566 = arith.mulf %565, %562 : vector<2x32xf32>
    %567 = arith.addf %564, %566 : vector<2x32xf32>
    %568 = vector.extract_strided_slice %560 {offsets = [0, 64], sizes = [2, 32], strides = [1, 1]} : vector<2x96xf32> to vector<2x32xf32>
    %569 = math.tanh %567 : vector<2x32xf32>
    %570 = arith.mulf %568, %569 : vector<2x32xf32>
    %571 = vector.extract_strided_slice %552 {offsets = [0, 0], sizes = [2, 96], strides = [1, 1]} : vector<2x128xf32> to vector<2x96xf32>
    %cst_142 = arith.constant 5.000000e-01 : f32
    %572 = vector.broadcast %cst_142 : f32 to vector<2x96xf32>
    %573 = arith.mulf %572, %571 : vector<2x96xf32>
    %574 = math.tanh %573 : vector<2x96xf32>
    %cst_143 = arith.constant 5.000000e-01 : f32
    %575 = vector.broadcast %cst_143 : f32 to vector<2x96xf32>
    %576 = arith.mulf %575, %574 : vector<2x96xf32>
    %cst_144 = arith.constant 5.000000e-01 : f32
    %577 = vector.broadcast %cst_144 : f32 to vector<2x96xf32>
    %578 = arith.addf %576, %577 : vector<2x96xf32>
    %579 = vector.extract_strided_slice %552 {offsets = [0, 96], sizes = [2, 32], strides = [1, 1]} : vector<2x128xf32> to vector<2x32xf32>
    %580 = math.tanh %579 : vector<2x32xf32>
    %581 = vector.extract_strided_slice %578 {offsets = [0, 32], sizes = [2, 32], strides = [1, 1]} : vector<2x96xf32> to vector<2x32xf32>
    %582 = arith.mulf %581, %540 : vector<2x32xf32>
    %583 = vector.extract_strided_slice %578 {offsets = [0, 0], sizes = [2, 32], strides = [1, 1]} : vector<2x96xf32> to vector<2x32xf32>
    %584 = arith.mulf %583, %580 : vector<2x32xf32>
    %585 = arith.addf %582, %584 : vector<2x32xf32>
    %586 = vector.extract_strided_slice %578 {offsets = [0, 64], sizes = [2, 32], strides = [1, 1]} : vector<2x96xf32> to vector<2x32xf32>
    %587 = math.tanh %585 : vector<2x32xf32>
    %588 = arith.mulf %586, %587 : vector<2x32xf32>
    %589 = tpu.concatenate %570, %588 in 1 : vector<2x32xf32>, vector<2x32xf32> -> vector<2x64xf32>
    %c0_145 = arith.constant 0 : index
    %c0_146 = arith.constant 0 : index
    %590 = vector.load %arg10[%c0_145, %c0_146] : memref<64x256xf32, #tpu.memory_space<vmem>>, vector<64x256xf32>
    %cst_147 = arith.constant dense<0.000000e+00> : vector<2x256xf32>
    %591 = tpu.matmul %589, %590, %cst_147 {dimension_numbers = #tpu.dot_dimension_numbers<[1], [0], [0], [1], [0, 0, 1, 1], [], []>} : vector<2x64xf32>, vector<64x256xf32>, vector<2x256xf32> -> vector<2x256xf32>
    %592 = vector.extract_strided_slice %400 {offsets = [8, 0], sizes = [2, 128], strides = [1, 1]} : vector<16x256xf32> to vector<2x128xf32>
    %593 = vector.extract_strided_slice %591 {offsets = [0, 0], sizes = [2, 128], strides = [1, 1]} : vector<2x256xf32> to vector<2x128xf32>
    %594 = arith.addf %592, %593 : vector<2x128xf32>
    %595 = vector.extract_strided_slice %400 {offsets = [6, 128], sizes = [2, 128], strides = [1, 1]} : vector<16x256xf32> to vector<2x128xf32>
    %596 = vector.extract_strided_slice %591 {offsets = [0, 128], sizes = [2, 128], strides = [1, 1]} : vector<2x256xf32> to vector<2x128xf32>
    %597 = arith.addf %595, %596 : vector<2x128xf32>
    %598 = vector.extract_strided_slice %594 {offsets = [0, 0], sizes = [2, 96], strides = [1, 1]} : vector<2x128xf32> to vector<2x96xf32>
    %cst_148 = arith.constant 5.000000e-01 : f32
    %599 = vector.broadcast %cst_148 : f32 to vector<2x96xf32>
    %600 = arith.mulf %599, %598 : vector<2x96xf32>
    %601 = math.tanh %600 : vector<2x96xf32>
    %cst_149 = arith.constant 5.000000e-01 : f32
    %602 = vector.broadcast %cst_149 : f32 to vector<2x96xf32>
    %603 = arith.mulf %602, %601 : vector<2x96xf32>
    %cst_150 = arith.constant 5.000000e-01 : f32
    %604 = vector.broadcast %cst_150 : f32 to vector<2x96xf32>
    %605 = arith.addf %603, %604 : vector<2x96xf32>
    %606 = vector.extract_strided_slice %594 {offsets = [0, 96], sizes = [2, 32], strides = [1, 1]} : vector<2x128xf32> to vector<2x32xf32>
    %607 = math.tanh %606 : vector<2x32xf32>
    %608 = vector.extract_strided_slice %605 {offsets = [0, 32], sizes = [2, 32], strides = [1, 1]} : vector<2x96xf32> to vector<2x32xf32>
    %609 = arith.mulf %608, %567 : vector<2x32xf32>
    %610 = vector.extract_strided_slice %605 {offsets = [0, 0], sizes = [2, 32], strides = [1, 1]} : vector<2x96xf32> to vector<2x32xf32>
    %611 = arith.mulf %610, %607 : vector<2x32xf32>
    %612 = arith.addf %609, %611 : vector<2x32xf32>
    %613 = vector.extract_strided_slice %605 {offsets = [0, 64], sizes = [2, 32], strides = [1, 1]} : vector<2x96xf32> to vector<2x32xf32>
    %614 = math.tanh %612 : vector<2x32xf32>
    %615 = arith.mulf %613, %614 : vector<2x32xf32>
    %616 = vector.extract_strided_slice %597 {offsets = [0, 0], sizes = [2, 96], strides = [1, 1]} : vector<2x128xf32> to vector<2x96xf32>
    %cst_151 = arith.constant 5.000000e-01 : f32
    %617 = vector.broadcast %cst_151 : f32 to vector<2x96xf32>
    %618 = arith.mulf %617, %616 : vector<2x96xf32>
    %619 = math.tanh %618 : vector<2x96xf32>
    %cst_152 = arith.constant 5.000000e-01 : f32
    %620 = vector.broadcast %cst_152 : f32 to vector<2x96xf32>
    %621 = arith.mulf %620, %619 : vector<2x96xf32>
    %cst_153 = arith.constant 5.000000e-01 : f32
    %622 = vector.broadcast %cst_153 : f32 to vector<2x96xf32>
    %623 = arith.addf %621, %622 : vector<2x96xf32>
    %624 = vector.extract_strided_slice %597 {offsets = [0, 96], sizes = [2, 32], strides = [1, 1]} : vector<2x128xf32> to vector<2x32xf32>
    %625 = math.tanh %624 : vector<2x32xf32>
    %626 = vector.extract_strided_slice %623 {offsets = [0, 32], sizes = [2, 32], strides = [1, 1]} : vector<2x96xf32> to vector<2x32xf32>
    %627 = arith.mulf %626, %585 : vector<2x32xf32>
    %628 = vector.extract_strided_slice %623 {offsets = [0, 0], sizes = [2, 32], strides = [1, 1]} : vector<2x96xf32> to vector<2x32xf32>
    %629 = arith.mulf %628, %625 : vector<2x32xf32>
    %630 = arith.addf %627, %629 : vector<2x32xf32>
    %631 = vector.extract_strided_slice %623 {offsets = [0, 64], sizes = [2, 32], strides = [1, 1]} : vector<2x96xf32> to vector<2x32xf32>
    %632 = math.tanh %630 : vector<2x32xf32>
    %633 = arith.mulf %631, %632 : vector<2x32xf32>
    %634 = tpu.concatenate %615, %633 in 1 : vector<2x32xf32>, vector<2x32xf32> -> vector<2x64xf32>
    %c0_154 = arith.constant 0 : index
    %c0_155 = arith.constant 0 : index
    %635 = vector.load %arg10[%c0_154, %c0_155] : memref<64x256xf32, #tpu.memory_space<vmem>>, vector<64x256xf32>
    %cst_156 = arith.constant dense<0.000000e+00> : vector<2x256xf32>
    %636 = tpu.matmul %634, %635, %cst_156 {dimension_numbers = #tpu.dot_dimension_numbers<[1], [0], [0], [1], [0, 0, 1, 1], [], []>} : vector<2x64xf32>, vector<64x256xf32>, vector<2x256xf32> -> vector<2x256xf32>
    %637 = vector.extract_strided_slice %400 {offsets = [10, 0], sizes = [2, 128], strides = [1, 1]} : vector<16x256xf32> to vector<2x128xf32>
    %638 = vector.extract_strided_slice %636 {offsets = [0, 0], sizes = [2, 128], strides = [1, 1]} : vector<2x256xf32> to vector<2x128xf32>
    %639 = arith.addf %637, %638 : vector<2x128xf32>
    %640 = vector.extract_strided_slice %400 {offsets = [4, 128], sizes = [2, 128], strides = [1, 1]} : vector<16x256xf32> to vector<2x128xf32>
    %641 = vector.extract_strided_slice %636 {offsets = [0, 128], sizes = [2, 128], strides = [1, 1]} : vector<2x256xf32> to vector<2x128xf32>
    %642 = arith.addf %640, %641 : vector<2x128xf32>
    %643 = vector.extract_strided_slice %639 {offsets = [0, 0], sizes = [2, 96], strides = [1, 1]} : vector<2x128xf32> to vector<2x96xf32>
    %cst_157 = arith.constant 5.000000e-01 : f32
    %644 = vector.broadcast %cst_157 : f32 to vector<2x96xf32>
    %645 = arith.mulf %644, %643 : vector<2x96xf32>
    %646 = math.tanh %645 : vector<2x96xf32>
    %cst_158 = arith.constant 5.000000e-01 : f32
    %647 = vector.broadcast %cst_158 : f32 to vector<2x96xf32>
    %648 = arith.mulf %647, %646 : vector<2x96xf32>
    %cst_159 = arith.constant 5.000000e-01 : f32
    %649 = vector.broadcast %cst_159 : f32 to vector<2x96xf32>
    %650 = arith.addf %648, %649 : vector<2x96xf32>
    %651 = vector.extract_strided_slice %639 {offsets = [0, 96], sizes = [2, 32], strides = [1, 1]} : vector<2x128xf32> to vector<2x32xf32>
    %652 = math.tanh %651 : vector<2x32xf32>
    %653 = vector.extract_strided_slice %650 {offsets = [0, 32], sizes = [2, 32], strides = [1, 1]} : vector<2x96xf32> to vector<2x32xf32>
    %654 = arith.mulf %653, %612 : vector<2x32xf32>
    %655 = vector.extract_strided_slice %650 {offsets = [0, 0], sizes = [2, 32], strides = [1, 1]} : vector<2x96xf32> to vector<2x32xf32>
    %656 = arith.mulf %655, %652 : vector<2x32xf32>
    %657 = arith.addf %654, %656 : vector<2x32xf32>
    %658 = vector.extract_strided_slice %650 {offsets = [0, 64], sizes = [2, 32], strides = [1, 1]} : vector<2x96xf32> to vector<2x32xf32>
    %659 = math.tanh %657 : vector<2x32xf32>
    %660 = arith.mulf %658, %659 : vector<2x32xf32>
    %661 = vector.extract_strided_slice %642 {offsets = [0, 0], sizes = [2, 96], strides = [1, 1]} : vector<2x128xf32> to vector<2x96xf32>
    %cst_160 = arith.constant 5.000000e-01 : f32
    %662 = vector.broadcast %cst_160 : f32 to vector<2x96xf32>
    %663 = arith.mulf %662, %661 : vector<2x96xf32>
    %664 = math.tanh %663 : vector<2x96xf32>
    %cst_161 = arith.constant 5.000000e-01 : f32
    %665 = vector.broadcast %cst_161 : f32 to vector<2x96xf32>
    %666 = arith.mulf %665, %664 : vector<2x96xf32>
    %cst_162 = arith.constant 5.000000e-01 : f32
    %667 = vector.broadcast %cst_162 : f32 to vector<2x96xf32>
    %668 = arith.addf %666, %667 : vector<2x96xf32>
    %669 = vector.extract_strided_slice %642 {offsets = [0, 96], sizes = [2, 32], strides = [1, 1]} : vector<2x128xf32> to vector<2x32xf32>
    %670 = math.tanh %669 : vector<2x32xf32>
    %671 = vector.extract_strided_slice %668 {offsets = [0, 32], sizes = [2, 32], strides = [1, 1]} : vector<2x96xf32> to vector<2x32xf32>
    %672 = arith.mulf %671, %630 : vector<2x32xf32>
    %673 = vector.extract_strided_slice %668 {offsets = [0, 0], sizes = [2, 32], strides = [1, 1]} : vector<2x96xf32> to vector<2x32xf32>
    %674 = arith.mulf %673, %670 : vector<2x32xf32>
    %675 = arith.addf %672, %674 : vector<2x32xf32>
    %676 = vector.extract_strided_slice %668 {offsets = [0, 64], sizes = [2, 32], strides = [1, 1]} : vector<2x96xf32> to vector<2x32xf32>
    %677 = math.tanh %675 : vector<2x32xf32>
    %678 = arith.mulf %676, %677 : vector<2x32xf32>
    %679 = tpu.concatenate %660, %678 in 1 : vector<2x32xf32>, vector<2x32xf32> -> vector<2x64xf32>
    %c0_163 = arith.constant 0 : index
    %c0_164 = arith.constant 0 : index
    %680 = vector.load %arg10[%c0_163, %c0_164] : memref<64x256xf32, #tpu.memory_space<vmem>>, vector<64x256xf32>
    %cst_165 = arith.constant dense<0.000000e+00> : vector<2x256xf32>
    %681 = tpu.matmul %679, %680, %cst_165 {dimension_numbers = #tpu.dot_dimension_numbers<[1], [0], [0], [1], [0, 0, 1, 1], [], []>} : vector<2x64xf32>, vector<64x256xf32>, vector<2x256xf32> -> vector<2x256xf32>
    %682 = vector.extract_strided_slice %400 {offsets = [12, 0], sizes = [2, 128], strides = [1, 1]} : vector<16x256xf32> to vector<2x128xf32>
    %683 = vector.extract_strided_slice %681 {offsets = [0, 0], sizes = [2, 128], strides = [1, 1]} : vector<2x256xf32> to vector<2x128xf32>
    %684 = arith.addf %682, %683 : vector<2x128xf32>
    %685 = vector.extract_strided_slice %400 {offsets = [2, 128], sizes = [2, 128], strides = [1, 1]} : vector<16x256xf32> to vector<2x128xf32>
    %686 = vector.extract_strided_slice %681 {offsets = [0, 128], sizes = [2, 128], strides = [1, 1]} : vector<2x256xf32> to vector<2x128xf32>
    %687 = arith.addf %685, %686 : vector<2x128xf32>
    %688 = vector.extract_strided_slice %684 {offsets = [0, 0], sizes = [2, 96], strides = [1, 1]} : vector<2x128xf32> to vector<2x96xf32>
    %cst_166 = arith.constant 5.000000e-01 : f32
    %689 = vector.broadcast %cst_166 : f32 to vector<2x96xf32>
    %690 = arith.mulf %689, %688 : vector<2x96xf32>
    %691 = math.tanh %690 : vector<2x96xf32>
    %cst_167 = arith.constant 5.000000e-01 : f32
    %692 = vector.broadcast %cst_167 : f32 to vector<2x96xf32>
    %693 = arith.mulf %692, %691 : vector<2x96xf32>
    %cst_168 = arith.constant 5.000000e-01 : f32
    %694 = vector.broadcast %cst_168 : f32 to vector<2x96xf32>
    %695 = arith.addf %693, %694 : vector<2x96xf32>
    %696 = vector.extract_strided_slice %684 {offsets = [0, 96], sizes = [2, 32], strides = [1, 1]} : vector<2x128xf32> to vector<2x32xf32>
    %697 = math.tanh %696 : vector<2x32xf32>
    %698 = vector.extract_strided_slice %695 {offsets = [0, 32], sizes = [2, 32], strides = [1, 1]} : vector<2x96xf32> to vector<2x32xf32>
    %699 = arith.mulf %698, %657 : vector<2x32xf32>
    %700 = vector.extract_strided_slice %695 {offsets = [0, 0], sizes = [2, 32], strides = [1, 1]} : vector<2x96xf32> to vector<2x32xf32>
    %701 = arith.mulf %700, %697 : vector<2x32xf32>
    %702 = arith.addf %699, %701 : vector<2x32xf32>
    %703 = vector.extract_strided_slice %695 {offsets = [0, 64], sizes = [2, 32], strides = [1, 1]} : vector<2x96xf32> to vector<2x32xf32>
    %704 = math.tanh %702 : vector<2x32xf32>
    %705 = arith.mulf %703, %704 : vector<2x32xf32>
    %706 = vector.extract_strided_slice %687 {offsets = [0, 0], sizes = [2, 96], strides = [1, 1]} : vector<2x128xf32> to vector<2x96xf32>
    %cst_169 = arith.constant 5.000000e-01 : f32
    %707 = vector.broadcast %cst_169 : f32 to vector<2x96xf32>
    %708 = arith.mulf %707, %706 : vector<2x96xf32>
    %709 = math.tanh %708 : vector<2x96xf32>
    %cst_170 = arith.constant 5.000000e-01 : f32
    %710 = vector.broadcast %cst_170 : f32 to vector<2x96xf32>
    %711 = arith.mulf %710, %709 : vector<2x96xf32>
    %cst_171 = arith.constant 5.000000e-01 : f32
    %712 = vector.broadcast %cst_171 : f32 to vector<2x96xf32>
    %713 = arith.addf %711, %712 : vector<2x96xf32>
    %714 = vector.extract_strided_slice %687 {offsets = [0, 96], sizes = [2, 32], strides = [1, 1]} : vector<2x128xf32> to vector<2x32xf32>
    %715 = math.tanh %714 : vector<2x32xf32>
    %716 = vector.extract_strided_slice %713 {offsets = [0, 32], sizes = [2, 32], strides = [1, 1]} : vector<2x96xf32> to vector<2x32xf32>
    %717 = arith.mulf %716, %675 : vector<2x32xf32>
    %718 = vector.extract_strided_slice %713 {offsets = [0, 0], sizes = [2, 32], strides = [1, 1]} : vector<2x96xf32> to vector<2x32xf32>
    %719 = arith.mulf %718, %715 : vector<2x32xf32>
    %720 = arith.addf %717, %719 : vector<2x32xf32>
    %721 = vector.extract_strided_slice %713 {offsets = [0, 64], sizes = [2, 32], strides = [1, 1]} : vector<2x96xf32> to vector<2x32xf32>
    %722 = math.tanh %720 : vector<2x32xf32>
    %723 = arith.mulf %721, %722 : vector<2x32xf32>
    %724 = tpu.concatenate %705, %723 in 1 : vector<2x32xf32>, vector<2x32xf32> -> vector<2x64xf32>
    %c0_172 = arith.constant 0 : index
    %c0_173 = arith.constant 0 : index
    %725 = vector.load %arg10[%c0_172, %c0_173] : memref<64x256xf32, #tpu.memory_space<vmem>>, vector<64x256xf32>
    %cst_174 = arith.constant dense<0.000000e+00> : vector<2x256xf32>
    %726 = tpu.matmul %724, %725, %cst_174 {dimension_numbers = #tpu.dot_dimension_numbers<[1], [0], [0], [1], [0, 0, 1, 1], [], []>} : vector<2x64xf32>, vector<64x256xf32>, vector<2x256xf32> -> vector<2x256xf32>
    %727 = vector.extract_strided_slice %400 {offsets = [14, 0], sizes = [2, 128], strides = [1, 1]} : vector<16x256xf32> to vector<2x128xf32>
    %728 = vector.extract_strided_slice %726 {offsets = [0, 0], sizes = [2, 128], strides = [1, 1]} : vector<2x256xf32> to vector<2x128xf32>
    %729 = arith.addf %727, %728 : vector<2x128xf32>
    %730 = vector.extract_strided_slice %400 {offsets = [0, 128], sizes = [2, 128], strides = [1, 1]} : vector<16x256xf32> to vector<2x128xf32>
    %731 = vector.extract_strided_slice %726 {offsets = [0, 128], sizes = [2, 128], strides = [1, 1]} : vector<2x256xf32> to vector<2x128xf32>
    %732 = arith.addf %730, %731 : vector<2x128xf32>
    %733 = vector.extract_strided_slice %729 {offsets = [0, 0], sizes = [2, 96], strides = [1, 1]} : vector<2x128xf32> to vector<2x96xf32>
    %cst_175 = arith.constant 5.000000e-01 : f32
    %734 = vector.broadcast %cst_175 : f32 to vector<2x96xf32>
    %735 = arith.mulf %734, %733 : vector<2x96xf32>
    %736 = math.tanh %735 : vector<2x96xf32>
    %cst_176 = arith.constant 5.000000e-01 : f32
    %737 = vector.broadcast %cst_176 : f32 to vector<2x96xf32>
    %738 = arith.mulf %737, %736 : vector<2x96xf32>
    %cst_177 = arith.constant 5.000000e-01 : f32
    %739 = vector.broadcast %cst_177 : f32 to vector<2x96xf32>
    %740 = arith.addf %738, %739 : vector<2x96xf32>
    %741 = vector.extract_strided_slice %729 {offsets = [0, 96], sizes = [2, 32], strides = [1, 1]} : vector<2x128xf32> to vector<2x32xf32>
    %742 = math.tanh %741 : vector<2x32xf32>
    %743 = vector.extract_strided_slice %740 {offsets = [0, 32], sizes = [2, 32], strides = [1, 1]} : vector<2x96xf32> to vector<2x32xf32>
    %744 = arith.mulf %743, %702 : vector<2x32xf32>
    %745 = vector.extract_strided_slice %740 {offsets = [0, 0], sizes = [2, 32], strides = [1, 1]} : vector<2x96xf32> to vector<2x32xf32>
    %746 = arith.mulf %745, %742 : vector<2x32xf32>
    %747 = arith.addf %744, %746 : vector<2x32xf32>
    %748 = vector.extract_strided_slice %740 {offsets = [0, 64], sizes = [2, 32], strides = [1, 1]} : vector<2x96xf32> to vector<2x32xf32>
    %749 = math.tanh %747 : vector<2x32xf32>
    %750 = arith.mulf %748, %749 : vector<2x32xf32>
    %751 = vector.extract_strided_slice %732 {offsets = [0, 0], sizes = [2, 96], strides = [1, 1]} : vector<2x128xf32> to vector<2x96xf32>
    %cst_178 = arith.constant 5.000000e-01 : f32
    %752 = vector.broadcast %cst_178 : f32 to vector<2x96xf32>
    %753 = arith.mulf %752, %751 : vector<2x96xf32>
    %754 = math.tanh %753 : vector<2x96xf32>
    %cst_179 = arith.constant 5.000000e-01 : f32
    %755 = vector.broadcast %cst_179 : f32 to vector<2x96xf32>
    %756 = arith.mulf %755, %754 : vector<2x96xf32>
    %cst_180 = arith.constant 5.000000e-01 : f32
    %757 = vector.broadcast %cst_180 : f32 to vector<2x96xf32>
    %758 = arith.addf %756, %757 : vector<2x96xf32>
    %759 = vector.extract_strided_slice %732 {offsets = [0, 96], sizes = [2, 32], strides = [1, 1]} : vector<2x128xf32> to vector<2x32xf32>
    %760 = math.tanh %759 : vector<2x32xf32>
    %761 = vector.extract_strided_slice %758 {offsets = [0, 32], sizes = [2, 32], strides = [1, 1]} : vector<2x96xf32> to vector<2x32xf32>
    %762 = arith.mulf %761, %720 : vector<2x32xf32>
    %763 = vector.extract_strided_slice %758 {offsets = [0, 0], sizes = [2, 32], strides = [1, 1]} : vector<2x96xf32> to vector<2x32xf32>
    %764 = arith.mulf %763, %760 : vector<2x32xf32>
    %765 = arith.addf %762, %764 : vector<2x32xf32>
    %766 = vector.extract_strided_slice %758 {offsets = [0, 64], sizes = [2, 32], strides = [1, 1]} : vector<2x96xf32> to vector<2x32xf32>
    %767 = math.tanh %765 : vector<2x32xf32>
    %768 = arith.mulf %766, %767 : vector<2x32xf32>
    %769 = tpu.concatenate %435, %768 in 1 : vector<2x32xf32>, vector<2x32xf32> -> vector<2x64xf32>
    %770 = tpu.concatenate %480, %723 in 1 : vector<2x32xf32>, vector<2x32xf32> -> vector<2x64xf32>
    %771 = tpu.concatenate %525, %678 in 1 : vector<2x32xf32>, vector<2x32xf32> -> vector<2x64xf32>
    %772 = tpu.concatenate %570, %633 in 1 : vector<2x32xf32>, vector<2x32xf32> -> vector<2x64xf32>
    %773 = tpu.concatenate %615, %588 in 1 : vector<2x32xf32>, vector<2x32xf32> -> vector<2x64xf32>
    %774 = tpu.concatenate %660, %543 in 1 : vector<2x32xf32>, vector<2x32xf32> -> vector<2x64xf32>
    %775 = tpu.concatenate %705, %498 in 1 : vector<2x32xf32>, vector<2x32xf32> -> vector<2x64xf32>
    %776 = tpu.concatenate %750, %453 in 1 : vector<2x32xf32>, vector<2x32xf32> -> vector<2x64xf32>
    %777 = tpu.concatenate %769, %770, %771, %772, %773, %774, %775, %776 in 0 : vector<2x64xf32>, vector<2x64xf32>, vector<2x64xf32>, vector<2x64xf32>, vector<2x64xf32>, vector<2x64xf32>, vector<2x64xf32>, vector<2x64xf32> -> vector<16x64xf32>
    %778 = arith.truncf %777 : vector<16x64xf32> to vector<16x64xbf16>
    %c0_181 = arith.constant 0 : index
    %c0_182 = arith.constant 0 : index
    %779 = vector.load %arg12[%c0_181, %c0_182] : memref<64x128xf32, #tpu.memory_space<vmem>>, vector<64x128xf32>
    %780 = arith.truncf %779 : vector<64x128xf32> to vector<64x128xbf16>
    %cst_183 = arith.constant dense<0.000000e+00> : vector<16x128xf32>
    %781 = tpu.matmul %778, %780, %cst_183 {dimension_numbers = #tpu.dot_dimension_numbers<[1], [0], [0], [1], [0, 0, 1, 1], [], []>} : vector<16x64xbf16>, vector<64x128xbf16>, vector<16x128xf32> -> vector<16x128xf32>
    %c0_184 = arith.constant 0 : index
    %c0_185 = arith.constant 0 : index
    %782 = vector.load %arg13[%c0_184, %c0_185] : memref<1x128xf32, #tpu.memory_space<vmem>>, vector<1x128xf32>
    %783 = vector.broadcast %782 : vector<1x128xf32> to vector<16x128xf32>
    %784 = arith.addf %781, %783 : vector<16x128xf32>
    %c0_186 = arith.constant 0 : index
    %c0_187 = arith.constant 0 : index
    %785 = vector.load %arg14[%c0_186, %c0_187] : memref<16x128xf32, #tpu.memory_space<vmem>>, vector<16x128xf32>
    tpu.vector_store %arg14[%c0_186, %c0_187], %784 {strides = array<i32>} : memref<16x128xf32, #tpu.memory_space<vmem>>, vector<16x128xf32>,
    %786 = tpu.concatenate %366, %384, %750, %768 in 0 : vector<2x32xf32>, vector<2x32xf32>, vector<2x32xf32>, vector<2x32xf32> -> vector<8x32xf32>
    %c0_188 = arith.constant 0 : index
    %c0_189 = arith.constant 0 : index
    %787 = vector.load %arg15[%c0_188, %c0_189] : memref<8x32xf32, #tpu.memory_space<vmem>>, vector<8x32xf32>
    tpu.vector_store %arg15[%c0_188, %c0_189], %786 {strides = array<i32>} : memref<8x32xf32, #tpu.memory_space<vmem>>, vector<8x32xf32>,
    %788 = tpu.concatenate %363, %381, %747, %765 in 0 : vector<2x32xf32>, vector<2x32xf32>, vector<2x32xf32>, vector<2x32xf32> -> vector<8x32xf32>
    %c0_190 = arith.constant 0 : index
    %c0_191 = arith.constant 0 : index
    %789 = vector.load %arg16[%c0_190, %c0_191] : memref<8x32xf32, #tpu.memory_space<vmem>>, vector<8x32xf32>
    tpu.vector_store %arg16[%c0_190, %c0_191], %788 {strides = array<i32>} : memref<8x32xf32, #tpu.memory_space<vmem>>, vector<8x32xf32>,
    return
  }
  func.func @transform_0(%arg0: i32) -> (i32, i32) {
    %c0_i32 = arith.constant 0 : i32
    %c0_i32_0 = arith.constant 0 : i32
    %c0_i32_1 = arith.constant 0 : i32
    return %c0_i32, %c0_i32_0 : i32, i32
  }
  func.func @transform_1(%arg0: i32) -> (i32, i32, i32) {
    %c0_i32 = arith.constant 0 : i32
    %c0_i32_0 = arith.constant 0 : i32
    %c0_i32_1 = arith.constant 0 : i32
    %c0_i32_2 = arith.constant 0 : i32
    return %c0_i32, %c0_i32_0, %c0_i32_1 : i32, i32, i32
  }
  func.func @transform_2(%arg0: i32) -> (i32, i32, i32) {
    %c0_i32 = arith.constant 0 : i32
    %c0_i32_0 = arith.constant 0 : i32
    %c0_i32_1 = arith.constant 0 : i32
    %c0_i32_2 = arith.constant 0 : i32
    return %c0_i32, %c0_i32_0, %c0_i32_1 : i32, i32, i32
  }
  func.func @transform_3(%arg0: i32) -> (i32, i32) {
    %c0_i32 = arith.constant 0 : i32
    %c0_i32_0 = arith.constant 0 : i32
    %c0_i32_1 = arith.constant 0 : i32
    return %c0_i32, %c0_i32_0 : i32, i32
  }
  func.func @transform_4(%arg0: i32) -> (i32, i32) {
    %c0_i32 = arith.constant 0 : i32
    %c0_i32_0 = arith.constant 0 : i32
    %c0_i32_1 = arith.constant 0 : i32
    return %c0_i32, %c0_i32_0 : i32, i32
  }
  func.func @transform_5(%arg0: i32) -> (i32, i32) {
    %c0_i32 = arith.constant 0 : i32
    %c0_i32_0 = arith.constant 0 : i32
    %c0_i32_1 = arith.constant 0 : i32
    return %c0_i32, %c0_i32_0 : i32, i32
  }
  func.func @transform_6(%arg0: i32) -> (i32, i32) {
    %c0_i32 = arith.constant 0 : i32
    %c0_i32_0 = arith.constant 0 : i32
    %c0_i32_1 = arith.constant 0 : i32
    return %c0_i32, %c0_i32_0 : i32, i32
  }
  func.func @transform_7(%arg0: i32) -> (i32, i32) {
    %c0_i32 = arith.constant 0 : i32
    %c0_i32_0 = arith.constant 0 : i32
    %c0_i32_1 = arith.constant 0 : i32
    return %c0_i32, %c0_i32_0 : i32, i32
  }
  func.func @transform_8(%arg0: i32) -> (i32, i32) {
    %c0_i32 = arith.constant 0 : i32
    %c0_i32_0 = arith.constant 0 : i32
    %c0_i32_1 = arith.constant 0 : i32
    return %c0_i32, %c0_i32_0 : i32, i32
  }
  func.func @transform_9(%arg0: i32) -> (i32, i32) {
    %c0_i32 = arith.constant 0 : i32
    %c0_i32_0 = arith.constant 0 : i32
    %c0_i32_1 = arith.constant 0 : i32
    return %c0_i32, %c0_i32_0 : i32, i32
  }
  func.func @transform_10(%arg0: i32) -> (i32, i32) {
    %c0_i32 = arith.constant 0 : i32
    %c0_i32_0 = arith.constant 0 : i32
    %c0_i32_1 = arith.constant 0 : i32
    return %c0_i32, %c0_i32_0 : i32, i32
  }
  func.func @transform_11(%arg0: i32) -> (i32, i32) {
    %c0_i32 = arith.constant 0 : i32
    %c0_i32_0 = arith.constant 0 : i32
    %c0_i32_1 = arith.constant 0 : i32
    return %c0_i32, %c0_i32_0 : i32, i32
  }
  func.func @transform_12(%arg0: i32) -> (i32, i32) {
    %c0_i32 = arith.constant 0 : i32
    %c0_i32_0 = arith.constant 0 : i32
    %c0_i32_1 = arith.constant 0 : i32
    return %c0_i32, %c0_i32_0 : i32, i32
  }
  func.func @transform_13(%arg0: i32) -> (i32, i32) {
    %c0_i32 = arith.constant 0 : i32
    %c0_i32_0 = arith.constant 0 : i32
    %c0_i32_1 = arith.constant 0 : i32
    return %c0_i32, %c0_i32_0 : i32, i32
  }
  func.func @transform_14(%arg0: i32) -> (i32, i32) {
    %c0_i32 = arith.constant 0 : i32
    %c0_i32_0 = arith.constant 0 : i32
    %c0_i32_1 = arith.constant 0 : i32
    return %c0_i32, %c0_i32_0 : i32, i32
  }
  func.func @transform_15(%arg0: i32) -> (i32, i32) {
    %c0_i32 = arith.constant 0 : i32
    %c0_i32_0 = arith.constant 0 : i32
    %c0_i32_1 = arith.constant 0 : i32
    return %c0_i32, %c0_i32_0 : i32, i32
  }
}

</mosaic_0001>

<llo_original>
// kernel: bilstm_forward.1
$region0: #{bilstm_forward.1}
  #allocation0 [shape = 'u32[]', space=smem, size = 0x4, offset = 0x4, fixed_abs, tag = 'smem constant byte address 0x4 - core index']
  #allocation1 [shape = 'u32[144,128]{1,0:T(1,128)}', space=vmem, size = 0x12000, scoped, tag = 'internal scratch']
  %s0 = inlined_call_operand.vmem [shape: f32[16,16], index: 0, kind: input, shape index: {}]
  %s1 = inlined_call_operand.vmem [shape: f32[4,2,32], index: 1, kind: input, shape index: {}]
  %s2 = inlined_call_operand.vmem [shape: f32[4,2,32], index: 2, kind: input, shape index: {}]
  %s3 = inlined_call_operand.vmem [shape: f32[16,32], index: 3, kind: input, shape index: {}]
  %s4 = inlined_call_operand.vmem [shape: f32[1,32], index: 4, kind: input, shape index: {}]
  %s5 = inlined_call_operand.vmem [shape: f32[32,256], index: 5, kind: input, shape index: {}]
  %s6 = inlined_call_operand.vmem [shape: f32[64,256], index: 6, kind: input, shape index: {}]
  %s7 = inlined_call_operand.vmem [shape: f32[1,256], index: 7, kind: input, shape index: {}]
  %s8 = inlined_call_operand.hbm [shape: f32[64,256], index: 8, kind: input, shape index: {}]
  %s9 = inlined_call_operand.hbm [shape: f32[64,256], index: 9, kind: input, shape index: {}]
  %s10 = inlined_call_operand.vmem [shape: f32[1,256], index: 10, kind: input, shape index: {}]
  %s11 = inlined_call_operand.vmem [shape: f32[64,128], index: 11, kind: input, shape index: {}]
  %s12 = inlined_call_operand.vmem [shape: f32[1,128], index: 12, kind: input, shape index: {}]
  %s13 = inlined_call_operand.vmem [shape: f32[16,128], index: 13, kind: output, shape index: {0}]
  %s14 = inlined_call_operand.hbm [shape: f32[8,32], index: 14, kind: output, shape index: {1}]
  %s15 = inlined_call_operand.hbm [shape: f32[8,32], index: 15, kind: output, shape index: {2}]
  %16 = xla_tuple %s13, %s14, %s15
  %s17 = sld [smem:[#allocation0]]
  $region86: #{bilstm_forward.1} parent=0
    _
  %s19 = ssub.s32 1, %s17
  %s20 = scalar_select 0, %s19, %s17
  $region1: #{bilstm_forward.1} parent=0
    #allocation2 [shape = 'u8[65536]{0}', space=vmem, size = 0x10000, scoped, tag = 'input window, operand 8, single buffered']
    #allocation3 [shape = 's32[1]{0}', space=sflag, size = 0x4, scoped, tag = 'scoped memory for bilstm_forward.1']
    #allocation4 [shape = 's32[1]{0}', space=sflag, size = 0x4, scoped, tag = 'scoped memory for bilstm_forward.1']
    #allocation5 [shape = 'u8[65536]{0}', space=vmem, size = 0x10000, scoped, tag = 'input window, operand 9, single buffered']
    #allocation6 [shape = 's32[1]{0}', space=sflag, size = 0x4, scoped, tag = 'scoped memory for bilstm_forward.1']
    #allocation7 [shape = 'u8[4096]{0}', space=vmem, size = 0x1000, scoped, tag = 'output window, operand 1, single buffered']
    #allocation8 [shape = 'u8[4096]{0}', space=vmem, size = 0x1000, scoped, tag = 'output window, operand 2, single buffered']
    #allocation9 [shape = 's32[1]{0}', space=sflag, size = 0x4, scoped, tag = 'scoped memory for bilstm_forward.1']
    %21 = vsyncpa [#allocation3], 0
    %22 = vsyncpa [#allocation6], 0
    %23 = vsyncpa [#allocation4], 0
    %24 = vsyncpa [#allocation9], 0
    // Predicated region
    $region2: #{bilstm_forward.1} parent=1 // pred_check
      _
    $region3: #{bilstm_forward.1} parent=1 // pred_check_branch
      %26 = sbr.rel (0) target = $region5
    $region4: #{bilstm_forward.1} parent=1 // pred_region
      _
    $region5: #{bilstm_forward.1} parent=1 // pred_fallthru
      _
    // Predicated region
    $region6: #{bilstm_forward.1} parent=1 // pred_check
      _
    $region7: #{bilstm_forward.1} parent=1 // pred_check_branch
      %28 = sbr.rel (0) target = $region9
    $region8: #{bilstm_forward.1} parent=1 // pred_region
      _
    $region9: #{bilstm_forward.1} parent=1 // pred_fallthru
      _
    // Predicated region
    $region10: #{bilstm_forward.1} parent=1 // pred_check
      _
    $region11: #{bilstm_forward.1} parent=1 // pred_check_branch
      %30 = sbr.rel (0) target = $region13
    $region12: #{bilstm_forward.1} parent=1 // pred_region
      _
    $region13: #{bilstm_forward.1} parent=1 // pred_fallthru
      _
    // Predicated region
    $region14: #{bilstm_forward.1} parent=1 // pred_check
      _
    $region15: #{bilstm_forward.1} parent=1 // pred_check_branch
      %32 = sbr.rel (0) target = $region17
    $region16: #{bilstm_forward.1} parent=1 // pred_region
      _
    $region17: #{bilstm_forward.1} parent=1 // pred_fallthru
      _
    // Predicated region
    $region18: #{bilstm_forward.1} parent=1 // pred_check
      _
    $region19: #{bilstm_forward.1} parent=1 // pred_check_branch
      %34 = sbr.rel (0) target = $region21
    $region20: #{bilstm_forward.1} parent=1 // pred_region
      _
    $region21: #{bilstm_forward.1} parent=1 // pred_fallthru
      _
    // Predicated region
    $region22: #{bilstm_forward.1} parent=1 // pred_check
      _
    $region23: #{bilstm_forward.1} parent=1 // pred_check_branch
      %36 = sbr.rel (0) target = $region25
    $region24: #{bilstm_forward.1} parent=1 // pred_region
      _
    $region25: #{bilstm_forward.1} parent=1 // pred_fallthru
      _
    // Predicated region
    $region26: #{bilstm_forward.1} parent=1 // pred_check
      _
    $region27: #{bilstm_forward.1} parent=1 // pred_check_branch
      %38 = sbr.rel (0) target = $region29
    $region28: #{bilstm_forward.1} parent=1 // pred_region
      _
    $region29: #{bilstm_forward.1} parent=1 // pred_fallthru
      _
    // Predicated region
    $region30: #{bilstm_forward.1} parent=1 // pred_check
      _
    $region31: #{bilstm_forward.1} parent=1 // pred_check_branch
      %40 = sbr.rel (0) target = $region33
    $region32: #{bilstm_forward.1} parent=1 // pred_region
      _
    $region33: #{bilstm_forward.1} parent=1 // pred_fallthru
      _
    // Predicated region
    $region34: #{bilstm_forward.1} parent=1 // pred_check
      _
    $region35: #{bilstm_forward.1} parent=1 // pred_check_branch
      %42 = sbr.rel (0) target = $region37
    $region36: #{bilstm_forward.1} parent=1 // pred_region
      %s44 = ssub.s32 2048, 2048
      %45 = vsyncadd [#allocation3], %s44
      %s46 = sshll.u32 [#allocation2], 4
      %s47 = int_to_ptr.vmem [resolvable:$true] %s46
      %52 = dma.hbm_to_vmem [thread:$0]  %s8, 2048, %s47, [#allocation3], 256, 256, 16
    $region37: #{bilstm_forward.1} parent=1 // pred_fallthru
      _
    // Predicated region
    $region38: #{bilstm_forward.1} parent=1 // pred_check
      _
    $region39: #{bilstm_forward.1} parent=1 // pred_check_branch
      %54 = sbr.rel (0) target = $region41
    $region40: #{bilstm_forward.1} parent=1 // pred_region
      %s56 = ssub.s32 2048, 2048
      %57 = vsyncadd [#allocation6], %s56
      %s58 = sshll.u32 [#allocation5], 4
      %s59 = int_to_ptr.vmem [resolvable:$true] %s58
      %64 = dma.hbm_to_vmem [thread:$0]  %s9, 2048, %s59, [#allocation6], 256, 256, 16
    $region41: #{bilstm_forward.1} parent=1 // pred_fallthru
      _
    // Predicated region
    $region42: #{bilstm_forward.1} parent=1 // pred_check
      _
    $region43: #{bilstm_forward.1} parent=1 // pred_check_branch
      %66 = sbr.rel (0) target = $region45
    $region44: #{bilstm_forward.1} parent=1 // pred_region
      _
    $region45: #{bilstm_forward.1} parent=1 // pred_fallthru
      _
    // Predicated region
    $region46: #{bilstm_forward.1} parent=1 // pred_check
      _
    $region47: #{bilstm_forward.1} parent=1 // pred_check_branch
      %68 = sbr.rel (0) target = $region49
    $region48: #{bilstm_forward.1} parent=1 // pred_region
      _
    $region49: #{bilstm_forward.1} parent=1 // pred_fallthru
      _
    // Predicated region
    $region50: #{bilstm_forward.1} parent=1 // pred_check
      _
    $region51: #{bilstm_forward.1} parent=1 // pred_check_branch
      %70 = sbr.rel (0) target = $region53
    $region52: #{bilstm_forward.1} parent=1 // pred_region
      _
    $region53: #{bilstm_forward.1} parent=1 // pred_fallthru
      _
    // Predicated region
    $region54: #{bilstm_forward.1} parent=1 // pred_check
      _
    $region55: #{bilstm_forward.1} parent=1 // pred_check_branch
      %72 = sbr.rel (0) target = $region57
    $region56: #{bilstm_forward.1} parent=1 // pred_region
      %73 = dma.done [#allocation3], 2048
    $region57: #{bilstm_forward.1} parent=1 // pred_fallthru
      _
    // Predicated region
    $region58: #{bilstm_forward.1} parent=1 // pred_check
      _
    $region59: #{bilstm_forward.1} parent=1 // pred_check_branch
      %75 = sbr.rel (0) target = $region61
    $region60: #{bilstm_forward.1} parent=1 // pred_region
      %76 = dma.done [#allocation6], 2048
    $region61: #{bilstm_forward.1} parent=1 // pred_fallthru
      _
    %v78 = vld [vmem:[%s0] sm:$0xff]
    %v79 = vld [vmem:[%s0 + $0x8] sm:$0xff]
    %v80 = vpack.c.bf16 %v79, %v78
    %v81 = vld [vmem:[%s3] sm:$0xff]
    %v82 = vld [vmem:[%s3 + $0x8] sm:$0xff]
    %v83 = vpack.c.bf16 %v82, %v81
    %v84 = vld [vmem:[%s4] sm:$0x1]
    %v86 = vlaneseq
    %v87 = vshrl.u32 %v86, 7
    %v88 = vsub.s32 0, %v87
    %v89 = vrot.slane %v84, %v88
    %vm91 = vcmask 130048
    %v93 = vsel %vm91, %v80, 0
    %95 = vmatprep.subr.bf16.mxu0 0
    %96 = vmatpush1.bf16.msra.mxu0 0
    %97 = vmatprep.subr.bf16.mxu0 0
    %98 = vmatpush1.bf16.msra.mxu0 0
    %99 = vmatprep.subr.bf16.mxu0 0
    %100 = vmatpush1.bf16.msra.mxu0 0
    %101 = vmatprep.subr.bf16.mxu0 0
    %102 = vmatpush1.bf16.msra.mxu0 0
    %103 = vmatprep.subr.bf16.mxu0 0
    %104 = vmatpush1.bf16.msra.mxu0 0
    %105 = vmatprep.subr.bf16.mxu0 0
    %106 = vmatpush1.bf16.msra.mxu0 0
    %107 = vmatprep.subr.bf16.mxu0 0
    %108 = vmatpush1.bf16.msra.mxu0 0
    %109 = vmatprep.subr.bf16.mxu0 0
    %110 = vmatpush1.bf16.msra.mxu0 %v83
    %111 = vmatprep.subr.bf16.mxu0 0
    %112 = vmatpush2.bf16.msra.mxu0 0
    %113 = vmatprep.subr.bf16.mxu0 0
    %114 = vmatpush2.bf16.msra.mxu0 0
    %115 = vmatprep.subr.bf16.mxu0 0
    %116 = vmatpush2.bf16.msra.mxu0 0
    %117 = vmatprep.subr.bf16.mxu0 0
    %118 = vmatpush2.bf16.msra.mxu0 0
    %119 = vmatprep.subr.bf16.mxu0 0
    %120 = vmatpush2.bf16.msra.mxu0 0
    %121 = vmatprep.subr.bf16.mxu0 0
    %122 = vmatpush2.bf16.msra.mxu0 0
    %123 = vmatprep.subr.bf16.mxu0 0
    %124 = vmatpush2.bf16.msra.mxu0 0
    %125 = vmatprep.subr.bf16.mxu0 0
    %126 = vmatpush2.bf16.msra.mxu0 0
    %127 = vmatprep.mubr.bf16.mxu0 0
    %128 = vmatmul.mubr.bf16.gmra.mxu0 %v93
    %v129 = vpop.f32.mrf.mxu0
    %v130 = vadd.f32 %v89, %v129
    %v131 = vpop.f32.mrf.mxu0
    %v132 = vpop.f32.mrf.mxu0
    %v133 = vadd.f32 %v89, %v132
    %v134 = vpop.f32.mrf.mxu0
    %135 = vdwg.mxu0
    %v136 = vmax.f32 %v130, 0.0
    %v137 = vmax.f32 %v133, 0.0
    %v138 = vpack.c.bf16 %v137, %v136
    %v139 = vld [vmem:[%s5] sm:$0xff]
    %v140 = vld [vmem:[%s5 + $0x8] sm:$0xff]
    %v141 = vld [vmem:[%s5 + $0x10] sm:$0xff]
    %v142 = vld [vmem:[%s5 + $0x18] sm:$0xff]
    %v143 = vld [vmem:[%s5 + $0x20] sm:$0xff]
    %v144 = vld [vmem:[%s5 + $0x28] sm:$0xff]
    %v145 = vld [vmem:[%s5 + $0x30] sm:$0xff]
    %v146 = vld [vmem:[%s5 + $0x38] sm:$0xff]
    %v147 = vpack.c.bf16 %v141, %v139
    %v148 = vpack.c.bf16 %v142, %v140
    %v149 = vpack.c.bf16 %v145, %v143
    %v150 = vpack.c.bf16 %v146, %v144
    %v151 = vld [vmem:[%s7] sm:$0x3]
    %v153 = vlaneseq
    %v154 = vshrl.u32 %v153, 7
    %v155 = vsub.s32 0, %v154
    %v156 = vrot.slane %v151, %v155
    %v157 = vlaneseq
    %v158 = vshrl.u32 %v157, 7
    %v159 = vsub.s32 1, %v158
    %v160 = vrot.slane %v151, %v159
    %vm163 = vcmask 261120
    %v165 = vsel %vm163, %v138, 0
    %167 = vmatprep.subr.bf16.mxu0 0
    %168 = vmatpush1.bf16.msra.mxu0 0
    %169 = vmatprep.subr.bf16.mxu0 0
    %170 = vmatpush1.bf16.msra.mxu0 0
    %171 = vmatprep.subr.bf16.mxu0 0
    %172 = vmatpush1.bf16.msra.mxu0 0
    %173 = vmatprep.subr.bf16.mxu0 0
    %174 = vmatpush1.bf16.msra.mxu0 0
    %175 = vmatprep.subr.bf16.mxu0 0
    %176 = vmatpush1.bf16.msra.mxu0 0
    %177 = vmatprep.subr.bf16.mxu0 0
    %178 = vmatpush1.bf16.msra.mxu0 0
    %179 = vmatprep.subr.bf16.mxu0 %v150
    %180 = vmatpush1.bf16.msra.mxu0 %v149
    %181 = vmatprep.subr.bf16.mxu0 %v148
    %182 = vmatpush1.bf16.msra.mxu0 %v147
    %183 = vmatprep.subr.bf16.mxu0 0
    %184 = vmatpush2.bf16.msra.mxu0 0
    %185 = vmatprep.subr.bf16.mxu0 0
    %186 = vmatpush2.bf16.msra.mxu0 0
    %187 = vmatprep.subr.bf16.mxu0 0
    %188 = vmatpush2.bf16.msra.mxu0 0
    %189 = vmatprep.subr.bf16.mxu0 0
    %190 = vmatpush2.bf16.msra.mxu0 0
    %191 = vmatprep.subr.bf16.mxu0 0
    %192 = vmatpush2.bf16.msra.mxu0 0
    %193 = vmatprep.subr.bf16.mxu0 0
    %194 = vmatpush2.bf16.msra.mxu0 0
    %195 = vmatprep.subr.bf16.mxu0 0
    %196 = vmatpush2.bf16.msra.mxu0 0
    %197 = vmatprep.subr.bf16.mxu0 0
    %198 = vmatpush2.bf16.msra.mxu0 0
    %199 = vmatprep.mubr.bf16.mxu0 0
    %200 = vmatmul.mubr.bf16.gmra.mxu0 %v165
    %v201 = vpop.f32.mrf.mxu0
    %v202 = vadd.f32 %v156, %v201
    %v203 = vpop.f32.mrf.mxu0
    %v204 = vadd.f32 %v160, %v203
    %v205 = vpop.f32.mrf.mxu0
    %v206 = vadd.f32 %v156, %v205
    %v207 = vpop.f32.mrf.mxu0
    %v208 = vadd.f32 %v160, %v207
    %209 = vdwg.mxu0
    %v210 = vld [vmem:[%s1] sm:$0x3]
    %s211 = scalar_lea.vmem %s1, 2
    %v212 = vld [vmem:[%s211] sm:$0x3]
    %214 = vrot.lane.b32.xlu0 %v212, 32
    %v215 = vpop.permute.xlu0 %214
    %v217 = vsel %vm163, %v210, %v215
    %v218 = vld [vmem:[%s2] sm:$0x3]
    %s219 = scalar_lea.vmem %s2, 2
    %v220 = vld [vmem:[%s219] sm:$0x3]
    %v221 = vld [vmem:[%s6] sm:$0xff]
    %v222 = vld [vmem:[%s6 + $0x8] sm:$0xff]
    %v223 = vld [vmem:[%s6 + $0x10] sm:$0xff]
    %v224 = vld [vmem:[%s6 + $0x18] sm:$0xff]
    %v225 = vld [vmem:[%s6 + $0x20] sm:$0xff]
    %v226 = vld [vmem:[%s6 + $0x28] sm:$0xff]
    %v227 = vld [vmem:[%s6 + $0x30] sm:$0xff]
    %v228 = vld [vmem:[%s6 + $0x38] sm:$0xff]
    %v229 = vld [vmem:[%s6 + $0x40] sm:$0xff]
    %v230 = vld [vmem:[%s6 + $0x48] sm:$0xff]
    %v231 = vld [vmem:[%s6 + $0x50] sm:$0xff]
    %v232 = vld [vmem:[%s6 + $0x58] sm:$0xff]
    %v233 = vld [vmem:[%s6 + $0x60] sm:$0xff]
    %v234 = vld [vmem:[%s6 + $0x68] sm:$0xff]
    %v235 = vld [vmem:[%s6 + $0x70] sm:$0xff]
    %v236 = vld [vmem:[%s6 + $0x78] sm:$0xff]
    %vm237 = vcmask 523264
    %v239 = vsel %vm237, %v217, 0
    %241 = vmatprep.subr.mxu0 0.0
    %242 = vmatpush1.msra.mxu0 0.0
    %243 = vmatprep.subr.mxu0 0.0
    %244 = vmatpush1.msra.mxu0 0.0
    %245 = vmatprep.subr.mxu0 0.0
    %246 = vmatpush1.msra.mxu0 0.0
    %247 = vmatprep.subr.mxu0 0.0
    %248 = vmatpush1.msra.mxu0 0.0
    %249 = vmatprep.subr.mxu0 0.0
    %250 = vmatpush1.msra.mxu0 0.0
    %251 = vmatprep.subr.mxu0 0.0
    %252 = vmatpush1.msra.mxu0 0.0
    %253 = vmatprep.subr.mxu0 0.0
    %254 = vmatpush1.msra.mxu0 0.0
    %255 = vmatprep.subr.mxu0 0.0
    %256 = vmatpush1.msra.mxu0 0.0
    %257 = vmatprep.subr.mxu0 %v236
    %258 = vmatpush1.msra.mxu0 %v235
    %259 = vmatprep.subr.mxu0 %v234
    %260 = vmatpush1.msra.mxu0 %v233
    %261 = vmatprep.subr.mxu0 %v232
    %262 = vmatpush1.msra.mxu0 %v231
    %263 = vmatprep.subr.mxu0 %v230
    %264 = vmatpush1.msra.mxu0 %v229
    %265 = vmatprep.subr.mxu0 %v228
    %266 = vmatpush1.msra.mxu0 %v227
    %267 = vmatprep.subr.mxu0 %v226
    %268 = vmatpush1.msra.mxu0 %v225
    %269 = vmatprep.subr.mxu0 %v224
    %270 = vmatpush1.msra.mxu0 %v223
    %271 = vmatprep.subr.mxu0 %v222
    %272 = vmatpush1.msra.mxu0 %v221
    %273 = vmatprep.subr.mxu0 0.0
    %274 = vmatpush2.msra.mxu0 0.0
    %275 = vmatprep.subr.mxu0 0.0
    %276 = vmatpush2.msra.mxu0 0.0
    %277 = vmatprep.subr.mxu0 0.0
    %278 = vmatpush2.msra.mxu0 0.0
    %279 = vmatprep.subr.mxu0 0.0
    %280 = vmatpush2.msra.mxu0 0.0
    %281 = vmatprep.subr.mxu0 0.0
    %282 = vmatpush2.msra.mxu0 0.0
    %283 = vmatprep.subr.mxu0 0.0
    %284 = vmatpush2.msra.mxu0 0.0
    %285 = vmatprep.subr.mxu0 0.0
    %286 = vmatpush2.msra.mxu0 0.0
    %287 = vmatprep.subr.mxu0 0.0
    %288 = vmatpush2.msra.mxu0 0.0
    %289 = vmatprep.subr.mxu0 0.0
    %290 = vmatpush2.msra.mxu0 0.0
    %291 = vmatprep.subr.mxu0 0.0
    %292 = vmatpush2.msra.mxu0 0.0
    %293 = vmatprep.subr.mxu0 0.0
    %294 = vmatpush2.msra.mxu0 0.0
    %295 = vmatprep.subr.mxu0 0.0
    %296 = vmatpush2.msra.mxu0 0.0
    %297 = vmatprep.subr.mxu0 0.0
    %298 = vmatpush2.msra.mxu0 0.0
    %299 = vmatprep.subr.mxu0 0.0
    %300 = vmatpush2.msra.mxu0 0.0
    %301 = vmatprep.subr.mxu0 0.0
    %302 = vmatpush2.msra.mxu0 0.0
    %303 = vmatprep.subr.mxu0 0.0
    %304 = vmatpush2.msra.mxu0 0.0
    %305 = vmatprep.mubr.f32.mxu0 0.0
    %306 = vmatmul.mubr.f32.gmra.mxu0 %v239
    %v307 = vpop.f32.mrf.mxu0
    %v308 = vadd.f32 0.0, %v307
    %v309 = vpop.f32.mrf.mxu0
    %v310 = vadd.f32 0.0, %v309
    %311 = vdwg.mxu0
    %v312 = vadd.f32 %v202, %v308
    %v314 = vrot.slane %v310, 2
    %v316 = vadd.f32 %v208, %v314
    %v317 = vmul.f32 %v312, 0.5
    %v318 = vtanh.pop %v317
    %v319 = vmul.f32 %v318, 0.5
    %v320 = vadd.f32 %v319, 0.5
    %v321 = vtanh.pop %v312
    %323 = vrot.lane.b32.xlu0 %v218, 32
    %v324 = vpop.permute.xlu0 %323
    %v326 = vmul.f32 %v320, %v324
    %328 = vrot.lane.b32.xlu0 %v321, 32
    %v329 = vpop.permute.xlu0 %328
    %v331 = vmul.f32 %v320, %v329
    %333 = vrot.lane.b32.xlu0 %v331, 32
    %v334 = vpop.permute.xlu0 %333
    %v336 = vadd.f32 %v326, %v334
    %v337 = vtanh.pop %v336
    %339 = vrot.lane.b32.xlu0 %v337, 32
    %v340 = vpop.permute.xlu0 %339
    %v342 = vmul.f32 %v320, %v340
    %v343 = vmul.f32 %v316, 0.5
    %v344 = vtanh.pop %v343
    %v345 = vmul.f32 %v344, 0.5
    %v346 = vadd.f32 %v345, 0.5
    %v347 = vtanh.pop %v316
    %v349 = vrot.slane %v220, 2
    %350 = vrot.lane.b32.xlu0 %v349, 32
    %v351 = vpop.permute.xlu0 %350
    %v353 = vmul.f32 %v346, %v351
    %355 = vrot.lane.b32.xlu0 %v347, 32
    %v356 = vpop.permute.xlu0 %355
    %v358 = vmul.f32 %v346, %v356
    %360 = vrot.lane.b32.xlu0 %v358, 32
    %v361 = vpop.permute.xlu0 %360
    %v363 = vadd.f32 %v353, %v361
    %v364 = vtanh.pop %v363
    %366 = vrot.lane.b32.xlu0 %v364, 32
    %v367 = vpop.permute.xlu0 %366
    %v369 = vmul.f32 %v346, %v367
    %371 = vrot.lane.b32.xlu0 %v342, 64
    %v372 = vpop.permute.xlu0 %371
    %v375 = vrot.slane %v369, 6
    %376 = vrot.lane.b32.xlu0 %v375, 96
    %v377 = vpop.permute.xlu0 %376
    %v379 = vsel %vm163, %v372, %v377
    %v381 = vsel %vm237, %v379, 0
    %383 = vmatprep.subr.mxu0 0.0
    %384 = vmatpush1.msra.mxu0 0.0
    %385 = vmatprep.subr.mxu0 0.0
    %386 = vmatpush1.msra.mxu0 0.0
    %387 = vmatprep.subr.mxu0 0.0
    %388 = vmatpush1.msra.mxu0 0.0
    %389 = vmatprep.subr.mxu0 0.0
    %390 = vmatpush1.msra.mxu0 0.0
    %391 = vmatprep.subr.mxu0 0.0
    %392 = vmatpush1.msra.mxu0 0.0
    %393 = vmatprep.subr.mxu0 0.0
    %394 = vmatpush1.msra.mxu0 0.0
    %395 = vmatprep.subr.mxu0 0.0
    %396 = vmatpush1.msra.mxu0 0.0
    %397 = vmatprep.subr.mxu0 0.0
    %398 = vmatpush1.msra.mxu0 0.0
    %399 = vmatprep.subr.mxu0 %v236
    %400 = vmatpush1.msra.mxu0 %v235
    %401 = vmatprep.subr.mxu0 %v234
    %402 = vmatpush1.msra.mxu0 %v233
    %403 = vmatprep.subr.mxu0 %v232
    %404 = vmatpush1.msra.mxu0 %v231
    %405 = vmatprep.subr.mxu0 %v230
    %406 = vmatpush1.msra.mxu0 %v229
    %407 = vmatprep.subr.mxu0 %v228
    %408 = vmatpush1.msra.mxu0 %v227
    %409 = vmatprep.subr.mxu0 %v226
    %410 = vmatpush1.msra.mxu0 %v225
    %411 = vmatprep.subr.mxu0 %v224
    %412 = vmatpush1.msra.mxu0 %v223
    %413 = vmatprep.subr.mxu0 %v222
    %414 = vmatpush1.msra.mxu0 %v221
    %415 = vmatprep.subr.mxu0 0.0
    %416 = vmatpush2.msra.mxu0 0.0
    %417 = vmatprep.subr.mxu0 0.0
    %418 = vmatpush2.msra.mxu0 0.0
    %419 = vmatprep.subr.mxu0 0.0
    %420 = vmatpush2.msra.mxu0 0.0
    %421 = vmatprep.subr.mxu0 0.0
    %422 = vmatpush2.msra.mxu0 0.0
    %423 = vmatprep.subr.mxu0 0.0
    %424 = vmatpush2.msra.mxu0 0.0
    %425 = vmatprep.subr.mxu0 0.0
    %426 = vmatpush2.msra.mxu0 0.0
    %427 = vmatprep.subr.mxu0 0.0
    %428 = vmatpush2.msra.mxu0 0.0
    %429 = vmatprep.subr.mxu0 0.0
    %430 = vmatpush2.msra.mxu0 0.0
    %431 = vmatprep.subr.mxu0 0.0
    %432 = vmatpush2.msra.mxu0 0.0
    %433 = vmatprep.subr.mxu0 0.0
    %434 = vmatpush2.msra.mxu0 0.0
    %435 = vmatprep.subr.mxu0 0.0
    %436 = vmatpush2.msra.mxu0 0.0
    %437 = vmatprep.subr.mxu0 0.0
    %438 = vmatpush2.msra.mxu0 0.0
    %439 = vmatprep.subr.mxu0 0.0
    %440 = vmatpush2.msra.mxu0 0.0
    %441 = vmatprep.subr.mxu0 0.0
    %442 = vmatpush2.msra.mxu0 0.0
    %443 = vmatprep.subr.mxu0 0.0
    %444 = vmatpush2.msra.mxu0 0.0
    %445 = vmatprep.subr.mxu0 0.0
    %446 = vmatpush2.msra.mxu0 0.0
    %447 = vmatprep.mubr.f32.mxu0 0.0
    %448 = vmatmul.mubr.f32.gmra.mxu0 %v381
    %v449 = vpop.f32.mrf.mxu0
    %v450 = vadd.f32 0.0, %v449
    %v451 = vpop.f32.mrf.mxu0
    %v452 = vadd.f32 0.0, %v451
    %453 = vdwg.mxu0
    %v455 = vrot.slane %v450, 6
    %v457 = vadd.f32 %v202, %v455
    %v459 = vrot.slane %v452, 4
    %v461 = vadd.f32 %v208, %v459
    %v462 = vmul.f32 %v457, 0.5
    %v463 = vtanh.pop %v462
    %v464 = vmul.f32 %v463, 0.5
    %v465 = vadd.f32 %v464, 0.5
    %v466 = vtanh.pop %v457
    %v468 = vrot.slane %v336, 6
    %v470 = vmul.f32 %v465, %v468
    %472 = vrot.lane.b32.xlu0 %v466, 32
    %v473 = vpop.permute.xlu0 %472
    %v475 = vmul.f32 %v465, %v473
    %477 = vrot.lane.b32.xlu0 %v475, 32
    %v478 = vpop.permute.xlu0 %477
    %v480 = vadd.f32 %v470, %v478
    %v481 = vtanh.pop %v480
    %483 = vrot.lane.b32.xlu0 %v481, 32
    %v484 = vpop.permute.xlu0 %483
    %v486 = vmul.f32 %v465, %v484
    %v487 = vmul.f32 %v461, 0.5
    %v488 = vtanh.pop %v487
    %v489 = vmul.f32 %v488, 0.5
    %v490 = vadd.f32 %v489, 0.5
    %v491 = vtanh.pop %v461
    %v493 = vrot.slane %v363, 2
    %v495 = vmul.f32 %v490, %v493
    %497 = vrot.lane.b32.xlu0 %v491, 32
    %v498 = vpop.permute.xlu0 %497
    %v500 = vmul.f32 %v490, %v498
    %502 = vrot.lane.b32.xlu0 %v500, 32
    %v503 = vpop.permute.xlu0 %502
    %v505 = vadd.f32 %v495, %v503
    %v506 = vtanh.pop %v505
    %508 = vrot.lane.b32.xlu0 %v506, 32
    %v509 = vpop.permute.xlu0 %508
    %v511 = vmul.f32 %v490, %v509
    %513 = vrot.lane.b32.xlu0 %v486, 64
    %v514 = vpop.permute.xlu0 %513
    %v517 = vrot.slane %v511, 2
    %518 = vrot.lane.b32.xlu0 %v517, 96
    %v519 = vpop.permute.xlu0 %518
    %v521 = vsel %vm163, %v514, %v519
    %v523 = vrot.slane %v521, 2
    %v524 = vsel %vm237, %v523, 0
    %526 = vmatprep.subr.mxu0 0.0
    %527 = vmatpush1.msra.mxu0 0.0
    %528 = vmatprep.subr.mxu0 0.0
    %529 = vmatpush1.msra.mxu0 0.0
    %530 = vmatprep.subr.mxu0 0.0
    %531 = vmatpush1.msra.mxu0 0.0
    %532 = vmatprep.subr.mxu0 0.0
    %533 = vmatpush1.msra.mxu0 0.0
    %534 = vmatprep.subr.mxu0 0.0
    %535 = vmatpush1.msra.mxu0 0.0
    %536 = vmatprep.subr.mxu0 0.0
    %537 = vmatpush1.msra.mxu0 0.0
    %538 = vmatprep.subr.mxu0 0.0
    %539 = vmatpush1.msra.mxu0 0.0
    %540 = vmatprep.subr.mxu0 0.0
    %541 = vmatpush1.msra.mxu0 0.0
    %542 = vmatprep.subr.mxu0 %v236
    %543 = vmatpush1.msra.mxu0 %v235
    %544 = vmatprep.subr.mxu0 %v234
    %545 = vmatpush1.msra.mxu0 %v233
    %546 = vmatprep.subr.mxu0 %v232
    %547 = vmatpush1.msra.mxu0 %v231
    %548 = vmatprep.subr.mxu0 %v230
    %549 = vmatpush1.msra.mxu0 %v229
    %550 = vmatprep.subr.mxu0 %v228
    %551 = vmatpush1.msra.mxu0 %v227
    %552 = vmatprep.subr.mxu0 %v226
    %553 = vmatpush1.msra.mxu0 %v225
    %554 = vmatprep.subr.mxu0 %v224
    %555 = vmatpush1.msra.mxu0 %v223
    %556 = vmatprep.subr.mxu0 %v222
    %557 = vmatpush1.msra.mxu0 %v221
    %558 = vmatprep.subr.mxu0 0.0
    %559 = vmatpush2.msra.mxu0 0.0
    %560 = vmatprep.subr.mxu0 0.0
    %561 = vmatpush2.msra.mxu0 0.0
    %562 = vmatprep.subr.mxu0 0.0
    %563 = vmatpush2.msra.mxu0 0.0
    %564 = vmatprep.subr.mxu0 0.0
    %565 = vmatpush2.msra.mxu0 0.0
    %566 = vmatprep.subr.mxu0 0.0
    %567 = vmatpush2.msra.mxu0 0.0
    %568 = vmatprep.subr.mxu0 0.0
    %569 = vmatpush2.msra.mxu0 0.0
    %570 = vmatprep.subr.mxu0 0.0
    %571 = vmatpush2.msra.mxu0 0.0
    %572 = vmatprep.subr.mxu0 0.0
    %573 = vmatpush2.msra.mxu0 0.0
    %574 = vmatprep.subr.mxu0 0.0
    %575 = vmatpush2.msra.mxu0 0.0
    %576 = vmatprep.subr.mxu0 0.0
    %577 = vmatpush2.msra.mxu0 0.0
    %578 = vmatprep.subr.mxu0 0.0
    %579 = vmatpush2.msra.mxu0 0.0
    %580 = vmatprep.subr.mxu0 0.0
    %581 = vmatpush2.msra.mxu0 0.0
    %582 = vmatprep.subr.mxu0 0.0
    %583 = vmatpush2.msra.mxu0 0.0
    %584 = vmatprep.subr.mxu0 0.0
    %585 = vmatpush2.msra.mxu0 0.0
    %586 = vmatprep.subr.mxu0 0.0
    %587 = vmatpush2.msra.mxu0 0.0
    %588 = vmatprep.subr.mxu0 0.0
    %589 = vmatpush2.msra.mxu0 0.0
    %590 = vmatprep.mubr.f32.mxu0 0.0
    %591 = vmatmul.mubr.f32.gmra.mxu0 %v524
    %v592 = vpop.f32.mrf.mxu0
    %v593 = vadd.f32 0.0, %v592
    %v594 = vpop.f32.mrf.mxu0
    %v595 = vadd.f32 0.0, %v594
    %596 = vdwg.mxu0
    %v598 = vrot.slane %v593, 4
    %v600 = vadd.f32 %v202, %v598
    %v602 = vrot.slane %v595, 6
    %v604 = vadd.f32 %v208, %v602
    %v605 = vmul.f32 %v600, 0.5
    %v606 = vtanh.pop %v605
    %v607 = vmul.f32 %v606, 0.5
    %v608 = vadd.f32 %v607, 0.5
    %v609 = vtanh.pop %v600
    %v611 = vrot.slane %v480, 6
    %v613 = vmul.f32 %v608, %v611
    %615 = vrot.lane.b32.xlu0 %v609, 32
    %v616 = vpop.permute.xlu0 %615
    %v618 = vmul.f32 %v608, %v616
    %620 = vrot.lane.b32.xlu0 %v618, 32
    %v621 = vpop.permute.xlu0 %620
    %v623 = vadd.f32 %v613, %v621
    %v624 = vtanh.pop %v623
    %626 = vrot.lane.b32.xlu0 %v624, 32
    %v627 = vpop.permute.xlu0 %626
    %v629 = vmul.f32 %v608, %v627
    %v630 = vmul.f32 %v604, 0.5
    %v631 = vtanh.pop %v630
    %v632 = vmul.f32 %v631, 0.5
    %v633 = vadd.f32 %v632, 0.5
    %v634 = vtanh.pop %v604
    %v636 = vrot.slane %v505, 2
    %v638 = vmul.f32 %v633, %v636
    %640 = vrot.lane.b32.xlu0 %v634, 32
    %v641 = vpop.permute.xlu0 %640
    %v643 = vmul.f32 %v633, %v641
    %645 = vrot.lane.b32.xlu0 %v643, 32
    %v646 = vpop.permute.xlu0 %645
    %v648 = vadd.f32 %v638, %v646
    %v649 = vtanh.pop %v648
    %651 = vrot.lane.b32.xlu0 %v649, 32
    %v652 = vpop.permute.xlu0 %651
    %v654 = vmul.f32 %v633, %v652
    %656 = vrot.lane.b32.xlu0 %v629, 64
    %v657 = vpop.permute.xlu0 %656
    %v660 = vrot.slane %v654, 6
    %661 = vrot.lane.b32.xlu0 %v660, 96
    %v662 = vpop.permute.xlu0 %661
    %v664 = vsel %vm163, %v657, %v662
    %v666 = vrot.slane %v664, 4
    %v667 = vsel %vm237, %v666, 0
    %669 = vmatprep.subr.mxu0 0.0
    %670 = vmatpush1.msra.mxu0 0.0
    %671 = vmatprep.subr.mxu0 0.0
    %672 = vmatpush1.msra.mxu0 0.0
    %673 = vmatprep.subr.mxu0 0.0
    %674 = vmatpush1.msra.mxu0 0.0
    %675 = vmatprep.subr.mxu0 0.0
    %676 = vmatpush1.msra.mxu0 0.0
    %677 = vmatprep.subr.mxu0 0.0
    %678 = vmatpush1.msra.mxu0 0.0
    %679 = vmatprep.subr.mxu0 0.0
    %680 = vmatpush1.msra.mxu0 0.0
    %681 = vmatprep.subr.mxu0 0.0
    %682 = vmatpush1.msra.mxu0 0.0
    %683 = vmatprep.subr.mxu0 0.0
    %684 = vmatpush1.msra.mxu0 0.0
    %685 = vmatprep.subr.mxu0 %v236
    %686 = vmatpush1.msra.mxu0 %v235
    %687 = vmatprep.subr.mxu0 %v234
    %688 = vmatpush1.msra.mxu0 %v233
    %689 = vmatprep.subr.mxu0 %v232
    %690 = vmatpush1.msra.mxu0 %v231
    %691 = vmatprep.subr.mxu0 %v230
    %692 = vmatpush1.msra.mxu0 %v229
    %693 = vmatprep.subr.mxu0 %v228
    %694 = vmatpush1.msra.mxu0 %v227
    %695 = vmatprep.subr.mxu0 %v226
    %696 = vmatpush1.msra.mxu0 %v225
    %697 = vmatprep.subr.mxu0 %v224
    %698 = vmatpush1.msra.mxu0 %v223
    %699 = vmatprep.subr.mxu0 %v222
    %700 = vmatpush1.msra.mxu0 %v221
    %701 = vmatprep.subr.mxu0 0.0
    %702 = vmatpush2.msra.mxu0 0.0
    %703 = vmatprep.subr.mxu0 0.0
    %704 = vmatpush2.msra.mxu0 0.0
    %705 = vmatprep.subr.mxu0 0.0
    %706 = vmatpush2.msra.mxu0 0.0
    %707 = vmatprep.subr.mxu0 0.0
    %708 = vmatpush2.msra.mxu0 0.0
    %709 = vmatprep.subr.mxu0 0.0
    %710 = vmatpush2.msra.mxu0 0.0
    %711 = vmatprep.subr.mxu0 0.0
    %712 = vmatpush2.msra.mxu0 0.0
    %713 = vmatprep.subr.mxu0 0.0
    %714 = vmatpush2.msra.mxu0 0.0
    %715 = vmatprep.subr.mxu0 0.0
    %716 = vmatpush2.msra.mxu0 0.0
    %717 = vmatprep.subr.mxu0 0.0
    %718 = vmatpush2.msra.mxu0 0.0
    %719 = vmatprep.subr.mxu0 0.0
    %720 = vmatpush2.msra.mxu0 0.0
    %721 = vmatprep.subr.mxu0 0.0
    %722 = vmatpush2.msra.mxu0 0.0
    %723 = vmatprep.subr.mxu0 0.0
    %724 = vmatpush2.msra.mxu0 0.0
    %725 = vmatprep.subr.mxu0 0.0
    %726 = vmatpush2.msra.mxu0 0.0
    %727 = vmatprep.subr.mxu0 0.0
    %728 = vmatpush2.msra.mxu0 0.0
    %729 = vmatprep.subr.mxu0 0.0
    %730 = vmatpush2.msra.mxu0 0.0
    %731 = vmatprep.subr.mxu0 0.0
    %732 = vmatpush2.msra.mxu0 0.0
    %733 = vmatprep.mubr.f32.mxu0 0.0
    %734 = vmatmul.mubr.f32.gmra.mxu0 %v667
    %v735 = vpop.f32.mrf.mxu0
    %v736 = vadd.f32 0.0, %v735
    %v737 = vpop.f32.mrf.mxu0
    %v738 = vadd.f32 0.0, %v737
    %739 = vdwg.mxu0
    %v741 = vrot.slane %v736, 2
    %v743 = vadd.f32 %v202, %v741
    %v744 = vadd.f32 %v208, %v738
    %v745 = vmul.f32 %v743, 0.5
    %v746 = vtanh.pop %v745
    %v747 = vmul.f32 %v746, 0.5
    %v748 = vadd.f32 %v747, 0.5
    %v749 = vtanh.pop %v743
    %v751 = vrot.slane %v623, 6
    %v753 = vmul.f32 %v748, %v751
    %755 = vrot.lane.b32.xlu0 %v749, 32
    %v756 = vpop.permute.xlu0 %755
    %v758 = vmul.f32 %v748, %v756
    %760 = vrot.lane.b32.xlu0 %v758, 32
    %v761 = vpop.permute.xlu0 %760
    %v763 = vadd.f32 %v753, %v761
    %v764 = vtanh.pop %v763
    %766 = vrot.lane.b32.xlu0 %v764, 32
    %v767 = vpop.permute.xlu0 %766
    %v769 = vmul.f32 %v748, %v767
    %v770 = vmul.f32 %v744, 0.5
    %v771 = vtanh.pop %v770
    %v772 = vmul.f32 %v771, 0.5
    %v773 = vadd.f32 %v772, 0.5
    %v774 = vtanh.pop %v744
    %v776 = vrot.slane %v648, 2
    %v778 = vmul.f32 %v773, %v776
    %780 = vrot.lane.b32.xlu0 %v774, 32
    %v781 = vpop.permute.xlu0 %780
    %v783 = vmul.f32 %v773, %v781
    %785 = vrot.lane.b32.xlu0 %v783, 32
    %v786 = vpop.permute.xlu0 %785
    %v788 = vadd.f32 %v778, %v786
    %v789 = vtanh.pop %v788
    %791 = vrot.lane.b32.xlu0 %v789, 32
    %v792 = vpop.permute.xlu0 %791
    %v794 = vmul.f32 %v773, %v792
    %796 = vrot.lane.b32.xlu0 %v769, 64
    %v797 = vpop.permute.xlu0 %796
    %v800 = vrot.slane %v794, 2
    %801 = vrot.lane.b32.xlu0 %v800, 96
    %v802 = vpop.permute.xlu0 %801
    %v804 = vsel %vm163, %v797, %v802
    %v806 = vrot.slane %v804, 6
    %v807 = vsel %vm237, %v806, 0
    %809 = vmatprep.subr.mxu0 0.0
    %810 = vmatpush1.msra.mxu0 0.0
    %811 = vmatprep.subr.mxu0 0.0
    %812 = vmatpush1.msra.mxu0 0.0
    %813 = vmatprep.subr.mxu0 0.0
    %814 = vmatpush1.msra.mxu0 0.0
    %815 = vmatprep.subr.mxu0 0.0
    %816 = vmatpush1.msra.mxu0 0.0
    %817 = vmatprep.subr.mxu0 0.0
    %818 = vmatpush1.msra.mxu0 0.0
    %819 = vmatprep.subr.mxu0 0.0
    %820 = vmatpush1.msra.mxu0 0.0
    %821 = vmatprep.subr.mxu0 0.0
    %822 = vmatpush1.msra.mxu0 0.0
    %823 = vmatprep.subr.mxu0 0.0
    %824 = vmatpush1.msra.mxu0 0.0
    %825 = vmatprep.subr.mxu0 %v236
    %826 = vmatpush1.msra.mxu0 %v235
    %827 = vmatprep.subr.mxu0 %v234
    %828 = vmatpush1.msra.mxu0 %v233
    %829 = vmatprep.subr.mxu0 %v232
    %830 = vmatpush1.msra.mxu0 %v231
    %831 = vmatprep.subr.mxu0 %v230
    %832 = vmatpush1.msra.mxu0 %v229
    %833 = vmatprep.subr.mxu0 %v228
    %834 = vmatpush1.msra.mxu0 %v227
    %835 = vmatprep.subr.mxu0 %v226
    %836 = vmatpush1.msra.mxu0 %v225
    %837 = vmatprep.subr.mxu0 %v224
    %838 = vmatpush1.msra.mxu0 %v223
    %839 = vmatprep.subr.mxu0 %v222
    %840 = vmatpush1.msra.mxu0 %v221
    %841 = vmatprep.subr.mxu0 0.0
    %842 = vmatpush2.msra.mxu0 0.0
    %843 = vmatprep.subr.mxu0 0.0
    %844 = vmatpush2.msra.mxu0 0.0
    %845 = vmatprep.subr.mxu0 0.0
    %846 = vmatpush2.msra.mxu0 0.0
    %847 = vmatprep.subr.mxu0 0.0
    %848 = vmatpush2.msra.mxu0 0.0
    %849 = vmatprep.subr.mxu0 0.0
    %850 = vmatpush2.msra.mxu0 0.0
    %851 = vmatprep.subr.mxu0 0.0
    %852 = vmatpush2.msra.mxu0 0.0
    %853 = vmatprep.subr.mxu0 0.0
    %854 = vmatpush2.msra.mxu0 0.0
    %855 = vmatprep.subr.mxu0 0.0
    %856 = vmatpush2.msra.mxu0 0.0
    %857 = vmatprep.subr.mxu0 0.0
    %858 = vmatpush2.msra.mxu0 0.0
    %859 = vmatprep.subr.mxu0 0.0
    %860 = vmatpush2.msra.mxu0 0.0
    %861 = vmatprep.subr.mxu0 0.0
    %862 = vmatpush2.msra.mxu0 0.0
    %863 = vmatprep.subr.mxu0 0.0
    %864 = vmatpush2.msra.mxu0 0.0
    %865 = vmatprep.subr.mxu0 0.0
    %866 = vmatpush2.msra.mxu0 0.0
    %867 = vmatprep.subr.mxu0 0.0
    %868 = vmatpush2.msra.mxu0 0.0
    %869 = vmatprep.subr.mxu0 0.0
    %870 = vmatpush2.msra.mxu0 0.0
    %871 = vmatprep.subr.mxu0 0.0
    %872 = vmatpush2.msra.mxu0 0.0
    %873 = vmatprep.mubr.f32.mxu0 0.0
    %874 = vmatmul.mubr.f32.gmra.mxu0 %v807
    %v875 = vpop.f32.mrf.mxu0
    %v876 = vadd.f32 0.0, %v875
    %v877 = vpop.f32.mrf.mxu0
    %v878 = vadd.f32 0.0, %v877
    %879 = vdwg.mxu0
    %v880 = vadd.f32 %v206, %v876
    %v882 = vrot.slane %v878, 2
    %v884 = vadd.f32 %v204, %v882
    %v885 = vmul.f32 %v880, 0.5
    %v886 = vtanh.pop %v885
    %v887 = vmul.f32 %v886, 0.5
    %v888 = vadd.f32 %v887, 0.5
    %v889 = vtanh.pop %v880
    %v891 = vrot.slane %v763, 6
    %v893 = vmul.f32 %v888, %v891
    %895 = vrot.lane.b32.xlu0 %v889, 32
    %v896 = vpop.permute.xlu0 %895
    %v898 = vmul.f32 %v888, %v896
    %900 = vrot.lane.b32.xlu0 %v898, 32
    %v901 = vpop.permute.xlu0 %900
    %v903 = vadd.f32 %v893, %v901
    %v904 = vtanh.pop %v903
    %906 = vrot.lane.b32.xlu0 %v904, 32
    %v907 = vpop.permute.xlu0 %906
    %v909 = vmul.f32 %v888, %v907
    %v910 = vmul.f32 %v884, 0.5
    %v911 = vtanh.pop %v910
    %v912 = vmul.f32 %v911, 0.5
    %v913 = vadd.f32 %v912, 0.5
    %v914 = vtanh.pop %v884
    %v916 = vrot.slane %v788, 2
    %v918 = vmul.f32 %v913, %v916
    %920 = vrot.lane.b32.xlu0 %v914, 32
    %v921 = vpop.permute.xlu0 %920
    %v923 = vmul.f32 %v913, %v921
    %925 = vrot.lane.b32.xlu0 %v923, 32
    %v926 = vpop.permute.xlu0 %925
    %v928 = vadd.f32 %v918, %v926
    %v929 = vtanh.pop %v928
    %931 = vrot.lane.b32.xlu0 %v929, 32
    %v932 = vpop.permute.xlu0 %931
    %v934 = vmul.f32 %v913, %v932
    %936 = vrot.lane.b32.xlu0 %v909, 64
    %v937 = vpop.permute.xlu0 %936
    %v940 = vrot.slane %v934, 6
    %941 = vrot.lane.b32.xlu0 %v940, 96
    %v942 = vpop.permute.xlu0 %941
    %v944 = vsel %vm163, %v937, %v942
    %v946 = vsel %vm237, %v944, 0
    %948 = vmatprep.subr.mxu0 0.0
    %949 = vmatpush1.msra.mxu0 0.0
    %950 = vmatprep.subr.mxu0 0.0
    %951 = vmatpush1.msra.mxu0 0.0
    %952 = vmatprep.subr.mxu0 0.0
    %953 = vmatpush1.msra.mxu0 0.0
    %954 = vmatprep.subr.mxu0 0.0
    %955 = vmatpush1.msra.mxu0 0.0
    %956 = vmatprep.subr.mxu0 0.0
    %957 = vmatpush1.msra.mxu0 0.0
    %958 = vmatprep.subr.mxu0 0.0
    %959 = vmatpush1.msra.mxu0 0.0
    %960 = vmatprep.subr.mxu0 0.0
    %961 = vmatpush1.msra.mxu0 0.0
    %962 = vmatprep.subr.mxu0 0.0
    %963 = vmatpush1.msra.mxu0 0.0
    %964 = vmatprep.subr.mxu0 %v236
    %965 = vmatpush1.msra.mxu0 %v235
    %966 = vmatprep.subr.mxu0 %v234
    %967 = vmatpush1.msra.mxu0 %v233
    %968 = vmatprep.subr.mxu0 %v232
    %969 = vmatpush1.msra.mxu0 %v231
    %970 = vmatprep.subr.mxu0 %v230
    %971 = vmatpush1.msra.mxu0 %v229
    %972 = vmatprep.subr.mxu0 %v228
    %973 = vmatpush1.msra.mxu0 %v227
    %974 = vmatprep.subr.mxu0 %v226
    %975 = vmatpush1.msra.mxu0 %v225
    %976 = vmatprep.subr.mxu0 %v224
    %977 = vmatpush1.msra.mxu0 %v223
    %978 = vmatprep.subr.mxu0 %v222
    %979 = vmatpush1.msra.mxu0 %v221
    %980 = vmatprep.subr.mxu0 0.0
    %981 = vmatpush2.msra.mxu0 0.0
    %982 = vmatprep.subr.mxu0 0.0
    %983 = vmatpush2.msra.mxu0 0.0
    %984 = vmatprep.subr.mxu0 0.0
    %985 = vmatpush2.msra.mxu0 0.0
    %986 = vmatprep.subr.mxu0 0.0
    %987 = vmatpush2.msra.mxu0 0.0
    %988 = vmatprep.subr.mxu0 0.0
    %989 = vmatpush2.msra.mxu0 0.0
    %990 = vmatprep.subr.mxu0 0.0
    %991 = vmatpush2.msra.mxu0 0.0
    %992 = vmatprep.subr.mxu0 0.0
    %993 = vmatpush2.msra.mxu0 0.0
    %994 = vmatprep.subr.mxu0 0.0
    %995 = vmatpush2.msra.mxu0 0.0
    %996 = vmatprep.subr.mxu0 0.0
    %997 = vmatpush2.msra.mxu0 0.0
    %998 = vmatprep.subr.mxu0 0.0
    %999 = vmatpush2.msra.mxu0 0.0
    %1000 = vmatprep.subr.mxu0 0.0
    %1001 = vmatpush2.msra.mxu0 0.0
    %1002 = vmatprep.subr.mxu0 0.0
    %1003 = vmatpush2.msra.mxu0 0.0
    %1004 = vmatprep.subr.mxu0 0.0
    %1005 = vmatpush2.msra.mxu0 0.0
    %1006 = vmatprep.subr.mxu0 0.0
    %1007 = vmatpush2.msra.mxu0 0.0
    %1008 = vmatprep.subr.mxu0 0.0
    %1009 = vmatpush2.msra.mxu0 0.0
    %1010 = vmatprep.subr.mxu0 0.0
    %1011 = vmatpush2.msra.mxu0 0.0
    %1012 = vmatprep.mubr.f32.mxu0 0.0
    %1013 = vmatmul.mubr.f32.gmra.mxu0 %v946
    %v1014 = vpop.f32.mrf.mxu0
    %v1015 = vadd.f32 0.0, %v1014
    %v1016 = vpop.f32.mrf.mxu0
    %v1017 = vadd.f32 0.0, %v1016
    %1018 = vdwg.mxu0
    %v1020 = vrot.slane %v1015, 6
    %v1022 = vadd.f32 %v206, %v1020
    %v1024 = vrot.slane %v1017, 4
    %v1026 = vadd.f32 %v204, %v1024
    %v1027 = vmul.f32 %v1022, 0.5
    %v1028 = vtanh.pop %v1027
    %v1029 = vmul.f32 %v1028, 0.5
    %v1030 = vadd.f32 %v1029, 0.5
    %v1031 = vtanh.pop %v1022
    %v1033 = vrot.slane %v903, 6
    %v1035 = vmul.f32 %v1030, %v1033
    %1037 = vrot.lane.b32.xlu0 %v1031, 32
    %v1038 = vpop.permute.xlu0 %1037
    %v1040 = vmul.f32 %v1030, %v1038
    %1042 = vrot.lane.b32.xlu0 %v1040, 32
    %v1043 = vpop.permute.xlu0 %1042
    %v1045 = vadd.f32 %v1035, %v1043
    %v1046 = vtanh.pop %v1045
    %1048 = vrot.lane.b32.xlu0 %v1046, 32
    %v1049 = vpop.permute.xlu0 %1048
    %v1051 = vmul.f32 %v1030, %v1049
    %v1052 = vmul.f32 %v1026, 0.5
    %v1053 = vtanh.pop %v1052
    %v1054 = vmul.f32 %v1053, 0.5
    %v1055 = vadd.f32 %v1054, 0.5
    %v1056 = vtanh.pop %v1026
    %v1058 = vrot.slane %v928, 2
    %v1060 = vmul.f32 %v1055, %v1058
    %1062 = vrot.lane.b32.xlu0 %v1056, 32
    %v1063 = vpop.permute.xlu0 %1062
    %v1065 = vmul.f32 %v1055, %v1063
    %1067 = vrot.lane.b32.xlu0 %v1065, 32
    %v1068 = vpop.permute.xlu0 %1067
    %v1070 = vadd.f32 %v1060, %v1068
    %v1071 = vtanh.pop %v1070
    %1073 = vrot.lane.b32.xlu0 %v1071, 32
    %v1074 = vpop.permute.xlu0 %1073
    %v1076 = vmul.f32 %v1055, %v1074
    %1078 = vrot.lane.b32.xlu0 %v1051, 64
    %v1079 = vpop.permute.xlu0 %1078
    %v1082 = vrot.slane %v1076, 2
    %1083 = vrot.lane.b32.xlu0 %v1082, 96
    %v1084 = vpop.permute.xlu0 %1083
    %v1086 = vsel %vm163, %v1079, %v1084
    %v1088 = vrot.slane %v1086, 2
    %v1089 = vsel %vm237, %v1088, 0
    %1091 = vmatprep.subr.mxu0 0.0
    %1092 = vmatpush1.msra.mxu0 0.0
    %1093 = vmatprep.subr.mxu0 0.0
    %1094 = vmatpush1.msra.mxu0 0.0
    %1095 = vmatprep.subr.mxu0 0.0
    %1096 = vmatpush1.msra.mxu0 0.0
    %1097 = vmatprep.subr.mxu0 0.0
    %1098 = vmatpush1.msra.mxu0 0.0
    %1099 = vmatprep.subr.mxu0 0.0
    %1100 = vmatpush1.msra.mxu0 0.0
    %1101 = vmatprep.subr.mxu0 0.0
    %1102 = vmatpush1.msra.mxu0 0.0
    %1103 = vmatprep.subr.mxu0 0.0
    %1104 = vmatpush1.msra.mxu0 0.0
    %1105 = vmatprep.subr.mxu0 0.0
    %1106 = vmatpush1.msra.mxu0 0.0
    %1107 = vmatprep.subr.mxu0 %v236
    %1108 = vmatpush1.msra.mxu0 %v235
    %1109 = vmatprep.subr.mxu0 %v234
    %1110 = vmatpush1.msra.mxu0 %v233
    %1111 = vmatprep.subr.mxu0 %v232
    %1112 = vmatpush1.msra.mxu0 %v231
    %1113 = vmatprep.subr.mxu0 %v230
    %1114 = vmatpush1.msra.mxu0 %v229
    %1115 = vmatprep.subr.mxu0 %v228
    %1116 = vmatpush1.msra.mxu0 %v227
    %1117 = vmatprep.subr.mxu0 %v226
    %1118 = vmatpush1.msra.mxu0 %v225
    %1119 = vmatprep.subr.mxu0 %v224
    %1120 = vmatpush1.msra.mxu0 %v223
    %1121 = vmatprep.subr.mxu0 %v222
    %1122 = vmatpush1.msra.mxu0 %v221
    %1123 = vmatprep.subr.mxu0 0.0
    %1124 = vmatpush2.msra.mxu0 0.0
    %1125 = vmatprep.subr.mxu0 0.0
    %1126 = vmatpush2.msra.mxu0 0.0
    %1127 = vmatprep.subr.mxu0 0.0
    %1128 = vmatpush2.msra.mxu0 0.0
    %1129 = vmatprep.subr.mxu0 0.0
    %1130 = vmatpush2.msra.mxu0 0.0
    %1131 = vmatprep.subr.mxu0 0.0
    %1132 = vmatpush2.msra.mxu0 0.0
    %1133 = vmatprep.subr.mxu0 0.0
    %1134 = vmatpush2.msra.mxu0 0.0
    %1135 = vmatprep.subr.mxu0 0.0
    %1136 = vmatpush2.msra.mxu0 0.0
    %1137 = vmatprep.subr.mxu0 0.0
    %1138 = vmatpush2.msra.mxu0 0.0
    %1139 = vmatprep.subr.mxu0 0.0
    %1140 = vmatpush2.msra.mxu0 0.0
    %1141 = vmatprep.subr.mxu0 0.0
    %1142 = vmatpush2.msra.mxu0 0.0
    %1143 = vmatprep.subr.mxu0 0.0
    %1144 = vmatpush2.msra.mxu0 0.0
    %1145 = vmatprep.subr.mxu0 0.0
    %1146 = vmatpush2.msra.mxu0 0.0
    %1147 = vmatprep.subr.mxu0 0.0
    %1148 = vmatpush2.msra.mxu0 0.0
    %1149 = vmatprep.subr.mxu0 0.0
    %1150 = vmatpush2.msra.mxu0 0.0
    %1151 = vmatprep.subr.mxu0 0.0
    %1152 = vmatpush2.msra.mxu0 0.0
    %1153 = vmatprep.subr.mxu0 0.0
    %1154 = vmatpush2.msra.mxu0 0.0
    %1155 = vmatprep.mubr.f32.mxu0 0.0
    %1156 = vmatmul.mubr.f32.gmra.mxu0 %v1089
    %v1157 = vpop.f32.mrf.mxu0
    %v1158 = vadd.f32 0.0, %v1157
    %v1159 = vpop.f32.mrf.mxu0
    %v1160 = vadd.f32 0.0, %v1159
    %1161 = vdwg.mxu0
    %v1163 = vrot.slane %v1158, 4
    %v1165 = vadd.f32 %v206, %v1163
    %v1167 = vrot.slane %v1160, 6
    %v1169 = vadd.f32 %v204, %v1167
    %v1170 = vmul.f32 %v1165, 0.5
    %v1171 = vtanh.pop %v1170
    %v1172 = vmul.f32 %v1171, 0.5
    %v1173 = vadd.f32 %v1172, 0.5
    %v1174 = vtanh.pop %v1165
    %v1176 = vrot.slane %v1045, 6
    %v1178 = vmul.f32 %v1173, %v1176
    %1180 = vrot.lane.b32.xlu0 %v1174, 32
    %v1181 = vpop.permute.xlu0 %1180
    %v1183 = vmul.f32 %v1173, %v1181
    %1185 = vrot.lane.b32.xlu0 %v1183, 32
    %v1186 = vpop.permute.xlu0 %1185
    %v1188 = vadd.f32 %v1178, %v1186
    %v1189 = vtanh.pop %v1188
    %1191 = vrot.lane.b32.xlu0 %v1189, 32
    %v1192 = vpop.permute.xlu0 %1191
    %v1194 = vmul.f32 %v1173, %v1192
    %v1195 = vmul.f32 %v1169, 0.5
    %v1196 = vtanh.pop %v1195
    %v1197 = vmul.f32 %v1196, 0.5
    %v1198 = vadd.f32 %v1197, 0.5
    %v1199 = vtanh.pop %v1169
    %v1201 = vrot.slane %v1070, 2
    %v1203 = vmul.f32 %v1198, %v1201
    %1205 = vrot.lane.b32.xlu0 %v1199, 32
    %v1206 = vpop.permute.xlu0 %1205
    %v1208 = vmul.f32 %v1198, %v1206
    %1210 = vrot.lane.b32.xlu0 %v1208, 32
    %v1211 = vpop.permute.xlu0 %1210
    %v1213 = vadd.f32 %v1203, %v1211
    %v1214 = vtanh.pop %v1213
    %1216 = vrot.lane.b32.xlu0 %v1214, 32
    %v1217 = vpop.permute.xlu0 %1216
    %v1219 = vmul.f32 %v1198, %v1217
    %1221 = vrot.lane.b32.xlu0 %v1194, 64
    %v1222 = vpop.permute.xlu0 %1221
    %v1225 = vrot.slane %v1219, 6
    %1226 = vrot.lane.b32.xlu0 %v1225, 96
    %v1227 = vpop.permute.xlu0 %1226
    %v1229 = vsel %vm163, %v1222, %v1227
    %v1231 = vrot.slane %v1229, 4
    %v1232 = vsel %vm237, %v1231, 0
    %1234 = vmatprep.subr.mxu0 0.0
    %1235 = vmatpush1.msra.mxu0 0.0
    %1236 = vmatprep.subr.mxu0 0.0
    %1237 = vmatpush1.msra.mxu0 0.0
    %1238 = vmatprep.subr.mxu0 0.0
    %1239 = vmatpush1.msra.mxu0 0.0
    %1240 = vmatprep.subr.mxu0 0.0
    %1241 = vmatpush1.msra.mxu0 0.0
    %1242 = vmatprep.subr.mxu0 0.0
    %1243 = vmatpush1.msra.mxu0 0.0
    %1244 = vmatprep.subr.mxu0 0.0
    %1245 = vmatpush1.msra.mxu0 0.0
    %1246 = vmatprep.subr.mxu0 0.0
    %1247 = vmatpush1.msra.mxu0 0.0
    %1248 = vmatprep.subr.mxu0 0.0
    %1249 = vmatpush1.msra.mxu0 0.0
    %1250 = vmatprep.subr.mxu0 %v236
    %1251 = vmatpush1.msra.mxu0 %v235
    %1252 = vmatprep.subr.mxu0 %v234
    %1253 = vmatpush1.msra.mxu0 %v233
    %1254 = vmatprep.subr.mxu0 %v232
    %1255 = vmatpush1.msra.mxu0 %v231
    %1256 = vmatprep.subr.mxu0 %v230
    %1257 = vmatpush1.msra.mxu0 %v229
    %1258 = vmatprep.subr.mxu0 %v228
    %1259 = vmatpush1.msra.mxu0 %v227
    %1260 = vmatprep.subr.mxu0 %v226
    %1261 = vmatpush1.msra.mxu0 %v225
    %1262 = vmatprep.subr.mxu0 %v224
    %1263 = vmatpush1.msra.mxu0 %v223
    %1264 = vmatprep.subr.mxu0 %v222
    %1265 = vmatpush1.msra.mxu0 %v221
    %1266 = vmatprep.subr.mxu0 0.0
    %1267 = vmatpush2.msra.mxu0 0.0
    %1268 = vmatprep.subr.mxu0 0.0
    %1269 = vmatpush2.msra.mxu0 0.0
    %1270 = vmatprep.subr.mxu0 0.0
    %1271 = vmatpush2.msra.mxu0 0.0
    %1272 = vmatprep.subr.mxu0 0.0
    %1273 = vmatpush2.msra.mxu0 0.0
    %1274 = vmatprep.subr.mxu0 0.0
    %1275 = vmatpush2.msra.mxu0 0.0
    %1276 = vmatprep.subr.mxu0 0.0
    %1277 = vmatpush2.msra.mxu0 0.0
    %1278 = vmatprep.subr.mxu0 0.0
    %1279 = vmatpush2.msra.mxu0 0.0
    %1280 = vmatprep.subr.mxu0 0.0
    %1281 = vmatpush2.msra.mxu0 0.0
    %1282 = vmatprep.subr.mxu0 0.0
    %1283 = vmatpush2.msra.mxu0 0.0
    %1284 = vmatprep.subr.mxu0 0.0
    %1285 = vmatpush2.msra.mxu0 0.0
    %1286 = vmatprep.subr.mxu0 0.0
    %1287 = vmatpush2.msra.mxu0 0.0
    %1288 = vmatprep.subr.mxu0 0.0
    %1289 = vmatpush2.msra.mxu0 0.0
    %1290 = vmatprep.subr.mxu0 0.0
    %1291 = vmatpush2.msra.mxu0 0.0
    %1292 = vmatprep.subr.mxu0 0.0
    %1293 = vmatpush2.msra.mxu0 0.0
    %1294 = vmatprep.subr.mxu0 0.0
    %1295 = vmatpush2.msra.mxu0 0.0
    %1296 = vmatprep.subr.mxu0 0.0
    %1297 = vmatpush2.msra.mxu0 0.0
    %1298 = vmatprep.mubr.f32.mxu0 0.0
    %1299 = vmatmul.mubr.f32.gmra.mxu0 %v1232
    %v1300 = vpop.f32.mrf.mxu0
    %v1301 = vadd.f32 0.0, %v1300
    %v1302 = vpop.f32.mrf.mxu0
    %v1303 = vadd.f32 0.0, %v1302
    %1304 = vdwg.mxu0
    %v1306 = vrot.slane %v1301, 2
    %v1308 = vadd.f32 %v206, %v1306
    %v1309 = vadd.f32 %v204, %v1303
    %v1310 = vmul.f32 %v1308, 0.5
    %v1311 = vtanh.pop %v1310
    %v1312 = vmul.f32 %v1311, 0.5
    %v1313 = vadd.f32 %v1312, 0.5
    %v1314 = vtanh.pop %v1308
    %v1316 = vrot.slane %v1188, 6
    %v1318 = vmul.f32 %v1313, %v1316
    %1320 = vrot.lane.b32.xlu0 %v1314, 32
    %v1321 = vpop.permute.xlu0 %1320
    %v1323 = vmul.f32 %v1313, %v1321
    %1325 = vrot.lane.b32.xlu0 %v1323, 32
    %v1326 = vpop.permute.xlu0 %1325
    %v1328 = vadd.f32 %v1318, %v1326
    %v1329 = vtanh.pop %v1328
    %1331 = vrot.lane.b32.xlu0 %v1329, 32
    %v1332 = vpop.permute.xlu0 %1331
    %v1334 = vmul.f32 %v1313, %v1332
    %v1335 = vmul.f32 %v1309, 0.5
    %v1336 = vtanh.pop %v1335
    %v1337 = vmul.f32 %v1336, 0.5
    %v1338 = vadd.f32 %v1337, 0.5
    %v1339 = vtanh.pop %v1309
    %v1341 = vrot.slane %v1213, 2
    %v1343 = vmul.f32 %v1338, %v1341
    %1345 = vrot.lane.b32.xlu0 %v1339, 32
    %v1346 = vpop.permute.xlu0 %1345
    %v1348 = vmul.f32 %v1338, %v1346
    %1350 = vrot.lane.b32.xlu0 %v1348, 32
    %v1351 = vpop.permute.xlu0 %1350
    %v1353 = vadd.f32 %v1343, %v1351
    %v1354 = vtanh.pop %v1353
    %1356 = vrot.lane.b32.xlu0 %v1354, 32
    %v1357 = vpop.permute.xlu0 %1356
    %v1359 = vmul.f32 %v1338, %v1357
    %1361 = vrot.lane.b32.xlu0 %v1359, 96
    %v1362 = vpop.permute.xlu0 %1361
    %v1364 = vsel %vm163, %v372, %v1362
    %1365 = vrot.lane.b32.xlu0 %v1219, 96
    %v1366 = vpop.permute.xlu0 %1365
    %v1368 = vsel %vm163, %v514, %v1366
    %1369 = vrot.lane.b32.xlu0 %v1076, 96
    %v1370 = vpop.permute.xlu0 %1369
    %v1372 = vsel %vm163, %v657, %v1370
    %1373 = vrot.lane.b32.xlu0 %v934, 96
    %v1374 = vpop.permute.xlu0 %1373
    %v1376 = vsel %vm163, %v797, %v1374
    %1377 = vrot.lane.b32.xlu0 %v794, 96
    %v1378 = vpop.permute.xlu0 %1377
    %v1380 = vsel %vm163, %v937, %v1378
    %1381 = vrot.lane.b32.xlu0 %v654, 96
    %v1382 = vpop.permute.xlu0 %1381
    %v1384 = vsel %vm163, %v1079, %v1382
    %1385 = vrot.lane.b32.xlu0 %v511, 96
    %v1386 = vpop.permute.xlu0 %1385
    %v1388 = vsel %vm163, %v1222, %v1386
    %1390 = vrot.lane.b32.xlu0 %v1334, 64
    %v1391 = vpop.permute.xlu0 %1390
    %1393 = vrot.lane.b32.xlu0 %v369, 96
    %v1394 = vpop.permute.xlu0 %1393
    %v1396 = vsel %vm163, %v1391, %v1394
    %vm1397 = vcmask 1041408
    %v1398 = vsel %vm1397, %v1364, %v1368
    %vm1399 = vcmask 1043456
    %v1400 = vsel %vm1399, %v1398, %v1372
    %vm1401 = vcmask 1045504
    %v1402 = vsel %vm1401, %v1400, %v1376
    %v1403 = vsel %vm1397, %v1380, %v1384
    %v1404 = vsel %vm1399, %v1403, %v1388
    %v1405 = vsel %vm1401, %v1404, %v1396
    %v1406 = vpack.c.bf16 %v1405, %v1402
    %v1407 = vld [vmem:[#allocation2] sm:$0xff]
    %v1408 = vld [vmem:[#allocation2 + $0x8] sm:$0xff]
    %v1409 = vld [vmem:[#allocation2 + $0x10] sm:$0xff]
    %v1410 = vld [vmem:[#allocation2 + $0x18] sm:$0xff]
    %v1411 = vld [vmem:[#allocation2 + $0x20] sm:$0xff]
    %v1412 = vld [vmem:[#allocation2 + $0x28] sm:$0xff]
    %v1413 = vld [vmem:[#allocation2 + $0x30] sm:$0xff]
    %v1414 = vld [vmem:[#allocation2 + $0x38] sm:$0xff]
    %v1415 = vld [vmem:[#allocation2 + $0x40] sm:$0xff]
    %v1416 = vld [vmem:[#allocation2 + $0x48] sm:$0xff]
    %v1417 = vld [vmem:[#allocation2 + $0x50] sm:$0xff]
    %v1418 = vld [vmem:[#allocation2 + $0x58] sm:$0xff]
    %v1419 = vld [vmem:[#allocation2 + $0x60] sm:$0xff]
    %v1420 = vld [vmem:[#allocation2 + $0x68] sm:$0xff]
    %v1421 = vld [vmem:[#allocation2 + $0x70] sm:$0xff]
    %v1422 = vld [vmem:[#allocation2 + $0x78] sm:$0xff]
    %v1423 = vpack.c.bf16 %v1409, %v1407
    %v1424 = vpack.c.bf16 %v1410, %v1408
    %v1425 = vpack.c.bf16 %v1413, %v1411
    %v1426 = vpack.c.bf16 %v1414, %v1412
    %v1427 = vpack.c.bf16 %v1417, %v1415
    %v1428 = vpack.c.bf16 %v1418, %v1416
    %v1429 = vpack.c.bf16 %v1421, %v1419
    %v1430 = vpack.c.bf16 %v1422, %v1420
    %v1431 = vld [vmem:[%s10] sm:$0x3]
    %v1433 = vlaneseq
    %v1434 = vshrl.u32 %v1433, 7
    %v1435 = vsub.s32 0, %v1434
    %v1436 = vrot.slane %v1431, %v1435
    %v1437 = vlaneseq
    %v1438 = vshrl.u32 %v1437, 7
    %v1439 = vsub.s32 1, %v1438
    %v1440 = vrot.slane %v1431, %v1439
    %v1444 = vsel %vm237, %v1406, 0
    %1446 = vmatprep.subr.bf16.mxu0 0
    %1447 = vmatpush1.bf16.msra.mxu0 0
    %1448 = vmatprep.subr.bf16.mxu0 0
    %1449 = vmatpush1.bf16.msra.mxu0 0
    %1450 = vmatprep.subr.bf16.mxu0 0
    %1451 = vmatpush1.bf16.msra.mxu0 0
    %1452 = vmatprep.subr.bf16.mxu0 0
    %1453 = vmatpush1.bf16.msra.mxu0 0
    %1454 = vmatprep.subr.bf16.mxu0 %v1430
    %1455 = vmatpush1.bf16.msra.mxu0 %v1429
    %1456 = vmatprep.subr.bf16.mxu0 %v1428
    %1457 = vmatpush1.bf16.msra.mxu0 %v1427
    %1458 = vmatprep.subr.bf16.mxu0 %v1426
    %1459 = vmatpush1.bf16.msra.mxu0 %v1425
    %1460 = vmatprep.subr.bf16.mxu0 %v1424
    %1461 = vmatpush1.bf16.msra.mxu0 %v1423
    %1462 = vmatprep.subr.bf16.mxu0 0
    %1463 = vmatpush2.bf16.msra.mxu0 0
    %1464 = vmatprep.subr.bf16.mxu0 0
    %1465 = vmatpush2.bf16.msra.mxu0 0
    %1466 = vmatprep.subr.bf16.mxu0 0
    %1467 = vmatpush2.bf16.msra.mxu0 0
    %1468 = vmatprep.subr.bf16.mxu0 0
    %1469 = vmatpush2.bf16.msra.mxu0 0
    %1470 = vmatprep.subr.bf16.mxu0 0
    %1471 = vmatpush2.bf16.msra.mxu0 0
    %1472 = vmatprep.subr.bf16.mxu0 0
    %1473 = vmatpush2.bf16.msra.mxu0 0
    %1474 = vmatprep.subr.bf16.mxu0 0
    %1475 = vmatpush2.bf16.msra.mxu0 0
    %1476 = vmatprep.subr.bf16.mxu0 0
    %1477 = vmatpush2.bf16.msra.mxu0 0
    %1478 = vmatprep.mubr.bf16.mxu0 0
    %1479 = vmatmul.mubr.bf16.gmra.mxu0 %v1444
    %v1480 = vpop.f32.mrf.mxu0
    %v1481 = vadd.f32 %v1436, %v1480
    %v1482 = vpop.f32.mrf.mxu0
    %v1483 = vadd.f32 %v1440, %v1482
    %v1484 = vpop.f32.mrf.mxu0
    %v1485 = vadd.f32 %v1436, %v1484
    %v1486 = vpop.f32.mrf.mxu0
    %v1487 = vadd.f32 %v1440, %v1486
    %1488 = vdwg.mxu0
    %s1489 = scalar_lea.vmem %s1, 4
    %v1490 = vld [vmem:[%s1489] sm:$0x3]
    %s1491 = scalar_lea.vmem %s1, 6
    %v1492 = vld [vmem:[%s1491] sm:$0x3]
    %1494 = vrot.lane.b32.xlu0 %v1492, 32
    %v1495 = vpop.permute.xlu0 %1494
    %v1497 = vsel %vm163, %v1490, %v1495
    %s1498 = scalar_lea.vmem %s2, 4
    %v1499 = vld [vmem:[%s1498] sm:$0x3]
    %s1500 = scalar_lea.vmem %s2, 6
    %v1501 = vld [vmem:[%s1500] sm:$0x3]
    %v1502 = vld [vmem:[#allocation5] sm:$0xff]
    %v1503 = vld [vmem:[#allocation5 + $0x8] sm:$0xff]
    %v1504 = vld [vmem:[#allocation5 + $0x10] sm:$0xff]
    %v1505 = vld [vmem:[#allocation5 + $0x18] sm:$0xff]
    %v1506 = vld [vmem:[#allocation5 + $0x20] sm:$0xff]
    %v1507 = vld [vmem:[#allocation5 + $0x28] sm:$0xff]
    %v1508 = vld [vmem:[#allocation5 + $0x30] sm:$0xff]
    %v1509 = vld [vmem:[#allocation5 + $0x38] sm:$0xff]
    %v1510 = vld [vmem:[#allocation5 + $0x40] sm:$0xff]
    %v1511 = vld [vmem:[#allocation5 + $0x48] sm:$0xff]
    %v1512 = vld [vmem:[#allocation5 + $0x50] sm:$0xff]
    %v1513 = vld [vmem:[#allocation5 + $0x58] sm:$0xff]
    %v1514 = vld [vmem:[#allocation5 + $0x60] sm:$0xff]
    %v1515 = vld [vmem:[#allocation5 + $0x68] sm:$0xff]
    %v1516 = vld [vmem:[#allocation5 + $0x70] sm:$0xff]
    %v1517 = vld [vmem:[#allocation5 + $0x78] sm:$0xff]
    %v1519 = vsel %vm237, %v1497, 0
    %1521 = vmatprep.subr.mxu0 0.0
    %1522 = vmatpush1.msra.mxu0 0.0
    %1523 = vmatprep.subr.mxu0 0.0
    %1524 = vmatpush1.msra.mxu0 0.0
    %1525 = vmatprep.subr.mxu0 0.0
    %1526 = vmatpush1.msra.mxu0 0.0
    %1527 = vmatprep.subr.mxu0 0.0
    %1528 = vmatpush1.msra.mxu0 0.0
    %1529 = vmatprep.subr.mxu0 0.0
    %1530 = vmatpush1.msra.mxu0 0.0
    %1531 = vmatprep.subr.mxu0 0.0
    %1532 = vmatpush1.msra.mxu0 0.0
    %1533 = vmatprep.subr.mxu0 0.0
    %1534 = vmatpush1.msra.mxu0 0.0
    %1535 = vmatprep.subr.mxu0 0.0
    %1536 = vmatpush1.msra.mxu0 0.0
    %1537 = vmatprep.subr.mxu0 %v1517
    %1538 = vmatpush1.msra.mxu0 %v1516
    %1539 = vmatprep.subr.mxu0 %v1515
    %1540 = vmatpush1.msra.mxu0 %v1514
    %1541 = vmatprep.subr.mxu0 %v1513
    %1542 = vmatpush1.msra.mxu0 %v1512
    %1543 = vmatprep.subr.mxu0 %v1511
    %1544 = vmatpush1.msra.mxu0 %v1510
    %1545 = vmatprep.subr.mxu0 %v1509
    %1546 = vmatpush1.msra.mxu0 %v1508
    %1547 = vmatprep.subr.mxu0 %v1507
    %1548 = vmatpush1.msra.mxu0 %v1506
    %1549 = vmatprep.subr.mxu0 %v1505
    %1550 = vmatpush1.msra.mxu0 %v1504
    %1551 = vmatprep.subr.mxu0 %v1503
    %1552 = vmatpush1.msra.mxu0 %v1502
    %1553 = vmatprep.subr.mxu0 0.0
    %1554 = vmatpush2.msra.mxu0 0.0
    %1555 = vmatprep.subr.mxu0 0.0
    %1556 = vmatpush2.msra.mxu0 0.0
    %1557 = vmatprep.subr.mxu0 0.0
    %1558 = vmatpush2.msra.mxu0 0.0
    %1559 = vmatprep.subr.mxu0 0.0
    %1560 = vmatpush2.msra.mxu0 0.0
    %1561 = vmatprep.subr.mxu0 0.0
    %1562 = vmatpush2.msra.mxu0 0.0
    %1563 = vmatprep.subr.mxu0 0.0
    %1564 = vmatpush2.msra.mxu0 0.0
    %1565 = vmatprep.subr.mxu0 0.0
    %1566 = vmatpush2.msra.mxu0 0.0
    %1567 = vmatprep.subr.mxu0 0.0
    %1568 = vmatpush2.msra.mxu0 0.0
    %1569 = vmatprep.subr.mxu0 0.0
    %1570 = vmatpush2.msra.mxu0 0.0
    %1571 = vmatprep.subr.mxu0 0.0
    %1572 = vmatpush2.msra.mxu0 0.0
    %1573 = vmatprep.subr.mxu0 0.0
    %1574 = vmatpush2.msra.mxu0 0.0
    %1575 = vmatprep.subr.mxu0 0.0
    %1576 = vmatpush2.msra.mxu0 0.0
    %1577 = vmatprep.subr.mxu0 0.0
    %1578 = vmatpush2.msra.mxu0 0.0
    %1579 = vmatprep.subr.mxu0 0.0
    %1580 = vmatpush2.msra.mxu0 0.0
    %1581 = vmatprep.subr.mxu0 0.0
    %1582 = vmatpush2.msra.mxu0 0.0
    %1583 = vmatprep.subr.mxu0 0.0
    %1584 = vmatpush2.msra.mxu0 0.0
    %1585 = vmatprep.mubr.f32.mxu0 0.0
    %1586 = vmatmul.mubr.f32.gmra.mxu0 %v1519
    %v1587 = vpop.f32.mrf.mxu0
    %v1588 = vadd.f32 0.0, %v1587
    %v1589 = vpop.f32.mrf.mxu0
    %v1590 = vadd.f32 0.0, %v1589
    %1591 = vdwg.mxu0
    %v1592 = vadd.f32 %v1481, %v1588
    %v1594 = vrot.slane %v1590, 2
    %v1596 = vadd.f32 %v1487, %v1594
    %v1597 = vmul.f32 %v1592, 0.5
    %v1598 = vtanh.pop %v1597
    %v1599 = vmul.f32 %v1598, 0.5
    %v1600 = vadd.f32 %v1599, 0.5
    %v1601 = vtanh.pop %v1592
    %1603 = vrot.lane.b32.xlu0 %v1499, 32
    %v1604 = vpop.permute.xlu0 %1603
    %v1606 = vmul.f32 %v1600, %v1604
    %1608 = vrot.lane.b32.xlu0 %v1601, 32
    %v1609 = vpop.permute.xlu0 %1608
    %v1611 = vmul.f32 %v1600, %v1609
    %1613 = vrot.lane.b32.xlu0 %v1611, 32
    %v1614 = vpop.permute.xlu0 %1613
    %v1616 = vadd.f32 %v1606, %v1614
    %v1617 = vtanh.pop %v1616
    %1619 = vrot.lane.b32.xlu0 %v1617, 32
    %v1620 = vpop.permute.xlu0 %1619
    %v1622 = vmul.f32 %v1600, %v1620
    %v1623 = vmul.f32 %v1596, 0.5
    %v1624 = vtanh.pop %v1623
    %v1625 = vmul.f32 %v1624, 0.5
    %v1626 = vadd.f32 %v1625, 0.5
    %v1627 = vtanh.pop %v1596
    %v1629 = vrot.slane %v1501, 2
    %1630 = vrot.lane.b32.xlu0 %v1629, 32
    %v1631 = vpop.permute.xlu0 %1630
    %v1633 = vmul.f32 %v1626, %v1631
    %1635 = vrot.lane.b32.xlu0 %v1627, 32
    %v1636 = vpop.permute.xlu0 %1635
    %v1638 = vmul.f32 %v1626, %v1636
    %1640 = vrot.lane.b32.xlu0 %v1638, 32
    %v1641 = vpop.permute.xlu0 %1640
    %v1643 = vadd.f32 %v1633, %v1641
    %v1644 = vtanh.pop %v1643
    %1646 = vrot.lane.b32.xlu0 %v1644, 32
    %v1647 = vpop.permute.xlu0 %1646
    %v1649 = vmul.f32 %v1626, %v1647
    %1651 = vrot.lane.b32.xlu0 %v1622, 64
    %v1652 = vpop.permute.xlu0 %1651
    %v1655 = vrot.slane %v1649, 6
    %1656 = vrot.lane.b32.xlu0 %v1655, 96
    %v1657 = vpop.permute.xlu0 %1656
    %v1659 = vsel %vm163, %v1652, %v1657
    %v1661 = vsel %vm237, %v1659, 0
    %1663 = vmatprep.subr.mxu0 0.0
    %1664 = vmatpush1.msra.mxu0 0.0
    %1665 = vmatprep.subr.mxu0 0.0
    %1666 = vmatpush1.msra.mxu0 0.0
    %1667 = vmatprep.subr.mxu0 0.0
    %1668 = vmatpush1.msra.mxu0 0.0
    %1669 = vmatprep.subr.mxu0 0.0
    %1670 = vmatpush1.msra.mxu0 0.0
    %1671 = vmatprep.subr.mxu0 0.0
    %1672 = vmatpush1.msra.mxu0 0.0
    %1673 = vmatprep.subr.mxu0 0.0
    %1674 = vmatpush1.msra.mxu0 0.0
    %1675 = vmatprep.subr.mxu0 0.0
    %1676 = vmatpush1.msra.mxu0 0.0
    %1677 = vmatprep.subr.mxu0 0.0
    %1678 = vmatpush1.msra.mxu0 0.0
    %1679 = vmatprep.subr.mxu0 %v1517
    %1680 = vmatpush1.msra.mxu0 %v1516
    %1681 = vmatprep.subr.mxu0 %v1515
    %1682 = vmatpush1.msra.mxu0 %v1514
    %1683 = vmatprep.subr.mxu0 %v1513
    %1684 = vmatpush1.msra.mxu0 %v1512
    %1685 = vmatprep.subr.mxu0 %v1511
    %1686 = vmatpush1.msra.mxu0 %v1510
    %1687 = vmatprep.subr.mxu0 %v1509
    %1688 = vmatpush1.msra.mxu0 %v1508
    %1689 = vmatprep.subr.mxu0 %v1507
    %1690 = vmatpush1.msra.mxu0 %v1506
    %1691 = vmatprep.subr.mxu0 %v1505
    %1692 = vmatpush1.msra.mxu0 %v1504
    %1693 = vmatprep.subr.mxu0 %v1503
    %1694 = vmatpush1.msra.mxu0 %v1502
    %1695 = vmatprep.subr.mxu0 0.0
    %1696 = vmatpush2.msra.mxu0 0.0
    %1697 = vmatprep.subr.mxu0 0.0
    %1698 = vmatpush2.msra.mxu0 0.0
    %1699 = vmatprep.subr.mxu0 0.0
    %1700 = vmatpush2.msra.mxu0 0.0
    %1701 = vmatprep.subr.mxu0 0.0
    %1702 = vmatpush2.msra.mxu0 0.0
    %1703 = vmatprep.subr.mxu0 0.0
    %1704 = vmatpush2.msra.mxu0 0.0
    %1705 = vmatprep.subr.mxu0 0.0
    %1706 = vmatpush2.msra.mxu0 0.0
    %1707 = vmatprep.subr.mxu0 0.0
    %1708 = vmatpush2.msra.mxu0 0.0
    %1709 = vmatprep.subr.mxu0 0.0
    %1710 = vmatpush2.msra.mxu0 0.0
    %1711 = vmatprep.subr.mxu0 0.0
    %1712 = vmatpush2.msra.mxu0 0.0
    %1713 = vmatprep.subr.mxu0 0.0
    %1714 = vmatpush2.msra.mxu0 0.0
    %1715 = vmatprep.subr.mxu0 0.0
    %1716 = vmatpush2.msra.mxu0 0.0
    %1717 = vmatprep.subr.mxu0 0.0
    %1718 = vmatpush2.msra.mxu0 0.0
    %1719 = vmatprep.subr.mxu0 0.0
    %1720 = vmatpush2.msra.mxu0 0.0
    %1721 = vmatprep.subr.mxu0 0.0
    %1722 = vmatpush2.msra.mxu0 0.0
    %1723 = vmatprep.subr.mxu0 0.0
    %1724 = vmatpush2.msra.mxu0 0.0
    %1725 = vmatprep.subr.mxu0 0.0
    %1726 = vmatpush2.msra.mxu0 0.0
    %1727 = vmatprep.mubr.f32.mxu0 0.0
    %1728 = vmatmul.mubr.f32.gmra.mxu0 %v1661
    %v1729 = vpop.f32.mrf.mxu0
    %v1730 = vadd.f32 0.0, %v1729
    %v1731 = vpop.f32.mrf.mxu0
    %v1732 = vadd.f32 0.0, %v1731
    %1733 = vdwg.mxu0
    %v1735 = vrot.slane %v1730, 6
    %v1737 = vadd.f32 %v1481, %v1735
    %v1739 = vrot.slane %v1732, 4
    %v1741 = vadd.f32 %v1487, %v1739
    %v1742 = vmul.f32 %v1737, 0.5
    %v1743 = vtanh.pop %v1742
    %v1744 = vmul.f32 %v1743, 0.5
    %v1745 = vadd.f32 %v1744, 0.5
    %v1746 = vtanh.pop %v1737
    %v1748 = vrot.slane %v1616, 6
    %v1750 = vmul.f32 %v1745, %v1748
    %1752 = vrot.lane.b32.xlu0 %v1746, 32
    %v1753 = vpop.permute.xlu0 %1752
    %v1755 = vmul.f32 %v1745, %v1753
    %1757 = vrot.lane.b32.xlu0 %v1755, 32
    %v1758 = vpop.permute.xlu0 %1757
    %v1760 = vadd.f32 %v1750, %v1758
    %v1761 = vtanh.pop %v1760
    %1763 = vrot.lane.b32.xlu0 %v1761, 32
    %v1764 = vpop.permute.xlu0 %1763
    %v1766 = vmul.f32 %v1745, %v1764
    %v1767 = vmul.f32 %v1741, 0.5
    %v1768 = vtanh.pop %v1767
    %v1769 = vmul.f32 %v1768, 0.5
    %v1770 = vadd.f32 %v1769, 0.5
    %v1771 = vtanh.pop %v1741
    %v1773 = vrot.slane %v1643, 2
    %v1775 = vmul.f32 %v1770, %v1773
    %1777 = vrot.lane.b32.xlu0 %v1771, 32
    %v1778 = vpop.permute.xlu0 %1777
    %v1780 = vmul.f32 %v1770, %v1778
    %1782 = vrot.lane.b32.xlu0 %v1780, 32
    %v1783 = vpop.permute.xlu0 %1782
    %v1785 = vadd.f32 %v1775, %v1783
    %v1786 = vtanh.pop %v1785
    %1788 = vrot.lane.b32.xlu0 %v1786, 32
    %v1789 = vpop.permute.xlu0 %1788
    %v1791 = vmul.f32 %v1770, %v1789
    %1793 = vrot.lane.b32.xlu0 %v1766, 64
    %v1794 = vpop.permute.xlu0 %1793
    %v1797 = vrot.slane %v1791, 2
    %1798 = vrot.lane.b32.xlu0 %v1797, 96
    %v1799 = vpop.permute.xlu0 %1798
    %v1801 = vsel %vm163, %v1794, %v1799
    %v1803 = vrot.slane %v1801, 2
    %v1804 = vsel %vm237, %v1803, 0
    %1806 = vmatprep.subr.mxu0 0.0
    %1807 = vmatpush1.msra.mxu0 0.0
    %1808 = vmatprep.subr.mxu0 0.0
    %1809 = vmatpush1.msra.mxu0 0.0
    %1810 = vmatprep.subr.mxu0 0.0
    %1811 = vmatpush1.msra.mxu0 0.0
    %1812 = vmatprep.subr.mxu0 0.0
    %1813 = vmatpush1.msra.mxu0 0.0
    %1814 = vmatprep.subr.mxu0 0.0
    %1815 = vmatpush1.msra.mxu0 0.0
    %1816 = vmatprep.subr.mxu0 0.0
    %1817 = vmatpush1.msra.mxu0 0.0
    %1818 = vmatprep.subr.mxu0 0.0
    %1819 = vmatpush1.msra.mxu0 0.0
    %1820 = vmatprep.subr.mxu0 0.0
    %1821 = vmatpush1.msra.mxu0 0.0
    %1822 = vmatprep.subr.mxu0 %v1517
    %1823 = vmatpush1.msra.mxu0 %v1516
    %1824 = vmatprep.subr.mxu0 %v1515
    %1825 = vmatpush1.msra.mxu0 %v1514
    %1826 = vmatprep.subr.mxu0 %v1513
    %1827 = vmatpush1.msra.mxu0 %v1512
    %1828 = vmatprep.subr.mxu0 %v1511
    %1829 = vmatpush1.msra.mxu0 %v1510
    %1830 = vmatprep.subr.mxu0 %v1509
    %1831 = vmatpush1.msra.mxu0 %v1508
    %1832 = vmatprep.subr.mxu0 %v1507
    %1833 = vmatpush1.msra.mxu0 %v1506
    %1834 = vmatprep.subr.mxu0 %v1505
    %1835 = vmatpush1.msra.mxu0 %v1504
    %1836 = vmatprep.subr.mxu0 %v1503
    %1837 = vmatpush1.msra.mxu0 %v1502
    %1838 = vmatprep.subr.mxu0 0.0
    %1839 = vmatpush2.msra.mxu0 0.0
    %1840 = vmatprep.subr.mxu0 0.0
    %1841 = vmatpush2.msra.mxu0 0.0
    %1842 = vmatprep.subr.mxu0 0.0
    %1843 = vmatpush2.msra.mxu0 0.0
    %1844 = vmatprep.subr.mxu0 0.0
    %1845 = vmatpush2.msra.mxu0 0.0
    %1846 = vmatprep.subr.mxu0 0.0
    %1847 = vmatpush2.msra.mxu0 0.0
    %1848 = vmatprep.subr.mxu0 0.0
    %1849 = vmatpush2.msra.mxu0 0.0
    %1850 = vmatprep.subr.mxu0 0.0
    %1851 = vmatpush2.msra.mxu0 0.0
    %1852 = vmatprep.subr.mxu0 0.0
    %1853 = vmatpush2.msra.mxu0 0.0
    %1854 = vmatprep.subr.mxu0 0.0
    %1855 = vmatpush2.msra.mxu0 0.0
    %1856 = vmatprep.subr.mxu0 0.0
    %1857 = vmatpush2.msra.mxu0 0.0
    %1858 = vmatprep.subr.mxu0 0.0
    %1859 = vmatpush2.msra.mxu0 0.0
    %1860 = vmatprep.subr.mxu0 0.0
    %1861 = vmatpush2.msra.mxu0 0.0
    %1862 = vmatprep.subr.mxu0 0.0
    %1863 = vmatpush2.msra.mxu0 0.0
    %1864 = vmatprep.subr.mxu0 0.0
    %1865 = vmatpush2.msra.mxu0 0.0
    %1866 = vmatprep.subr.mxu0 0.0
    %1867 = vmatpush2.msra.mxu0 0.0
    %1868 = vmatprep.subr.mxu0 0.0
    %1869 = vmatpush2.msra.mxu0 0.0
    %1870 = vmatprep.mubr.f32.mxu0 0.0
    %1871 = vmatmul.mubr.f32.gmra.mxu0 %v1804
    %v1872 = vpop.f32.mrf.mxu0
    %v1873 = vadd.f32 0.0, %v1872
    %v1874 = vpop.f32.mrf.mxu0
    %v1875 = vadd.f32 0.0, %v1874
    %1876 = vdwg.mxu0
    %v1878 = vrot.slane %v1873, 4
    %v1880 = vadd.f32 %v1481, %v1878
    %v1882 = vrot.slane %v1875, 6
    %v1884 = vadd.f32 %v1487, %v1882
    %v1885 = vmul.f32 %v1880, 0.5
    %v1886 = vtanh.pop %v1885
    %v1887 = vmul.f32 %v1886, 0.5
    %v1888 = vadd.f32 %v1887, 0.5
    %v1889 = vtanh.pop %v1880
    %v1891 = vrot.slane %v1760, 6
    %v1893 = vmul.f32 %v1888, %v1891
    %1895 = vrot.lane.b32.xlu0 %v1889, 32
    %v1896 = vpop.permute.xlu0 %1895
    %v1898 = vmul.f32 %v1888, %v1896
    %1900 = vrot.lane.b32.xlu0 %v1898, 32
    %v1901 = vpop.permute.xlu0 %1900
    %v1903 = vadd.f32 %v1893, %v1901
    %v1904 = vtanh.pop %v1903
    %1906 = vrot.lane.b32.xlu0 %v1904, 32
    %v1907 = vpop.permute.xlu0 %1906
    %v1909 = vmul.f32 %v1888, %v1907
    %v1910 = vmul.f32 %v1884, 0.5
    %v1911 = vtanh.pop %v1910
    %v1912 = vmul.f32 %v1911, 0.5
    %v1913 = vadd.f32 %v1912, 0.5
    %v1914 = vtanh.pop %v1884
    %v1916 = vrot.slane %v1785, 2
    %v1918 = vmul.f32 %v1913, %v1916
    %1920 = vrot.lane.b32.xlu0 %v1914, 32
    %v1921 = vpop.permute.xlu0 %1920
    %v1923 = vmul.f32 %v1913, %v1921
    %1925 = vrot.lane.b32.xlu0 %v1923, 32
    %v1926 = vpop.permute.xlu0 %1925
    %v1928 = vadd.f32 %v1918, %v1926
    %v1929 = vtanh.pop %v1928
    %1931 = vrot.lane.b32.xlu0 %v1929, 32
    %v1932 = vpop.permute.xlu0 %1931
    %v1934 = vmul.f32 %v1913, %v1932
    %1936 = vrot.lane.b32.xlu0 %v1909, 64
    %v1937 = vpop.permute.xlu0 %1936
    %v1940 = vrot.slane %v1934, 6
    %1941 = vrot.lane.b32.xlu0 %v1940, 96
    %v1942 = vpop.permute.xlu0 %1941
    %v1944 = vsel %vm163, %v1937, %v1942
    %v1946 = vrot.slane %v1944, 4
    %v1947 = vsel %vm237, %v1946, 0
    %1949 = vmatprep.subr.mxu0 0.0
    %1950 = vmatpush1.msra.mxu0 0.0
    %1951 = vmatprep.subr.mxu0 0.0
    %1952 = vmatpush1.msra.mxu0 0.0
    %1953 = vmatprep.subr.mxu0 0.0
    %1954 = vmatpush1.msra.mxu0 0.0
    %1955 = vmatprep.subr.mxu0 0.0
    %1956 = vmatpush1.msra.mxu0 0.0
    %1957 = vmatprep.subr.mxu0 0.0
    %1958 = vmatpush1.msra.mxu0 0.0
    %1959 = vmatprep.subr.mxu0 0.0
    %1960 = vmatpush1.msra.mxu0 0.0
    %1961 = vmatprep.subr.mxu0 0.0
    %1962 = vmatpush1.msra.mxu0 0.0
    %1963 = vmatprep.subr.mxu0 0.0
    %1964 = vmatpush1.msra.mxu0 0.0
    %1965 = vmatprep.subr.mxu0 %v1517
    %1966 = vmatpush1.msra.mxu0 %v1516
    %1967 = vmatprep.subr.mxu0 %v1515
    %1968 = vmatpush1.msra.mxu0 %v1514
    %1969 = vmatprep.subr.mxu0 %v1513
    %1970 = vmatpush1.msra.mxu0 %v1512
    %1971 = vmatprep.subr.mxu0 %v1511
    %1972 = vmatpush1.msra.mxu0 %v1510
    %1973 = vmatprep.subr.mxu0 %v1509
    %1974 = vmatpush1.msra.mxu0 %v1508
    %1975 = vmatprep.subr.mxu0 %v1507
    %1976 = vmatpush1.msra.mxu0 %v1506
    %1977 = vmatprep.subr.mxu0 %v1505
    %1978 = vmatpush1.msra.mxu0 %v1504
    %1979 = vmatprep.subr.mxu0 %v1503
    %1980 = vmatpush1.msra.mxu0 %v1502
    %1981 = vmatprep.subr.mxu0 0.0
    %1982 = vmatpush2.msra.mxu0 0.0
    %1983 = vmatprep.subr.mxu0 0.0
    %1984 = vmatpush2.msra.mxu0 0.0
    %1985 = vmatprep.subr.mxu0 0.0
    %1986 = vmatpush2.msra.mxu0 0.0
    %1987 = vmatprep.subr.mxu0 0.0
    %1988 = vmatpush2.msra.mxu0 0.0
    %1989 = vmatprep.subr.mxu0 0.0
    %1990 = vmatpush2.msra.mxu0 0.0
    %1991 = vmatprep.subr.mxu0 0.0
    %1992 = vmatpush2.msra.mxu0 0.0
    %1993 = vmatprep.subr.mxu0 0.0
    %1994 = vmatpush2.msra.mxu0 0.0
    %1995 = vmatprep.subr.mxu0 0.0
    %1996 = vmatpush2.msra.mxu0 0.0
    %1997 = vmatprep.subr.mxu0 0.0
    %1998 = vmatpush2.msra.mxu0 0.0
    %1999 = vmatprep.subr.mxu0 0.0
    %2000 = vmatpush2.msra.mxu0 0.0
    %2001 = vmatprep.subr.mxu0 0.0
    %2002 = vmatpush2.msra.mxu0 0.0
    %2003 = vmatprep.subr.mxu0 0.0
    %2004 = vmatpush2.msra.mxu0 0.0
    %2005 = vmatprep.subr.mxu0 0.0
    %2006 = vmatpush2.msra.mxu0 0.0
    %2007 = vmatprep.subr.mxu0 0.0
    %2008 = vmatpush2.msra.mxu0 0.0
    %2009 = vmatprep.subr.mxu0 0.0
    %2010 = vmatpush2.msra.mxu0 0.0
    %2011 = vmatprep.subr.mxu0 0.0
    %2012 = vmatpush2.msra.mxu0 0.0
    %2013 = vmatprep.mubr.f32.mxu0 0.0
    %2014 = vmatmul.mubr.f32.gmra.mxu0 %v1947
    %v2015 = vpop.f32.mrf.mxu0
    %v2016 = vadd.f32 0.0, %v2015
    %v2017 = vpop.f32.mrf.mxu0
    %v2018 = vadd.f32 0.0, %v2017
    %2019 = vdwg.mxu0
    %v2021 = vrot.slane %v2016, 2
    %v2023 = vadd.f32 %v1481, %v2021
    %v2024 = vadd.f32 %v1487, %v2018
    %v2025 = vmul.f32 %v2023, 0.5
    %v2026 = vtanh.pop %v2025
    %v2027 = vmul.f32 %v2026, 0.5
    %v2028 = vadd.f32 %v2027, 0.5
    %v2029 = vtanh.pop %v2023
    %v2031 = vrot.slane %v1903, 6
    %v2033 = vmul.f32 %v2028, %v2031
    %2035 = vrot.lane.b32.xlu0 %v2029, 32
    %v2036 = vpop.permute.xlu0 %2035
    %v2038 = vmul.f32 %v2028, %v2036
    %2040 = vrot.lane.b32.xlu0 %v2038, 32
    %v2041 = vpop.permute.xlu0 %2040
    %v2043 = vadd.f32 %v2033, %v2041
    %v2044 = vtanh.pop %v2043
    %2046 = vrot.lane.b32.xlu0 %v2044, 32
    %v2047 = vpop.permute.xlu0 %2046
    %v2049 = vmul.f32 %v2028, %v2047
    %v2050 = vmul.f32 %v2024, 0.5
    %v2051 = vtanh.pop %v2050
    %v2052 = vmul.f32 %v2051, 0.5
    %v2053 = vadd.f32 %v2052, 0.5
    %v2054 = vtanh.pop %v2024
    %v2056 = vrot.slane %v1928, 2
    %v2058 = vmul.f32 %v2053, %v2056
    %2060 = vrot.lane.b32.xlu0 %v2054, 32
    %v2061 = vpop.permute.xlu0 %2060
    %v2063 = vmul.f32 %v2053, %v2061
    %2065 = vrot.lane.b32.xlu0 %v2063, 32
    %v2066 = vpop.permute.xlu0 %2065
    %v2068 = vadd.f32 %v2058, %v2066
    %v2069 = vtanh.pop %v2068
    %2071 = vrot.lane.b32.xlu0 %v2069, 32
    %v2072 = vpop.permute.xlu0 %2071
    %v2074 = vmul.f32 %v2053, %v2072
    %2076 = vrot.lane.b32.xlu0 %v2049, 64
    %v2077 = vpop.permute.xlu0 %2076
    %v2080 = vrot.slane %v2074, 2
    %2081 = vrot.lane.b32.xlu0 %v2080, 96
    %v2082 = vpop.permute.xlu0 %2081
    %v2084 = vsel %vm163, %v2077, %v2082
    %v2086 = vrot.slane %v2084, 6
    %v2087 = vsel %vm237, %v2086, 0
    %2089 = vmatprep.subr.mxu0 0.0
    %2090 = vmatpush1.msra.mxu0 0.0
    %2091 = vmatprep.subr.mxu0 0.0
    %2092 = vmatpush1.msra.mxu0 0.0
    %2093 = vmatprep.subr.mxu0 0.0
    %2094 = vmatpush1.msra.mxu0 0.0
    %2095 = vmatprep.subr.mxu0 0.0
    %2096 = vmatpush1.msra.mxu0 0.0
    %2097 = vmatprep.subr.mxu0 0.0
    %2098 = vmatpush1.msra.mxu0 0.0
    %2099 = vmatprep.subr.mxu0 0.0
    %2100 = vmatpush1.msra.mxu0 0.0
    %2101 = vmatprep.subr.mxu0 0.0
    %2102 = vmatpush1.msra.mxu0 0.0
    %2103 = vmatprep.subr.mxu0 0.0
    %2104 = vmatpush1.msra.mxu0 0.0
    %2105 = vmatprep.subr.mxu0 %v1517
    %2106 = vmatpush1.msra.mxu0 %v1516
    %2107 = vmatprep.subr.mxu0 %v1515
    %2108 = vmatpush1.msra.mxu0 %v1514
    %2109 = vmatprep.subr.mxu0 %v1513
    %2110 = vmatpush1.msra.mxu0 %v1512
    %2111 = vmatprep.subr.mxu0 %v1511
    %2112 = vmatpush1.msra.mxu0 %v1510
    %2113 = vmatprep.subr.mxu0 %v1509
    %2114 = vmatpush1.msra.mxu0 %v1508
    %2115 = vmatprep.subr.mxu0 %v1507
    %2116 = vmatpush1.msra.mxu0 %v1506
    %2117 = vmatprep.subr.mxu0 %v1505
    %2118 = vmatpush1.msra.mxu0 %v1504
    %2119 = vmatprep.subr.mxu0 %v1503
    %2120 = vmatpush1.msra.mxu0 %v1502
    %2121 = vmatprep.subr.mxu0 0.0
    %2122 = vmatpush2.msra.mxu0 0.0
    %2123 = vmatprep.subr.mxu0 0.0
    %2124 = vmatpush2.msra.mxu0 0.0
    %2125 = vmatprep.subr.mxu0 0.0
    %2126 = vmatpush2.msra.mxu0 0.0
    %2127 = vmatprep.subr.mxu0 0.0
    %2128 = vmatpush2.msra.mxu0 0.0
    %2129 = vmatprep.subr.mxu0 0.0
    %2130 = vmatpush2.msra.mxu0 0.0
    %2131 = vmatprep.subr.mxu0 0.0
    %2132 = vmatpush2.msra.mxu0 0.0
    %2133 = vmatprep.subr.mxu0 0.0
    %2134 = vmatpush2.msra.mxu0 0.0
    %2135 = vmatprep.subr.mxu0 0.0
    %2136 = vmatpush2.msra.mxu0 0.0
    %2137 = vmatprep.subr.mxu0 0.0
    %2138 = vmatpush2.msra.mxu0 0.0
    %2139 = vmatprep.subr.mxu0 0.0
    %2140 = vmatpush2.msra.mxu0 0.0
    %2141 = vmatprep.subr.mxu0 0.0
    %2142 = vmatpush2.msra.mxu0 0.0
    %2143 = vmatprep.subr.mxu0 0.0
    %2144 = vmatpush2.msra.mxu0 0.0
    %2145 = vmatprep.subr.mxu0 0.0
    %2146 = vmatpush2.msra.mxu0 0.0
    %2147 = vmatprep.subr.mxu0 0.0
    %2148 = vmatpush2.msra.mxu0 0.0
    %2149 = vmatprep.subr.mxu0 0.0
    %2150 = vmatpush2.msra.mxu0 0.0
    %2151 = vmatprep.subr.mxu0 0.0
    %2152 = vmatpush2.msra.mxu0 0.0
    %2153 = vmatprep.mubr.f32.mxu0 0.0
    %2154 = vmatmul.mubr.f32.gmra.mxu0 %v2087
    %v2155 = vpop.f32.mrf.mxu0
    %v2156 = vadd.f32 0.0, %v2155
    %v2157 = vpop.f32.mrf.mxu0
    %v2158 = vadd.f32 0.0, %v2157
    %2159 = vdwg.mxu0
    %v2160 = vadd.f32 %v1485, %v2156
    %v2162 = vrot.slane %v2158, 2
    %v2164 = vadd.f32 %v1483, %v2162
    %v2165 = vmul.f32 %v2160, 0.5
    %v2166 = vtanh.pop %v2165
    %v2167 = vmul.f32 %v2166, 0.5
    %v2168 = vadd.f32 %v2167, 0.5
    %v2169 = vtanh.pop %v2160
    %v2171 = vrot.slane %v2043, 6
    %v2173 = vmul.f32 %v2168, %v2171
    %2175 = vrot.lane.b32.xlu0 %v2169, 32
    %v2176 = vpop.permute.xlu0 %2175
    %v2178 = vmul.f32 %v2168, %v2176
    %2180 = vrot.lane.b32.xlu0 %v2178, 32
    %v2181 = vpop.permute.xlu0 %2180
    %v2183 = vadd.f32 %v2173, %v2181
    %v2184 = vtanh.pop %v2183
    %2186 = vrot.lane.b32.xlu0 %v2184, 32
    %v2187 = vpop.permute.xlu0 %2186
    %v2189 = vmul.f32 %v2168, %v2187
    %v2190 = vmul.f32 %v2164, 0.5
    %v2191 = vtanh.pop %v2190
    %v2192 = vmul.f32 %v2191, 0.5
    %v2193 = vadd.f32 %v2192, 0.5
    %v2194 = vtanh.pop %v2164
    %v2196 = vrot.slane %v2068, 2
    %v2198 = vmul.f32 %v2193, %v2196
    %2200 = vrot.lane.b32.xlu0 %v2194, 32
    %v2201 = vpop.permute.xlu0 %2200
    %v2203 = vmul.f32 %v2193, %v2201
    %2205 = vrot.lane.b32.xlu0 %v2203, 32
    %v2206 = vpop.permute.xlu0 %2205
    %v2208 = vadd.f32 %v2198, %v2206
    %v2209 = vtanh.pop %v2208
    %2211 = vrot.lane.b32.xlu0 %v2209, 32
    %v2212 = vpop.permute.xlu0 %2211
    %v2214 = vmul.f32 %v2193, %v2212
    %2216 = vrot.lane.b32.xlu0 %v2189, 64
    %v2217 = vpop.permute.xlu0 %2216
    %v2220 = vrot.slane %v2214, 6
    %2221 = vrot.lane.b32.xlu0 %v2220, 96
    %v2222 = vpop.permute.xlu0 %2221
    %v2224 = vsel %vm163, %v2217, %v2222
    %v2226 = vsel %vm237, %v2224, 0
    %2228 = vmatprep.subr.mxu0 0.0
    %2229 = vmatpush1.msra.mxu0 0.0
    %2230 = vmatprep.subr.mxu0 0.0
    %2231 = vmatpush1.msra.mxu0 0.0
    %2232 = vmatprep.subr.mxu0 0.0
    %2233 = vmatpush1.msra.mxu0 0.0
    %2234 = vmatprep.subr.mxu0 0.0
    %2235 = vmatpush1.msra.mxu0 0.0
    %2236 = vmatprep.subr.mxu0 0.0
    %2237 = vmatpush1.msra.mxu0 0.0
    %2238 = vmatprep.subr.mxu0 0.0
    %2239 = vmatpush1.msra.mxu0 0.0
    %2240 = vmatprep.subr.mxu0 0.0
    %2241 = vmatpush1.msra.mxu0 0.0
    %2242 = vmatprep.subr.mxu0 0.0
    %2243 = vmatpush1.msra.mxu0 0.0
    %2244 = vmatprep.subr.mxu0 %v1517
    %2245 = vmatpush1.msra.mxu0 %v1516
    %2246 = vmatprep.subr.mxu0 %v1515
    %2247 = vmatpush1.msra.mxu0 %v1514
    %2248 = vmatprep.subr.mxu0 %v1513
    %2249 = vmatpush1.msra.mxu0 %v1512
    %2250 = vmatprep.subr.mxu0 %v1511
    %2251 = vmatpush1.msra.mxu0 %v1510
    %2252 = vmatprep.subr.mxu0 %v1509
    %2253 = vmatpush1.msra.mxu0 %v1508
    %2254 = vmatprep.subr.mxu0 %v1507
    %2255 = vmatpush1.msra.mxu0 %v1506
    %2256 = vmatprep.subr.mxu0 %v1505
    %2257 = vmatpush1.msra.mxu0 %v1504
    %2258 = vmatprep.subr.mxu0 %v1503
    %2259 = vmatpush1.msra.mxu0 %v1502
    %2260 = vmatprep.subr.mxu0 0.0
    %2261 = vmatpush2.msra.mxu0 0.0
    %2262 = vmatprep.subr.mxu0 0.0
    %2263 = vmatpush2.msra.mxu0 0.0
    %2264 = vmatprep.subr.mxu0 0.0
    %2265 = vmatpush2.msra.mxu0 0.0
    %2266 = vmatprep.subr.mxu0 0.0
    %2267 = vmatpush2.msra.mxu0 0.0
    %2268 = vmatprep.subr.mxu0 0.0
    %2269 = vmatpush2.msra.mxu0 0.0
    %2270 = vmatprep.subr.mxu0 0.0
    %2271 = vmatpush2.msra.mxu0 0.0
    %2272 = vmatprep.subr.mxu0 0.0
    %2273 = vmatpush2.msra.mxu0 0.0
    %2274 = vmatprep.subr.mxu0 0.0
    %2275 = vmatpush2.msra.mxu0 0.0
    %2276 = vmatprep.subr.mxu0 0.0
    %2277 = vmatpush2.msra.mxu0 0.0
    %2278 = vmatprep.subr.mxu0 0.0
    %2279 = vmatpush2.msra.mxu0 0.0
    %2280 = vmatprep.subr.mxu0 0.0
    %2281 = vmatpush2.msra.mxu0 0.0
    %2282 = vmatprep.subr.mxu0 0.0
    %2283 = vmatpush2.msra.mxu0 0.0
    %2284 = vmatprep.subr.mxu0 0.0
    %2285 = vmatpush2.msra.mxu0 0.0
    %2286 = vmatprep.subr.mxu0 0.0
    %2287 = vmatpush2.msra.mxu0 0.0
    %2288 = vmatprep.subr.mxu0 0.0
    %2289 = vmatpush2.msra.mxu0 0.0
    %2290 = vmatprep.subr.mxu0 0.0
    %2291 = vmatpush2.msra.mxu0 0.0
    %2292 = vmatprep.mubr.f32.mxu0 0.0
    %2293 = vmatmul.mubr.f32.gmra.mxu0 %v2226
    %v2294 = vpop.f32.mrf.mxu0
    %v2295 = vadd.f32 0.0, %v2294
    %v2296 = vpop.f32.mrf.mxu0
    %v2297 = vadd.f32 0.0, %v2296
    %2298 = vdwg.mxu0
    %v2300 = vrot.slane %v2295, 6
    %v2302 = vadd.f32 %v1485, %v2300
    %v2304 = vrot.slane %v2297, 4
    %v2306 = vadd.f32 %v1483, %v2304
    %v2307 = vmul.f32 %v2302, 0.5
    %v2308 = vtanh.pop %v2307
    %v2309 = vmul.f32 %v2308, 0.5
    %v2310 = vadd.f32 %v2309, 0.5
    %v2311 = vtanh.pop %v2302
    %v2313 = vrot.slane %v2183, 6
    %v2315 = vmul.f32 %v2310, %v2313
    %2317 = vrot.lane.b32.xlu0 %v2311, 32
    %v2318 = vpop.permute.xlu0 %2317
    %v2320 = vmul.f32 %v2310, %v2318
    %2322 = vrot.lane.b32.xlu0 %v2320, 32
    %v2323 = vpop.permute.xlu0 %2322
    %v2325 = vadd.f32 %v2315, %v2323
    %v2326 = vtanh.pop %v2325
    %2328 = vrot.lane.b32.xlu0 %v2326, 32
    %v2329 = vpop.permute.xlu0 %2328
    %v2331 = vmul.f32 %v2310, %v2329
    %v2332 = vmul.f32 %v2306, 0.5
    %v2333 = vtanh.pop %v2332
    %v2334 = vmul.f32 %v2333, 0.5
    %v2335 = vadd.f32 %v2334, 0.5
    %v2336 = vtanh.pop %v2306
    %v2338 = vrot.slane %v2208, 2
    %v2340 = vmul.f32 %v2335, %v2338
    %2342 = vrot.lane.b32.xlu0 %v2336, 32
    %v2343 = vpop.permute.xlu0 %2342
    %v2345 = vmul.f32 %v2335, %v2343
    %2347 = vrot.lane.b32.xlu0 %v2345, 32
    %v2348 = vpop.permute.xlu0 %2347
    %v2350 = vadd.f32 %v2340, %v2348
    %v2351 = vtanh.pop %v2350
    %2353 = vrot.lane.b32.xlu0 %v2351, 32
    %v2354 = vpop.permute.xlu0 %2353
    %v2356 = vmul.f32 %v2335, %v2354
    %2358 = vrot.lane.b32.xlu0 %v2331, 64
    %v2359 = vpop.permute.xlu0 %2358
    %v2362 = vrot.slane %v2356, 2
    %2363 = vrot.lane.b32.xlu0 %v2362, 96
    %v2364 = vpop.permute.xlu0 %2363
    %v2366 = vsel %vm163, %v2359, %v2364
    %v2368 = vrot.slane %v2366, 2
    %v2369 = vsel %vm237, %v2368, 0
    %2371 = vmatprep.subr.mxu0 0.0
    %2372 = vmatpush1.msra.mxu0 0.0
    %2373 = vmatprep.subr.mxu0 0.0
    %2374 = vmatpush1.msra.mxu0 0.0
    %2375 = vmatprep.subr.mxu0 0.0
    %2376 = vmatpush1.msra.mxu0 0.0
    %2377 = vmatprep.subr.mxu0 0.0
    %2378 = vmatpush1.msra.mxu0 0.0
    %2379 = vmatprep.subr.mxu0 0.0
    %2380 = vmatpush1.msra.mxu0 0.0
    %2381 = vmatprep.subr.mxu0 0.0
    %2382 = vmatpush1.msra.mxu0 0.0
    %2383 = vmatprep.subr.mxu0 0.0
    %2384 = vmatpush1.msra.mxu0 0.0
    %2385 = vmatprep.subr.mxu0 0.0
    %2386 = vmatpush1.msra.mxu0 0.0
    %2387 = vmatprep.subr.mxu0 %v1517
    %2388 = vmatpush1.msra.mxu0 %v1516
    %2389 = vmatprep.subr.mxu0 %v1515
    %2390 = vmatpush1.msra.mxu0 %v1514
    %2391 = vmatprep.subr.mxu0 %v1513
    %2392 = vmatpush1.msra.mxu0 %v1512
    %2393 = vmatprep.subr.mxu0 %v1511
    %2394 = vmatpush1.msra.mxu0 %v1510
    %2395 = vmatprep.subr.mxu0 %v1509
    %2396 = vmatpush1.msra.mxu0 %v1508
    %2397 = vmatprep.subr.mxu0 %v1507
    %2398 = vmatpush1.msra.mxu0 %v1506
    %2399 = vmatprep.subr.mxu0 %v1505
    %2400 = vmatpush1.msra.mxu0 %v1504
    %2401 = vmatprep.subr.mxu0 %v1503
    %2402 = vmatpush1.msra.mxu0 %v1502
    %2403 = vmatprep.subr.mxu0 0.0
    %2404 = vmatpush2.msra.mxu0 0.0
    %2405 = vmatprep.subr.mxu0 0.0
    %2406 = vmatpush2.msra.mxu0 0.0
    %2407 = vmatprep.subr.mxu0 0.0
    %2408 = vmatpush2.msra.mxu0 0.0
    %2409 = vmatprep.subr.mxu0 0.0
    %2410 = vmatpush2.msra.mxu0 0.0
    %2411 = vmatprep.subr.mxu0 0.0
    %2412 = vmatpush2.msra.mxu0 0.0
    %2413 = vmatprep.subr.mxu0 0.0
    %2414 = vmatpush2.msra.mxu0 0.0
    %2415 = vmatprep.subr.mxu0 0.0
    %2416 = vmatpush2.msra.mxu0 0.0
    %2417 = vmatprep.subr.mxu0 0.0
    %2418 = vmatpush2.msra.mxu0 0.0
    %2419 = vmatprep.subr.mxu0 0.0
    %2420 = vmatpush2.msra.mxu0 0.0
    %2421 = vmatprep.subr.mxu0 0.0
    %2422 = vmatpush2.msra.mxu0 0.0
    %2423 = vmatprep.subr.mxu0 0.0
    %2424 = vmatpush2.msra.mxu0 0.0
    %2425 = vmatprep.subr.mxu0 0.0
    %2426 = vmatpush2.msra.mxu0 0.0
    %2427 = vmatprep.subr.mxu0 0.0
    %2428 = vmatpush2.msra.mxu0 0.0
    %2429 = vmatprep.subr.mxu0 0.0
    %2430 = vmatpush2.msra.mxu0 0.0
    %2431 = vmatprep.subr.mxu0 0.0
    %2432 = vmatpush2.msra.mxu0 0.0
    %2433 = vmatprep.subr.mxu0 0.0
    %2434 = vmatpush2.msra.mxu0 0.0
    %2435 = vmatprep.mubr.f32.mxu0 0.0
    %2436 = vmatmul.mubr.f32.gmra.mxu0 %v2369
    %v2437 = vpop.f32.mrf.mxu0
    %v2438 = vadd.f32 0.0, %v2437
    %v2439 = vpop.f32.mrf.mxu0
    %v2440 = vadd.f32 0.0, %v2439
    %2441 = vdwg.mxu0
    %v2443 = vrot.slane %v2438, 4
    %v2445 = vadd.f32 %v1485, %v2443
    %v2447 = vrot.slane %v2440, 6
    %v2449 = vadd.f32 %v1483, %v2447
    %v2450 = vmul.f32 %v2445, 0.5
    %v2451 = vtanh.pop %v2450
    %v2452 = vmul.f32 %v2451, 0.5
    %v2453 = vadd.f32 %v2452, 0.5
    %v2454 = vtanh.pop %v2445
    %v2456 = vrot.slane %v2325, 6
    %v2458 = vmul.f32 %v2453, %v2456
    %2460 = vrot.lane.b32.xlu0 %v2454, 32
    %v2461 = vpop.permute.xlu0 %2460
    %v2463 = vmul.f32 %v2453, %v2461
    %2465 = vrot.lane.b32.xlu0 %v2463, 32
    %v2466 = vpop.permute.xlu0 %2465
    %v2468 = vadd.f32 %v2458, %v2466
    %v2469 = vtanh.pop %v2468
    %2471 = vrot.lane.b32.xlu0 %v2469, 32
    %v2472 = vpop.permute.xlu0 %2471
    %v2474 = vmul.f32 %v2453, %v2472
    %v2475 = vmul.f32 %v2449, 0.5
    %v2476 = vtanh.pop %v2475
    %v2477 = vmul.f32 %v2476, 0.5
    %v2478 = vadd.f32 %v2477, 0.5
    %v2479 = vtanh.pop %v2449
    %v2481 = vrot.slane %v2350, 2
    %v2483 = vmul.f32 %v2478, %v2481
    %2485 = vrot.lane.b32.xlu0 %v2479, 32
    %v2486 = vpop.permute.xlu0 %2485
    %v2488 = vmul.f32 %v2478, %v2486
    %2490 = vrot.lane.b32.xlu0 %v2488, 32
    %v2491 = vpop.permute.xlu0 %2490
    %v2493 = vadd.f32 %v2483, %v2491
    %v2494 = vtanh.pop %v2493
    %2496 = vrot.lane.b32.xlu0 %v2494, 32
    %v2497 = vpop.permute.xlu0 %2496
    %v2499 = vmul.f32 %v2478, %v2497
    %2501 = vrot.lane.b32.xlu0 %v2474, 64
    %v2502 = vpop.permute.xlu0 %2501
    %v2505 = vrot.slane %v2499, 6
    %2506 = vrot.lane.b32.xlu0 %v2505, 96
    %v2507 = vpop.permute.xlu0 %2506
    %v2509 = vsel %vm163, %v2502, %v2507
    %v2511 = vrot.slane %v2509, 4
    %v2512 = vsel %vm237, %v2511, 0
    %2514 = vmatprep.subr.mxu0 0.0
    %2515 = vmatpush1.msra.mxu0 0.0
    %2516 = vmatprep.subr.mxu0 0.0
    %2517 = vmatpush1.msra.mxu0 0.0
    %2518 = vmatprep.subr.mxu0 0.0
    %2519 = vmatpush1.msra.mxu0 0.0
    %2520 = vmatprep.subr.mxu0 0.0
    %2521 = vmatpush1.msra.mxu0 0.0
    %2522 = vmatprep.subr.mxu0 0.0
    %2523 = vmatpush1.msra.mxu0 0.0
    %2524 = vmatprep.subr.mxu0 0.0
    %2525 = vmatpush1.msra.mxu0 0.0
    %2526 = vmatprep.subr.mxu0 0.0
    %2527 = vmatpush1.msra.mxu0 0.0
    %2528 = vmatprep.subr.mxu0 0.0
    %2529 = vmatpush1.msra.mxu0 0.0
    %2530 = vmatprep.subr.mxu0 %v1517
    %2531 = vmatpush1.msra.mxu0 %v1516
    %2532 = vmatprep.subr.mxu0 %v1515
    %2533 = vmatpush1.msra.mxu0 %v1514
    %2534 = vmatprep.subr.mxu0 %v1513
    %2535 = vmatpush1.msra.mxu0 %v1512
    %2536 = vmatprep.subr.mxu0 %v1511
    %2537 = vmatpush1.msra.mxu0 %v1510
    %2538 = vmatprep.subr.mxu0 %v1509
    %2539 = vmatpush1.msra.mxu0 %v1508
    %2540 = vmatprep.subr.mxu0 %v1507
    %2541 = vmatpush1.msra.mxu0 %v1506
    %2542 = vmatprep.subr.mxu0 %v1505
    %2543 = vmatpush1.msra.mxu0 %v1504
    %2544 = vmatprep.subr.mxu0 %v1503
    %2545 = vmatpush1.msra.mxu0 %v1502
    %2546 = vmatprep.subr.mxu0 0.0
    %2547 = vmatpush2.msra.mxu0 0.0
    %2548 = vmatprep.subr.mxu0 0.0
    %2549 = vmatpush2.msra.mxu0 0.0
    %2550 = vmatprep.subr.mxu0 0.0
    %2551 = vmatpush2.msra.mxu0 0.0
    %2552 = vmatprep.subr.mxu0 0.0
    %2553 = vmatpush2.msra.mxu0 0.0
    %2554 = vmatprep.subr.mxu0 0.0
    %2555 = vmatpush2.msra.mxu0 0.0
    %2556 = vmatprep.subr.mxu0 0.0
    %2557 = vmatpush2.msra.mxu0 0.0
    %2558 = vmatprep.subr.mxu0 0.0
    %2559 = vmatpush2.msra.mxu0 0.0
    %2560 = vmatprep.subr.mxu0 0.0
    %2561 = vmatpush2.msra.mxu0 0.0
    %2562 = vmatprep.subr.mxu0 0.0
    %2563 = vmatpush2.msra.mxu0 0.0
    %2564 = vmatprep.subr.mxu0 0.0
    %2565 = vmatpush2.msra.mxu0 0.0
    %2566 = vmatprep.subr.mxu0 0.0
    %2567 = vmatpush2.msra.mxu0 0.0
    %2568 = vmatprep.subr.mxu0 0.0
    %2569 = vmatpush2.msra.mxu0 0.0
    %2570 = vmatprep.subr.mxu0 0.0
    %2571 = vmatpush2.msra.mxu0 0.0
    %2572 = vmatprep.subr.mxu0 0.0
    %2573 = vmatpush2.msra.mxu0 0.0
    %2574 = vmatprep.subr.mxu0 0.0
    %2575 = vmatpush2.msra.mxu0 0.0
    %2576 = vmatprep.subr.mxu0 0.0
    %2577 = vmatpush2.msra.mxu0 0.0
    %2578 = vmatprep.mubr.f32.mxu0 0.0
    %2579 = vmatmul.mubr.f32.gmra.mxu0 %v2512
    %v2580 = vpop.f32.mrf.mxu0
    %v2581 = vadd.f32 0.0, %v2580
    %v2582 = vpop.f32.mrf.mxu0
    %v2583 = vadd.f32 0.0, %v2582
    %2584 = vdwg.mxu0
    %v2586 = vrot.slane %v2581, 2
    %v2588 = vadd.f32 %v1485, %v2586
    %v2589 = vadd.f32 %v1483, %v2583
    %v2590 = vmul.f32 %v2588, 0.5
    %v2591 = vtanh.pop %v2590
    %v2592 = vmul.f32 %v2591, 0.5
    %v2593 = vadd.f32 %v2592, 0.5
    %v2594 = vtanh.pop %v2588
    %v2596 = vrot.slane %v2468, 6
    %v2598 = vmul.f32 %v2593, %v2596
    %2600 = vrot.lane.b32.xlu0 %v2594, 32
    %v2601 = vpop.permute.xlu0 %2600
    %v2603 = vmul.f32 %v2593, %v2601
    %2605 = vrot.lane.b32.xlu0 %v2603, 32
    %v2606 = vpop.permute.xlu0 %2605
    %v2608 = vadd.f32 %v2598, %v2606
    %v2609 = vtanh.pop %v2608
    %2611 = vrot.lane.b32.xlu0 %v2609, 32
    %v2612 = vpop.permute.xlu0 %2611
    %v2614 = vmul.f32 %v2593, %v2612
    %v2615 = vmul.f32 %v2589, 0.5
    %v2616 = vtanh.pop %v2615
    %v2617 = vmul.f32 %v2616, 0.5
    %v2618 = vadd.f32 %v2617, 0.5
    %v2619 = vtanh.pop %v2589
    %v2621 = vrot.slane %v2493, 2
    %v2623 = vmul.f32 %v2618, %v2621
    %2625 = vrot.lane.b32.xlu0 %v2619, 32
    %v2626 = vpop.permute.xlu0 %2625
    %v2628 = vmul.f32 %v2618, %v2626
    %2630 = vrot.lane.b32.xlu0 %v2628, 32
    %v2631 = vpop.permute.xlu0 %2630
    %v2633 = vadd.f32 %v2623, %v2631
    %v2634 = vtanh.pop %v2633
    %2636 = vrot.lane.b32.xlu0 %v2634, 32
    %v2637 = vpop.permute.xlu0 %2636
    %v2639 = vmul.f32 %v2618, %v2637
    %2641 = vrot.lane.b32.xlu0 %v2639, 96
    %v2642 = vpop.permute.xlu0 %2641
    %v2644 = vsel %vm163, %v1652, %v2642
    %2645 = vrot.lane.b32.xlu0 %v2499, 96
    %v2646 = vpop.permute.xlu0 %2645
    %v2648 = vsel %vm163, %v1794, %v2646
    %2649 = vrot.lane.b32.xlu0 %v2356, 96
    %v2650 = vpop.permute.xlu0 %2649
    %v2652 = vsel %vm163, %v1937, %v2650
    %2653 = vrot.lane.b32.xlu0 %v2214, 96
    %v2654 = vpop.permute.xlu0 %2653
    %v2656 = vsel %vm163, %v2077, %v2654
    %2657 = vrot.lane.b32.xlu0 %v2074, 96
    %v2658 = vpop.permute.xlu0 %2657
    %v2660 = vsel %vm163, %v2217, %v2658
    %2661 = vrot.lane.b32.xlu0 %v1934, 96
    %v2662 = vpop.permute.xlu0 %2661
    %v2664 = vsel %vm163, %v2359, %v2662
    %2665 = vrot.lane.b32.xlu0 %v1791, 96
    %v2666 = vpop.permute.xlu0 %2665
    %v2668 = vsel %vm163, %v2502, %v2666
    %2670 = vrot.lane.b32.xlu0 %v2614, 64
    %v2671 = vpop.permute.xlu0 %2670
    %2673 = vrot.lane.b32.xlu0 %v1649, 96
    %v2674 = vpop.permute.xlu0 %2673
    %v2676 = vsel %vm163, %v2671, %v2674
    %v2677 = vsel %vm1397, %v2644, %v2648
    %v2678 = vsel %vm1399, %v2677, %v2652
    %v2679 = vsel %vm1401, %v2678, %v2656
    %v2680 = vsel %vm1397, %v2660, %v2664
    %v2681 = vsel %vm1399, %v2680, %v2668
    %v2682 = vsel %vm1401, %v2681, %v2676
    %v2683 = vpack.c.bf16 %v2682, %v2679
    %v2684 = vld [vmem:[%s11] sm:$0xff]
    %v2685 = vld [vmem:[%s11 + $0x8] sm:$0xff]
    %v2686 = vld [vmem:[%s11 + $0x10] sm:$0xff]
    %v2687 = vld [vmem:[%s11 + $0x18] sm:$0xff]
    %v2688 = vld [vmem:[%s11 + $0x20] sm:$0xff]
    %v2689 = vld [vmem:[%s11 + $0x28] sm:$0xff]
    %v2690 = vld [vmem:[%s11 + $0x30] sm:$0xff]
    %v2691 = vld [vmem:[%s11 + $0x38] sm:$0xff]
    %v2692 = vpack.c.bf16 %v2685, %v2684
    %v2693 = vpack.c.bf16 %v2687, %v2686
    %v2694 = vpack.c.bf16 %v2689, %v2688
    %v2695 = vpack.c.bf16 %v2691, %v2690
    %v2696 = vld [vmem:[%s12] sm:$0x1]
    %v2698 = vlaneseq
    %v2699 = vshrl.u32 %v2698, 7
    %v2700 = vsub.s32 0, %v2699
    %v2701 = vrot.slane %v2696, %v2700
    %v2704 = vsel %vm237, %v2683, 0
    %2706 = vmatprep.subr.bf16.mxu0 0
    %2707 = vmatpush1.bf16.msra.mxu0 0
    %2708 = vmatprep.subr.bf16.mxu0 0
    %2709 = vmatpush1.bf16.msra.mxu0 0
    %2710 = vmatprep.subr.bf16.mxu0 0
    %2711 = vmatpush1.bf16.msra.mxu0 0
    %2712 = vmatprep.subr.bf16.mxu0 0
    %2713 = vmatpush1.bf16.msra.mxu0 0
    %2714 = vmatprep.subr.bf16.mxu0 0
    %2715 = vmatpush1.bf16.msra.mxu0 %v2695
    %2716 = vmatprep.subr.bf16.mxu0 0
    %2717 = vmatpush1.bf16.msra.mxu0 %v2694
    %2718 = vmatprep.subr.bf16.mxu0 0
    %2719 = vmatpush1.bf16.msra.mxu0 %v2693
    %2720 = vmatprep.subr.bf16.mxu0 0
    %2721 = vmatpush1.bf16.msra.mxu0 %v2692
    %2722 = vmatprep.subr.bf16.mxu0 0
    %2723 = vmatpush2.bf16.msra.mxu0 0
    %2724 = vmatprep.subr.bf16.mxu0 0
    %2725 = vmatpush2.bf16.msra.mxu0 0
    %2726 = vmatprep.subr.bf16.mxu0 0
    %2727 = vmatpush2.bf16.msra.mxu0 0
    %2728 = vmatprep.subr.bf16.mxu0 0
    %2729 = vmatpush2.bf16.msra.mxu0 0
    %2730 = vmatprep.subr.bf16.mxu0 0
    %2731 = vmatpush2.bf16.msra.mxu0 0
    %2732 = vmatprep.subr.bf16.mxu0 0
    %2733 = vmatpush2.bf16.msra.mxu0 0
    %2734 = vmatprep.subr.bf16.mxu0 0
    %2735 = vmatpush2.bf16.msra.mxu0 0
    %2736 = vmatprep.subr.bf16.mxu0 0
    %2737 = vmatpush2.bf16.msra.mxu0 0
    %2738 = vmatprep.mubr.bf16.mxu0 0
    %2739 = vmatmul.mubr.bf16.gmra.mxu0 %v2704
    %v2740 = vpop.f32.mrf.mxu0
    %v2741 = vadd.f32 %v2701, %v2740
    %v2742 = vpop.f32.mrf.mxu0
    %v2743 = vpop.f32.mrf.mxu0
    %v2744 = vadd.f32 %v2701, %v2743
    %v2745 = vpop.f32.mrf.mxu0
    %2746 = vdwg.mxu0
    %2747 = vst [vmem:[%s13] sm:$0xff] %v2741
    %2748 = vst [vmem:[%s13 + $0x8] sm:$0xff] %v2744
    %v2749 = vrot.slane %v1334, 6
    %v2751 = vrot.slane %v1359, 6
    %v2753 = vrot.slane %v2614, 2
    %v2755 = vrot.slane %v2639, 2
    %v2757 = vsel %vm1397, %v2749, %v2751
    %v2758 = vsel %vm1399, %v2757, %v2753
    %v2759 = vsel %vm1401, %v2758, %v2755
    %2761 = vrot.lane.b32.xlu0 %v2759, 64
    %v2762 = vpop.permute.xlu0 %2761
    %2764 = vst.msk [vmem:[#allocation7] sm:$0xff] %vm163, %v2762
    %v2766 = vrot.slane %v1328, 6
    %v2769 = vrot.slane %v1353, 6
    %v2772 = vrot.slane %v2608, 2
    %v2775 = vrot.slane %v2633, 2
    %v2777 = vsel %vm1397, %v2766, %v2769
    %v2778 = vsel %vm1399, %v2777, %v2772
    %v2779 = vsel %vm1401, %v2778, %v2775
    %2781 = vrot.lane.b32.xlu0 %v2779, 96
    %v2782 = vpop.permute.xlu0 %2781
    %2784 = vst.msk [vmem:[#allocation8] sm:$0xff] %vm163, %v2782
    // Predicated region
    $region62: #{bilstm_forward.1} parent=1 // pred_check
      _
    $region63: #{bilstm_forward.1} parent=1 // pred_check_branch
      %2786 = sbr.rel (0) target = $region65
    $region64: #{bilstm_forward.1} parent=1 // pred_region
      _
    $region65: #{bilstm_forward.1} parent=1 // pred_fallthru
      _
    // Predicated region
    $region66: #{bilstm_forward.1} parent=1 // pred_check
      _
    $region67: #{bilstm_forward.1} parent=1 // pred_check_branch
      %2788 = sbr.rel (0) target = $region69
    $region68: #{bilstm_forward.1} parent=1 // pred_region
      %s2790 = ssub.s32 128, 128
      %2791 = vsyncadd [#allocation4], %s2790
      %s2793 = sshll.u32 [#allocation7], 4
      %s2794 = int_to_ptr.vmem [resolvable:$true] %s2793
      %2796 = dma.vmem_to_hbm [thread:$0]  %s2794, 128, %s14, [#allocation4]
    $region69: #{bilstm_forward.1} parent=1 // pred_fallthru
      _
    // Predicated region
    $region70: #{bilstm_forward.1} parent=1 // pred_check
      _
    $region71: #{bilstm_forward.1} parent=1 // pred_check_branch
      %2798 = sbr.rel (0) target = $region73
    $region72: #{bilstm_forward.1} parent=1 // pred_region
      %s2800 = ssub.s32 128, 128
      %2801 = vsyncadd [#allocation9], %s2800
      %s2803 = sshll.u32 [#allocation8], 4
      %s2804 = int_to_ptr.vmem [resolvable:$true] %s2803
      %2806 = dma.vmem_to_hbm [thread:$0]  %s2804, 128, %s15, [#allocation9]
    $region73: #{bilstm_forward.1} parent=1 // pred_fallthru
      _
    // Predicated region
    $region74: #{bilstm_forward.1} parent=1 // pred_check
      _
    $region75: #{bilstm_forward.1} parent=1 // pred_check_branch
      %2808 = sbr.rel (0) target = $region77
    $region76: #{bilstm_forward.1} parent=1 // pred_region
      _
    $region77: #{bilstm_forward.1} parent=1 // pred_fallthru
      _
    // Predicated region
    $region78: #{bilstm_forward.1} parent=1 // pred_check
      _
    $region79: #{bilstm_forward.1} parent=1 // pred_check_branch
      %2810 = sbr.rel (0) target = $region81
    $region80: #{bilstm_forward.1} parent=1 // pred_region
      %2811 = dma.done [#allocation4], 128
    $region81: #{bilstm_forward.1} parent=1 // pred_fallthru
      _
    // Predicated region
    $region82: #{bilstm_forward.1} parent=1 // pred_check
      _
    $region83: #{bilstm_forward.1} parent=1 // pred_check_branch
      %2813 = sbr.rel (0) target = $region85
    $region84: #{bilstm_forward.1} parent=1 // pred_region
      %2814 = dma.done [#allocation9], 128
    $region85: #{bilstm_forward.1} parent=1 // pred_fallthru
      _
    %2815 = vsyncpa [#allocation3], 1
    %2816 = vsyncpa [#allocation6], 1
    %2817 = vsyncpa [#allocation4], 1
    %2818 = vsyncpa [#allocation9], 1

</llo_original>
